<compile_context>
chip_gen: v5e
topology: v5e:2x2
jax: 0.10.0
libtpu: 0.0.40
codegen_flags: <defaults>
</compile_context>

<pallas_src>
import numpy as np

import jax
import jax.numpy as jnp
from jax.experimental import pallas as pl
from jax.experimental.pallas import tpu as pltpu


# ----------------------------------------------------------------------------
# Fused DiscBlock kernel: one batch element per grid step.
# ----------------------------------------------------------------------------
def disc_block_kernel(x_ref, w1_ref, b1_ref, w2_ref, b2_ref, w0_ref, b0_ref,
                      pool_ref, o_ref, xp_ref, hp_ref):
    # x_ref   : (1, Cin, H, W)      raw NCHW input tile (one image)
    # w1_ref  : (Cout, 9*Cin)       conv3x3_1 weight, cols ordered (kh, kw, cin)
    # b1_ref  : (Cout, 1)
    # w2_ref  : (Cout, 9*Cout)      conv3x3_2 weight
    # b2_ref  : (Cout, 1)
    # w0_ref  : (Cout, Cin)         1x1 shortcut conv weight
    # b0_ref  : (Cout, 1)
    # pool_ref: (H*W, Ho*Wo)        2x2 average-pool matrix (entries 0 / 0.25)
    # o_ref   : (1, Cout, Ho*Wo)    NCHW output, spatial flattened (lane dense)
    # xp_ref  : VMEM (Cin,  H+2, W+2)  scratch: zero-padded relu(x)
    # hp_ref  : VMEM (Cout, H+2, W+2)  scratch: zero-padded relu(h1)
    Cin, H, W = x_ref.shape[1], x_ref.shape[2], x_ref.shape[3]
    Cout = o_ref.shape[1]
    HW = H * W

    def conv3x3(pad_ref, w_ref, b_ref, act):
        # act: (C, H, W) already-activated input.  Pad into VMEM scratch, build
        # the (9*C, H*W) im2col matrix, single MXU matmul -> (Cout, H*W).
        C = pad_ref.shape[0]
        pad_ref[...] = jnp.zeros_like(pad_ref)
        pad_ref[:, 1:H + 1, 1:W + 1] = act
        padded = pad_ref[...]                              # (C, H+2, W+2)
        taps = [padded[:, kh:kh + H, kw:kw + W]            # (C, H, W) per tap
                for kh in range(3) for kw in range(3)]
        patches = jnp.concatenate(taps, axis=0).reshape(9 * C, HW)
        return jnp.dot(w_ref[...], patches,
                       preferred_element_type=jnp.float32) + b_ref[...]

    x = x_ref[0]                                           # (Cin, H, W)

    # main path: relu -> conv3x3_1 -> relu -> conv3x3_2  (h1/h2 stay in VMEM)
    h1 = conv3x3(xp_ref, w1_ref, b1_ref, jnp.maximum(x, 0.0))
    h2 = conv3x3(hp_ref, w2_ref, b2_ref,
                 jnp.maximum(h1, 0.0).reshape(Cout, H, W))

    # shortcut: 1x1 conv on the raw input (no activation)
    s = jnp.dot(w0_ref[...], x.reshape(Cin, HW),
                preferred_element_type=jnp.float32) + b0_ref[...]

    # avgpool2(h2) + avgpool2(s) == avgpool2(h2 + s): one matmul with pool_ref
    out = jnp.dot(h2 + s, pool_ref[...], preferred_element_type=jnp.float32)
    o_ref[0] = out.astype(o_ref.dtype)                     # (Cout, Ho*Wo)


def _pool_matrix(H, W):
    # (H*W, Ho*Wo) matrix implementing 2x2 average pooling on the flattened
    # spatial dim (row index = h*W + w, col index = (h//2)*Wo + (w//2)).
    Ho, Wo = H // 2, W // 2
    P = np.zeros((H * W, Ho * Wo), np.float32)
    for h in range(H):
        for w in range(W):
            P[h * W + w, (h // 2) * Wo + (w // 2)] = 0.25
    return jnp.asarray(P)


def disc_block_pallas(x_nchw, params):
    w1, b1, w2, b2, w0, b0 = params                 # HWIO weights, 1-D biases
    N, Cin, H, W = x_nchw.shape
    Cout = w1.shape[-1]
    Ho, Wo = H // 2, W // 2

    # im2col weight matrices: rows = cout, cols ordered (kh, kw, cin)
    w1m = jnp.transpose(w1, (3, 0, 1, 2)).reshape(Cout, 9 * Cin)
    w2m = jnp.transpose(w2, (3, 0, 1, 2)).reshape(Cout, 9 * Cout)
    w0m = jnp.transpose(w0[0, 0], (1, 0))           # (Cout, Cin)
    b1c = b1.reshape(Cout, 1)
    b2c = b2.reshape(Cout, 1)
    b0c = b0.reshape(Cout, 1)
    pool_mat = _pool_matrix(H, W)

    out = pl.pallas_call(
        disc_block_kernel,
        out_shape=jax.ShapeDtypeStruct((N, Cout, Ho * Wo), x_nchw.dtype),
        grid=(N,),
        in_specs=[
            pl.BlockSpec((1, Cin, H, W), lambda n: (n, 0, 0, 0)),
            pl.BlockSpec((Cout, 9 * Cin), lambda n: (0, 0)),
            pl.BlockSpec((Cout, 1), lambda n: (0, 0)),
            pl.BlockSpec((Cout, 9 * Cout), lambda n: (0, 0)),
            pl.BlockSpec((Cout, 1), lambda n: (0, 0)),
            pl.BlockSpec((Cout, Cin), lambda n: (0, 0)),
            pl.BlockSpec((Cout, 1), lambda n: (0, 0)),
            pl.BlockSpec((H * W, Ho * Wo), lambda n: (0, 0)),
        ],
        out_specs=pl.BlockSpec((1, Cout, Ho * Wo), lambda n: (n, 0, 0)),
        scratch_shapes=[
            pltpu.VMEM((Cin, H + 2, W + 2), jnp.float32),
            pltpu.VMEM((Cout, H + 2, W + 2), jnp.float32),
        ],
        compiler_params=pltpu.CompilerParams(
            dimension_semantics=("parallel",)),
    )(x_nchw, w1m, b1c, w2m, b2c, w0m, b0c, pool_mat)

    # Output is already channel-major (NCHW); just split the spatial dim.
    return out.reshape(N, Cout, Ho, Wo)


# ----------------------------------------------------------------------------
# Pure-JAX reference
# ----------------------------------------------------------------------------
def _ref_pool2(t):
    N, H, W, C = t.shape
    return t.reshape(N, H // 2, 2, W // 2, 2, C).mean(axis=(2, 4))


def disc_block_ref(x_nchw, params):
    w1, b1, w2, b2, w0, b0 = params
    dn = ('NHWC', 'HWIO', 'NHWC')
    x = jnp.transpose(x_nchw, (0, 2, 3, 1))
    h = jax.nn.relu(x)
    h = jax.lax.conv_general_dilated(h, w1, (1, 1), 'SAME',
                                     dimension_numbers=dn) + b1
    h = jax.nn.relu(h)
    h = jax.lax.conv_general_dilated(h, w2, (1, 1), 'SAME',
                                     dimension_numbers=dn) + b2
    h = _ref_pool2(h)
    s = jax.lax.conv_general_dilated(x, w0, (1, 1), 'VALID',
                                     dimension_numbers=dn) + b0
    s = _ref_pool2(s)
    return jnp.transpose(h + s, (0, 3, 1, 2))


def spectral_normalize(w):
    # w: (kh, kw, cin, cout) HWIO.  Matches torch's sigma of weight reshaped to
    # (out, -1): column permutation does not change singular values.
    m = w.reshape(-1, w.shape[-1]).T
    sigma = jnp.linalg.norm(m, ord=2)
    return w / sigma


def make_params(key, cin, cout):
    ks = jax.random.split(key, 6)
    w1 = 0.1 * jax.random.normal(ks[0], (3, 3, cin, cout), jnp.float32)
    b1 = 0.1 * jax.random.normal(ks[1], (cout,), jnp.float32)
    w2 = 0.1 * jax.random.normal(ks[2], (3, 3, cout, cout), jnp.float32)
    b2 = 0.1 * jax.random.normal(ks[3], (cout,), jnp.float32)
    w0 = 0.1 * jax.random.normal(ks[4], (1, 1, cin, cout), jnp.float32)
    b0 = 0.1 * jax.random.normal(ks[5], (cout,), jnp.float32)
    # snconv2d: spectral-normalized weights
    return (spectral_normalize(w1), b1,
            spectral_normalize(w2), b2,
            spectral_normalize(w0), b0)


if __name__ == "__main__":
    N, Cin, Cout, H, W = 2, 4, 8, 16, 16
    key = jax.random.PRNGKey(0)
    kx, kp = jax.random.split(key)
    x = jax.random.normal(kx, (N, Cin, H, W), jnp.float32)   # NCHW like torch
    params = make_params(kp, Cin, Cout)

    out = jax.block_until_ready(disc_block_pallas(x, params))
    ref = jax.block_until_ready(disc_block_ref(x, params))

    assert out.shape == (N, Cout, H // 2, W // 2), out.shape
    err = float(jnp.max(jnp.abs(out - ref)))
    assert jnp.allclose(out, ref, atol=1e-4, rtol=1e-4), err
    print("KERNEL_OK")
</pallas_src>

<mosaic_0001>
module attributes {stable_mosaic.version = 11 : i64} {
  func.func @disc_block_kernel(%arg0: i32, %arg1: memref<1x4x16x16xf32, #tpu.memory_space<vmem>>, %arg2: memref<8x36xf32, #tpu.memory_space<vmem>>, %arg3: memref<8x1xf32, #tpu.memory_space<vmem>>, %arg4: memref<8x72xf32, #tpu.memory_space<vmem>>, %arg5: memref<8x1xf32, #tpu.memory_space<vmem>>, %arg6: memref<8x4xf32, #tpu.memory_space<vmem>>, %arg7: memref<8x1xf32, #tpu.memory_space<vmem>>, %arg8: memref<256x64xf32, #tpu.memory_space<vmem>>, %arg9: memref<1x8x64xf32, #tpu.memory_space<vmem>>, %arg10: memref<4x18x18xf32, #tpu.memory_space<vmem>>, %arg11: memref<8x18x18xf32, #tpu.memory_space<vmem>>) attributes {dimension_semantics = [#tpu.dimension_semantics<parallel>], iteration_bounds = array<i64: 2>, scalar_prefetch = 0 : i64, scratch_operands = 2 : i64, tpu.core_type = #tpu.core_type<tc>, window_params = [{transform_indices = @transform_0, window_bounds = array<i64: 1, 4, 16, 16>}, {pipeline_mode = #tpu.pipeline_mode<synchronous>, transform_indices = @transform_1, window_bounds = array<i64: 8, 36>}, {pipeline_mode = #tpu.pipeline_mode<synchronous>, transform_indices = @transform_2, window_bounds = array<i64: 8, 1>}, {pipeline_mode = #tpu.pipeline_mode<synchronous>, transform_indices = @transform_3, window_bounds = array<i64: 8, 72>}, {pipeline_mode = #tpu.pipeline_mode<synchronous>, transform_indices = @transform_4, window_bounds = array<i64: 8, 1>}, {pipeline_mode = #tpu.pipeline_mode<synchronous>, transform_indices = @transform_5, window_bounds = array<i64: 8, 4>}, {pipeline_mode = #tpu.pipeline_mode<synchronous>, transform_indices = @transform_6, window_bounds = array<i64: 8, 1>}, {pipeline_mode = #tpu.pipeline_mode<synchronous>, transform_indices = @transform_7, window_bounds = array<i64: 256, 64>}, {transform_indices = @transform_8, window_bounds = array<i64: 1, 8, 64>}]} {
    %c0 = arith.constant 0 : index
    %c0_0 = arith.constant 0 : index
    %c0_1 = arith.constant 0 : index
    %c0_2 = arith.constant 0 : index
    %0 = vector.load %arg1[%c0, %c0_0, %c0_1, %c0_2] : memref<1x4x16x16xf32, #tpu.memory_space<vmem>>, vector<1x4x16x16xf32>
    %1 = vector.shape_cast %0 : vector<1x4x16x16xf32> to vector<4x16x16xf32>
    %cst = arith.constant 0.000000e+00 : f32
    %2 = vector.broadcast %cst : f32 to vector<4x16x16xf32>
    %3 = arith.maximumf %1, %2 : vector<4x16x16xf32>
    %cst_3 = arith.constant 0.000000e+00 : f32
    %4 = vector.broadcast %cst_3 : f32 to vector<4x18x18xf32>
    %c0_4 = arith.constant 0 : index
    %c0_5 = arith.constant 0 : index
    %c0_6 = arith.constant 0 : index
    %5 = vector.load %arg10[%c0_4, %c0_5, %c0_6] : memref<4x18x18xf32, #tpu.memory_space<vmem>>, vector<4x18x18xf32>
    tpu.vector_store %arg10[%c0_4, %c0_5, %c0_6], %4 {strides = array<i32>} : memref<4x18x18xf32, #tpu.memory_space<vmem>>, vector<4x18x18xf32>,
    %c0_7 = arith.constant 0 : index
    %c1 = arith.constant 1 : index
    %c1_8 = arith.constant 1 : index
    %6 = vector.load %arg10[%c0_7, %c1, %c1_8] : memref<4x18x18xf32, #tpu.memory_space<vmem>>, vector<4x16x16xf32>
    tpu.vector_store %arg10[%c0_7, %c1, %c1_8], %3 {strides = array<i32>} : memref<4x18x18xf32, #tpu.memory_space<vmem>>, vector<4x16x16xf32>,
    %c0_9 = arith.constant 0 : index
    %c0_10 = arith.constant 0 : index
    %c0_11 = arith.constant 0 : index
    %7 = vector.load %arg10[%c0_9, %c0_10, %c0_11] : memref<4x18x18xf32, #tpu.memory_space<vmem>>, vector<4x18x18xf32>
    %8 = vector.extract_strided_slice %7 {offsets = [0, 0, 0], sizes = [4, 16, 16], strides = [1, 1, 1]} : vector<4x18x18xf32> to vector<4x16x16xf32>
    %9 = vector.extract_strided_slice %7 {offsets = [0, 0, 1], sizes = [4, 16, 16], strides = [1, 1, 1]} : vector<4x18x18xf32> to vector<4x16x16xf32>
    %10 = vector.extract_strided_slice %7 {offsets = [0, 0, 2], sizes = [4, 16, 16], strides = [1, 1, 1]} : vector<4x18x18xf32> to vector<4x16x16xf32>
    %11 = vector.extract_strided_slice %7 {offsets = [0, 1, 0], sizes = [4, 16, 16], strides = [1, 1, 1]} : vector<4x18x18xf32> to vector<4x16x16xf32>
    %12 = vector.extract_strided_slice %7 {offsets = [0, 1, 1], sizes = [4, 16, 16], strides = [1, 1, 1]} : vector<4x18x18xf32> to vector<4x16x16xf32>
    %13 = vector.extract_strided_slice %7 {offsets = [0, 1, 2], sizes = [4, 16, 16], strides = [1, 1, 1]} : vector<4x18x18xf32> to vector<4x16x16xf32>
    %14 = vector.extract_strided_slice %7 {offsets = [0, 2, 0], sizes = [4, 16, 16], strides = [1, 1, 1]} : vector<4x18x18xf32> to vector<4x16x16xf32>
    %15 = vector.extract_strided_slice %7 {offsets = [0, 2, 1], sizes = [4, 16, 16], strides = [1, 1, 1]} : vector<4x18x18xf32> to vector<4x16x16xf32>
    %16 = vector.extract_strided_slice %7 {offsets = [0, 2, 2], sizes = [4, 16, 16], strides = [1, 1, 1]} : vector<4x18x18xf32> to vector<4x16x16xf32>
    %17 = tpu.concatenate %8, %9, %10, %11, %12, %13, %14, %15, %16 in 0 : vector<4x16x16xf32>, vector<4x16x16xf32>, vector<4x16x16xf32>, vector<4x16x16xf32>, vector<4x16x16xf32>, vector<4x16x16xf32>, vector<4x16x16xf32>, vector<4x16x16xf32>, vector<4x16x16xf32> -> vector<36x16x16xf32>
    %18 = vector.shape_cast %17 : vector<36x16x16xf32> to vector<36x256xf32>
    %c0_12 = arith.constant 0 : index
    %c0_13 = arith.constant 0 : index
    %19 = vector.load %arg2[%c0_12, %c0_13] : memref<8x36xf32, #tpu.memory_space<vmem>>, vector<8x36xf32>
    %cst_14 = arith.constant dense<0.000000e+00> : vector<8x256xf32>
    %20 = tpu.matmul %19, %18, %cst_14 {dimension_numbers = #tpu.dot_dimension_numbers<[1], [0], [0], [1], [0, 0, 1, 1], [], []>} : vector<8x36xf32>, vector<36x256xf32>, vector<8x256xf32> -> vector<8x256xf32>
    %c0_15 = arith.constant 0 : index
    %c0_16 = arith.constant 0 : index
    %21 = vector.load %arg3[%c0_15, %c0_16] : memref<8x1xf32, #tpu.memory_space<vmem>>, vector<8x1xf32>
    %22 = vector.broadcast %21 : vector<8x1xf32> to vector<8x256xf32>
    %23 = arith.addf %20, %22 : vector<8x256xf32>
    %cst_17 = arith.constant 0.000000e+00 : f32
    %24 = vector.broadcast %cst_17 : f32 to vector<8x256xf32>
    %25 = arith.maximumf %23, %24 : vector<8x256xf32>
    %26 = vector.shape_cast %25 : vector<8x256xf32> to vector<8x16x16xf32>
    %cst_18 = arith.constant 0.000000e+00 : f32
    %27 = vector.broadcast %cst_18 : f32 to vector<8x18x18xf32>
    %c0_19 = arith.constant 0 : index
    %c0_20 = arith.constant 0 : index
    %c0_21 = arith.constant 0 : index
    %28 = vector.load %arg11[%c0_19, %c0_20, %c0_21] : memref<8x18x18xf32, #tpu.memory_space<vmem>>, vector<8x18x18xf32>
    tpu.vector_store %arg11[%c0_19, %c0_20, %c0_21], %27 {strides = array<i32>} : memref<8x18x18xf32, #tpu.memory_space<vmem>>, vector<8x18x18xf32>,
    %c0_22 = arith.constant 0 : index
    %c1_23 = arith.constant 1 : index
    %c1_24 = arith.constant 1 : index
    %29 = vector.load %arg11[%c0_22, %c1_23, %c1_24] : memref<8x18x18xf32, #tpu.memory_space<vmem>>, vector<8x16x16xf32>
    tpu.vector_store %arg11[%c0_22, %c1_23, %c1_24], %26 {strides = array<i32>} : memref<8x18x18xf32, #tpu.memory_space<vmem>>, vector<8x16x16xf32>,
    %c0_25 = arith.constant 0 : index
    %c0_26 = arith.constant 0 : index
    %c0_27 = arith.constant 0 : index
    %30 = vector.load %arg11[%c0_25, %c0_26, %c0_27] : memref<8x18x18xf32, #tpu.memory_space<vmem>>, vector<8x18x18xf32>
    %31 = vector.extract_strided_slice %30 {offsets = [0, 0, 0], sizes = [8, 16, 16], strides = [1, 1, 1]} : vector<8x18x18xf32> to vector<8x16x16xf32>
    %32 = vector.extract_strided_slice %30 {offsets = [0, 0, 1], sizes = [8, 16, 16], strides = [1, 1, 1]} : vector<8x18x18xf32> to vector<8x16x16xf32>
    %33 = vector.extract_strided_slice %30 {offsets = [0, 0, 2], sizes = [8, 16, 16], strides = [1, 1, 1]} : vector<8x18x18xf32> to vector<8x16x16xf32>
    %34 = vector.extract_strided_slice %30 {offsets = [0, 1, 0], sizes = [8, 16, 16], strides = [1, 1, 1]} : vector<8x18x18xf32> to vector<8x16x16xf32>
    %35 = vector.extract_strided_slice %30 {offsets = [0, 1, 1], sizes = [8, 16, 16], strides = [1, 1, 1]} : vector<8x18x18xf32> to vector<8x16x16xf32>
    %36 = vector.extract_strided_slice %30 {offsets = [0, 1, 2], sizes = [8, 16, 16], strides = [1, 1, 1]} : vector<8x18x18xf32> to vector<8x16x16xf32>
    %37 = vector.extract_strided_slice %30 {offsets = [0, 2, 0], sizes = [8, 16, 16], strides = [1, 1, 1]} : vector<8x18x18xf32> to vector<8x16x16xf32>
    %38 = vector.extract_strided_slice %30 {offsets = [0, 2, 1], sizes = [8, 16, 16], strides = [1, 1, 1]} : vector<8x18x18xf32> to vector<8x16x16xf32>
    %39 = vector.extract_strided_slice %30 {offsets = [0, 2, 2], sizes = [8, 16, 16], strides = [1, 1, 1]} : vector<8x18x18xf32> to vector<8x16x16xf32>
    %40 = tpu.concatenate %31, %32, %33, %34, %35, %36, %37, %38, %39 in 0 : vector<8x16x16xf32>, vector<8x16x16xf32>, vector<8x16x16xf32>, vector<8x16x16xf32>, vector<8x16x16xf32>, vector<8x16x16xf32>, vector<8x16x16xf32>, vector<8x16x16xf32>, vector<8x16x16xf32> -> vector<72x16x16xf32>
    %41 = vector.shape_cast %40 : vector<72x16x16xf32> to vector<72x256xf32>
    %c0_28 = arith.constant 0 : index
    %c0_29 = arith.constant 0 : index
    %42 = vector.load %arg4[%c0_28, %c0_29] : memref<8x72xf32, #tpu.memory_space<vmem>>, vector<8x72xf32>
    %cst_30 = arith.constant dense<0.000000e+00> : vector<8x256xf32>
    %43 = tpu.matmul %42, %41, %cst_30 {dimension_numbers = #tpu.dot_dimension_numbers<[1], [0], [0], [1], [0, 0, 1, 1], [], []>} : vector<8x72xf32>, vector<72x256xf32>, vector<8x256xf32> -> vector<8x256xf32>
    %c0_31 = arith.constant 0 : index
    %c0_32 = arith.constant 0 : index
    %44 = vector.load %arg5[%c0_31, %c0_32] : memref<8x1xf32, #tpu.memory_space<vmem>>, vector<8x1xf32>
    %45 = vector.broadcast %44 : vector<8x1xf32> to vector<8x256xf32>
    %46 = arith.addf %43, %45 : vector<8x256xf32>
    %c0_33 = arith.constant 0 : index
    %c0_34 = arith.constant 0 : index
    %47 = vector.load %arg6[%c0_33, %c0_34] : memref<8x4xf32, #tpu.memory_space<vmem>>, vector<8x4xf32>
    %48 = vector.shape_cast %1 : vector<4x16x16xf32> to vector<4x256xf32>
    %cst_35 = arith.constant dense<0.000000e+00> : vector<8x256xf32>
    %49 = tpu.matmul %47, %48, %cst_35 {dimension_numbers = #tpu.dot_dimension_numbers<[1], [0], [0], [1], [0, 0, 1, 1], [], []>} : vector<8x4xf32>, vector<4x256xf32>, vector<8x256xf32> -> vector<8x256xf32>
    %c0_36 = arith.constant 0 : index
    %c0_37 = arith.constant 0 : index
    %50 = vector.load %arg7[%c0_36, %c0_37] : memref<8x1xf32, #tpu.memory_space<vmem>>, vector<8x1xf32>
    %51 = vector.broadcast %50 : vector<8x1xf32> to vector<8x256xf32>
    %52 = arith.addf %49, %51 : vector<8x256xf32>
    %53 = arith.addf %46, %52 : vector<8x256xf32>
    %c0_38 = arith.constant 0 : index
    %c0_39 = arith.constant 0 : index
    %54 = vector.load %arg8[%c0_38, %c0_39] : memref<256x64xf32, #tpu.memory_space<vmem>>, vector<256x64xf32>
    %cst_40 = arith.constant dense<0.000000e+00> : vector<8x64xf32>
    %55 = tpu.matmul %53, %54, %cst_40 {dimension_numbers = #tpu.dot_dimension_numbers<[1], [0], [0], [1], [0, 0, 1, 1], [], []>} : vector<8x256xf32>, vector<256x64xf32>, vector<8x64xf32> -> vector<8x64xf32>
    %c0_41 = arith.constant 0 : index
    %c0_42 = arith.constant 0 : index
    %c0_43 = arith.constant 0 : index
    %56 = vector.load %arg9[%c0_41, %c0_42, %c0_43] : memref<1x8x64xf32, #tpu.memory_space<vmem>>, vector<1x8x64xf32>
    %57 = vector.shape_cast %56 : vector<1x8x64xf32> to vector<8x64xf32>
    %58 = vector.shape_cast %55 : vector<8x64xf32> to vector<1x8x64xf32>
    tpu.vector_store %arg9[%c0_41, %c0_42, %c0_43], %58 {strides = array<i32>} : memref<1x8x64xf32, #tpu.memory_space<vmem>>, vector<1x8x64xf32>,
    return
  }
  func.func @transform_0(%arg0: i32) -> (i32, i32, i32, i32) {
    %c0_i32 = arith.constant 0 : i32
    %c0_i32_0 = arith.constant 0 : i32
    %c0_i32_1 = arith.constant 0 : i32
    %c0_i32_2 = arith.constant 0 : i32
    return %arg0, %c0_i32, %c0_i32_0, %c0_i32_1 : i32, i32, i32, i32
  }
  func.func @transform_1(%arg0: i32) -> (i32, i32) {
    %c0_i32 = arith.constant 0 : i32
    %c0_i32_0 = arith.constant 0 : i32
    %c0_i32_1 = arith.constant 0 : i32
    return %c0_i32, %c0_i32_0 : i32, i32
  }
  func.func @transform_2(%arg0: i32) -> (i32, i32) {
    %c0_i32 = arith.constant 0 : i32
    %c0_i32_0 = arith.constant 0 : i32
    %c0_i32_1 = arith.constant 0 : i32
    return %c0_i32, %c0_i32_0 : i32, i32
  }
  func.func @transform_3(%arg0: i32) -> (i32, i32) {
    %c0_i32 = arith.constant 0 : i32
    %c0_i32_0 = arith.constant 0 : i32
    %c0_i32_1 = arith.constant 0 : i32
    return %c0_i32, %c0_i32_0 : i32, i32
  }
  func.func @transform_4(%arg0: i32) -> (i32, i32) {
    %c0_i32 = arith.constant 0 : i32
    %c0_i32_0 = arith.constant 0 : i32
    %c0_i32_1 = arith.constant 0 : i32
    return %c0_i32, %c0_i32_0 : i32, i32
  }
  func.func @transform_5(%arg0: i32) -> (i32, i32) {
    %c0_i32 = arith.constant 0 : i32
    %c0_i32_0 = arith.constant 0 : i32
    %c0_i32_1 = arith.constant 0 : i32
    return %c0_i32, %c0_i32_0 : i32, i32
  }
  func.func @transform_6(%arg0: i32) -> (i32, i32) {
    %c0_i32 = arith.constant 0 : i32
    %c0_i32_0 = arith.constant 0 : i32
    %c0_i32_1 = arith.constant 0 : i32
    return %c0_i32, %c0_i32_0 : i32, i32
  }
  func.func @transform_7(%arg0: i32) -> (i32, i32) {
    %c0_i32 = arith.constant 0 : i32
    %c0_i32_0 = arith.constant 0 : i32
    %c0_i32_1 = arith.constant 0 : i32
    return %c0_i32, %c0_i32_0 : i32, i32
  }
  func.func @transform_8(%arg0: i32) -> (i32, i32, i32) {
    %c0_i32 = arith.constant 0 : i32
    %c0_i32_0 = arith.constant 0 : i32
    %c0_i32_1 = arith.constant 0 : i32
    return %arg0, %c0_i32, %c0_i32_0 : i32, i32, i32
  }
}

</mosaic_0001>

<llo_original>
// kernel: tpu_custom_call.1
$region0: #{tpu_custom_call.1}
  #allocation0 [shape = 'u32[]', space=smem, size = 0x4, offset = 0x4, fixed_abs, tag = 'smem constant byte address 0x4 - core index']
  #allocation1 [shape = 'u32[72,128]{1,0:T(1,128)}', space=vmem, size = 0x9000, scoped, tag = 'internal scratch']
  #allocation2 [shape = 'f32[4,18,18]{2,1,0:T(8,128)}', space=vmem, size = 0xc000, scoped, tag = 'scratch operand']
  #allocation3 [shape = 'f32[8,18,18]{2,1,0:T(8,128)}', space=vmem, size = 0x18000, scoped, tag = 'scratch operand']
  %s0 = inlined_call_operand.vmem [shape: f32[2,4,16,16], index: 0, kind: input, shape index: {}]
  %s1 = inlined_call_operand.vmem [shape: f32[8,36], index: 1, kind: input, shape index: {}]
  %s2 = inlined_call_operand.vmem [shape: f32[8,1], index: 2, kind: input, shape index: {}]
  %s3 = inlined_call_operand.vmem [shape: f32[8,72], index: 3, kind: input, shape index: {}]
  %s4 = inlined_call_operand.vmem [shape: f32[8,1], index: 4, kind: input, shape index: {}]
  %s5 = inlined_call_operand.vmem [shape: f32[8,4], index: 5, kind: input, shape index: {}]
  %s6 = inlined_call_operand.vmem [shape: f32[8,1], index: 6, kind: input, shape index: {}]
  %s7 = inlined_call_operand.vmem [shape: f32[256,64], index: 7, kind: input, shape index: {}]
  %s8 = inlined_call_operand.hbm [shape: f32[2,8,64], index: 8, kind: output, shape index: {}]
  %s9 = sld [smem:[#allocation0]]
  $region65: #{tpu_custom_call.1} parent=0
    _
  %s11 = ssub.s32 1, %s9
  %s12 = scalar_select 0, %s11, %s9
  $region1: #{tpu_custom_call.1} parent=0
    #allocation4 [shape = 'u8[8192]{0}', space=vmem, size = 0x2000, scoped, tag = 'output window, operand 0']
    #allocation5 [shape = 's32[2]{0}', space=sflag, size = 0x8, scoped, tag = 'scoped memory for tpu_custom_call.1']
    %13 = vsyncpa [#allocation5], 0
    %s14 = scalar_lea.sflag [#allocation5], 1
    %15 = vsyncpa %s14, 0
    loop: start=0, step=1, limit=4
    $region2: #{tpu_custom_call.1} parent=1 // loop_pre_header
      _
    $region3: #{tpu_custom_call.1} parent=1 // loop_header
      %s17 = sphi 0, %s21
      %p18 = scmp.ge.s32.totalorder %s17, 4
      %s27 = sphi 0, %s29
      %s30 = sphi 0, %s27
      %s31 = sphi 0, %s30
      %s47 = sphi 0, %s31
      %s51 = sphi 0, %s51
      %s53 = sphi 0, %s51
      %s54 = sphi 0, %s53
      %s68 = sphi 0, %s54
      %s72 = sphi 0, %s72
      %s74 = sphi 0, %s72
      %s75 = sphi 0, %s74
      %s89 = sphi 0, %s75
      %s93 = sphi 0, %s93
      %s95 = sphi 0, %s93
      %s96 = sphi 0, %s95
      %s110 = sphi 0, %s96
      %s114 = sphi 0, %s114
      %s116 = sphi 0, %s114
      %s117 = sphi 0, %s116
      %s131 = sphi 0, %s117
      %s135 = sphi 0, %s135
      %s137 = sphi 0, %s135
      %s138 = sphi 0, %s137
      %s152 = sphi 0, %s138
      %s156 = sphi 0, %s156
      %s158 = sphi 0, %s156
      %s159 = sphi 0, %s158
      %s173 = sphi 0, %s159
      %s177 = sphi 0, %s177
      %s179 = sphi 0, %s177
      %s180 = sphi 0, %s179
      %s194 = sphi 0, %s180
      %s200 = sphi 0, %s202
      %s203 = sphi 0, %s200
      %s204 = sphi 0, %s203
      %s220 = sphi 0, %s204
    $region4: #{tpu_custom_call.1} parent=1 // loop_header_branch
      %20 = sbr.rel (%p18) target = $region8
    $region5: #{tpu_custom_call.1} parent=1 // loop_body
      %s22 = ssub.s32 %s17, 1
      %s23 = ssub.s32 %s17, 2
      %s24 = sadd.s32 %s17, 1
      %s25 = ssub.s32 %s17, %s24
      %p26 = scmp.eq.s32.totalorder %s25, 0
      %s28 = sadd.s32 %s27, 1
      %s29 = scalar_select %p26, %s27, %s28
      %p32 = pneg %p26
      %p33 = scmp.eq.s32.totalorder %s17, 1
      %p34 = por %p32, %p33
      %p35 = scmp.ne.s32.totalorder %s27, %s30
      %p36 = scmp.eq.s32.totalorder %s17, 0
      %p37 = por %p35, %p36
      %p38 = scmp.ne.s32.totalorder %s27, %s30
      %p39 = scmp.eq.s32.totalorder %s22, 1
      %p40 = por %p38, %p39
      %p41 = scmp.ne.s32.totalorder %s30, %s31
      %p42 = scmp.eq.s32.totalorder %s22, 0
      %p43 = por %p41, %p42
      %p44 = scmp.ne.s32.totalorder %s30, %s31
      %p45 = scmp.eq.s32.totalorder %s23, 1
      %p46 = por %p44, %p45
      %p48 = scmp.ne.s32.totalorder %s31, %s47
      %p49 = scmp.eq.s32.totalorder %s23, 0
      %p50 = por %p48, %p49
      %s52 = sadd.s32 %s51, 1
      %p55 = scmp.eq.s32.totalorder %s17, 1
      %p56 = scmp.ne.s32.totalorder %s51, %s53
      %p57 = scmp.eq.s32.totalorder %s17, 0
      %p58 = por %p56, %p57
      %p59 = scmp.ne.s32.totalorder %s51, %s53
      %p60 = scmp.eq.s32.totalorder %s22, 1
      %p61 = por %p59, %p60
      %p62 = scmp.ne.s32.totalorder %s53, %s54
      %p63 = scmp.eq.s32.totalorder %s22, 0
      %p64 = por %p62, %p63
      %p65 = scmp.ne.s32.totalorder %s53, %s54
      %p66 = scmp.eq.s32.totalorder %s23, 1
      %p67 = por %p65, %p66
      %p69 = scmp.ne.s32.totalorder %s54, %s68
      %p70 = scmp.eq.s32.totalorder %s23, 0
      %p71 = por %p69, %p70
      %s73 = sadd.s32 %s72, 1
      %p76 = scmp.eq.s32.totalorder %s17, 1
      %p77 = scmp.ne.s32.totalorder %s72, %s74
      %p78 = scmp.eq.s32.totalorder %s17, 0
      %p79 = por %p77, %p78
      %p80 = scmp.ne.s32.totalorder %s72, %s74
      %p81 = scmp.eq.s32.totalorder %s22, 1
      %p82 = por %p80, %p81
      %p83 = scmp.ne.s32.totalorder %s74, %s75
      %p84 = scmp.eq.s32.totalorder %s22, 0
      %p85 = por %p83, %p84
      %p86 = scmp.ne.s32.totalorder %s74, %s75
      %p87 = scmp.eq.s32.totalorder %s23, 1
      %p88 = por %p86, %p87
      %p90 = scmp.ne.s32.totalorder %s75, %s89
      %p91 = scmp.eq.s32.totalorder %s23, 0
      %p92 = por %p90, %p91
      %s94 = sadd.s32 %s93, 1
      %p97 = scmp.eq.s32.totalorder %s17, 1
      %p98 = scmp.ne.s32.totalorder %s93, %s95
      %p99 = scmp.eq.s32.totalorder %s17, 0
      %p100 = por %p98, %p99
      %p101 = scmp.ne.s32.totalorder %s93, %s95
      %p102 = scmp.eq.s32.totalorder %s22, 1
      %p103 = por %p101, %p102
      %p104 = scmp.ne.s32.totalorder %s95, %s96
      %p105 = scmp.eq.s32.totalorder %s22, 0
      %p106 = por %p104, %p105
      %p107 = scmp.ne.s32.totalorder %s95, %s96
      %p108 = scmp.eq.s32.totalorder %s23, 1
      %p109 = por %p107, %p108
      %p111 = scmp.ne.s32.totalorder %s96, %s110
      %p112 = scmp.eq.s32.totalorder %s23, 0
      %p113 = por %p111, %p112
      %s115 = sadd.s32 %s114, 1
      %p118 = scmp.eq.s32.totalorder %s17, 1
      %p119 = scmp.ne.s32.totalorder %s114, %s116
      %p120 = scmp.eq.s32.totalorder %s17, 0
      %p121 = por %p119, %p120
      %p122 = scmp.ne.s32.totalorder %s114, %s116
      %p123 = scmp.eq.s32.totalorder %s22, 1
      %p124 = por %p122, %p123
      %p125 = scmp.ne.s32.totalorder %s116, %s117
      %p126 = scmp.eq.s32.totalorder %s22, 0
      %p127 = por %p125, %p126
      %p128 = scmp.ne.s32.totalorder %s116, %s117
      %p129 = scmp.eq.s32.totalorder %s23, 1
      %p130 = por %p128, %p129
      %p132 = scmp.ne.s32.totalorder %s117, %s131
      %p133 = scmp.eq.s32.totalorder %s23, 0
      %p134 = por %p132, %p133
      %s136 = sadd.s32 %s135, 1
      %p139 = scmp.eq.s32.totalorder %s17, 1
      %p140 = scmp.ne.s32.totalorder %s135, %s137
      %p141 = scmp.eq.s32.totalorder %s17, 0
      %p142 = por %p140, %p141
      %p143 = scmp.ne.s32.totalorder %s135, %s137
      %p144 = scmp.eq.s32.totalorder %s22, 1
      %p145 = por %p143, %p144
      %p146 = scmp.ne.s32.totalorder %s137, %s138
      %p147 = scmp.eq.s32.totalorder %s22, 0
      %p148 = por %p146, %p147
      %p149 = scmp.ne.s32.totalorder %s137, %s138
      %p150 = scmp.eq.s32.totalorder %s23, 1
      %p151 = por %p149, %p150
      %p153 = scmp.ne.s32.totalorder %s138, %s152
      %p154 = scmp.eq.s32.totalorder %s23, 0
      %p155 = por %p153, %p154
      %s157 = sadd.s32 %s156, 1
      %p160 = scmp.eq.s32.totalorder %s17, 1
      %p161 = scmp.ne.s32.totalorder %s156, %s158
      %p162 = scmp.eq.s32.totalorder %s17, 0
      %p163 = por %p161, %p162
      %p164 = scmp.ne.s32.totalorder %s156, %s158
      %p165 = scmp.eq.s32.totalorder %s22, 1
      %p166 = por %p164, %p165
      %p167 = scmp.ne.s32.totalorder %s158, %s159
      %p168 = scmp.eq.s32.totalorder %s22, 0
      %p169 = por %p167, %p168
      %p170 = scmp.ne.s32.totalorder %s158, %s159
      %p171 = scmp.eq.s32.totalorder %s23, 1
      %p172 = por %p170, %p171
      %p174 = scmp.ne.s32.totalorder %s159, %s173
      %p175 = scmp.eq.s32.totalorder %s23, 0
      %p176 = por %p174, %p175
      %s178 = sadd.s32 %s177, 1
      %p181 = scmp.eq.s32.totalorder %s17, 1
      %p182 = scmp.ne.s32.totalorder %s177, %s179
      %p183 = scmp.eq.s32.totalorder %s17, 0
      %p184 = por %p182, %p183
      %p185 = scmp.ne.s32.totalorder %s177, %s179
      %p186 = scmp.eq.s32.totalorder %s22, 1
      %p187 = por %p185, %p186
      %p188 = scmp.ne.s32.totalorder %s179, %s180
      %p189 = scmp.eq.s32.totalorder %s22, 0
      %p190 = por %p188, %p189
      %p191 = scmp.ne.s32.totalorder %s179, %s180
      %p192 = scmp.eq.s32.totalorder %s23, 1
      %p193 = por %p191, %p192
      %p195 = scmp.ne.s32.totalorder %s180, %s194
      %p196 = scmp.eq.s32.totalorder %s23, 0
      %p197 = por %p195, %p196
      %s198 = ssub.s32 %s17, %s24
      %p199 = scmp.eq.s32.totalorder %s198, 0
      %s201 = sadd.s32 %s200, 1
      %s202 = scalar_select %p199, %s200, %s201
      %p205 = pneg %p199
      %p206 = scmp.eq.s32.totalorder %s17, 1
      %p207 = por %p205, %p206
      %p208 = scmp.ne.s32.totalorder %s200, %s203
      %p209 = scmp.eq.s32.totalorder %s17, 0
      %p210 = por %p208, %p209
      %p211 = scmp.ne.s32.totalorder %s200, %s203
      %p212 = scmp.eq.s32.totalorder %s22, 1
      %p213 = por %p211, %p212
      %p214 = scmp.ne.s32.totalorder %s203, %s204
      %p215 = scmp.eq.s32.totalorder %s22, 0
      %p216 = por %p214, %p215
      %p217 = scmp.ne.s32.totalorder %s203, %s204
      %p218 = scmp.eq.s32.totalorder %s23, 1
      %p219 = por %p217, %p218
      %p221 = scmp.ne.s32.totalorder %s204, %s220
      %p222 = scmp.eq.s32.totalorder %s23, 0
      %p223 = por %p221, %p222
      %p224 = scmp.le.s32.totalorder 1, %s17
      %p225 = scmp.lt.s32.totalorder %s17, 3
      %p226 = pnand %p224, %p225
      %p227 = pneg %p226
      // Predicated region
      $region9: #{tpu_custom_call.1} parent=5 // pred_check
        _
      $region10: #{tpu_custom_call.1} parent=5 // pred_check_branch
        %229 = sbr.rel (%p226) target = $region12
      $region11: #{tpu_custom_call.1} parent=5 // pred_region
        %s230 = ssub.s32 %s17, 1
        // Predicated region
        $region13: #{tpu_custom_call.1} parent=11 // pred_check
          %p231 = pneg %p64
        $region14: #{tpu_custom_call.1} parent=11 // pred_check_branch
          %233 = sbr.rel (%p231) target = $region16
        $region15: #{tpu_custom_call.1} parent=11 // pred_region
          _
        $region16: #{tpu_custom_call.1} parent=11 // pred_fallthru
          _
        // Predicated region
        $region17: #{tpu_custom_call.1} parent=11 // pred_check
          %p234 = pneg %p85
        $region18: #{tpu_custom_call.1} parent=11 // pred_check_branch
          %236 = sbr.rel (%p234) target = $region20
        $region19: #{tpu_custom_call.1} parent=11 // pred_region
          _
        $region20: #{tpu_custom_call.1} parent=11 // pred_fallthru
          _
        // Predicated region
        $region21: #{tpu_custom_call.1} parent=11 // pred_check
          %p237 = pneg %p106
        $region22: #{tpu_custom_call.1} parent=11 // pred_check_branch
          %239 = sbr.rel (%p237) target = $region24
        $region23: #{tpu_custom_call.1} parent=11 // pred_region
          _
        $region24: #{tpu_custom_call.1} parent=11 // pred_fallthru
          _
        // Predicated region
        $region25: #{tpu_custom_call.1} parent=11 // pred_check
          %p240 = pneg %p127
        $region26: #{tpu_custom_call.1} parent=11 // pred_check_branch
          %242 = sbr.rel (%p240) target = $region28
        $region27: #{tpu_custom_call.1} parent=11 // pred_region
          _
        $region28: #{tpu_custom_call.1} parent=11 // pred_fallthru
          _
        // Predicated region
        $region29: #{tpu_custom_call.1} parent=11 // pred_check
          %p243 = pneg %p148
        $region30: #{tpu_custom_call.1} parent=11 // pred_check_branch
          %245 = sbr.rel (%p243) target = $region32
        $region31: #{tpu_custom_call.1} parent=11 // pred_region
          _
        $region32: #{tpu_custom_call.1} parent=11 // pred_fallthru
          _
        // Predicated region
        $region33: #{tpu_custom_call.1} parent=11 // pred_check
          %p246 = pneg %p169
        $region34: #{tpu_custom_call.1} parent=11 // pred_check_branch
          %248 = sbr.rel (%p246) target = $region36
        $region35: #{tpu_custom_call.1} parent=11 // pred_region
          _
        $region36: #{tpu_custom_call.1} parent=11 // pred_fallthru
          _
        // Predicated region
        $region37: #{tpu_custom_call.1} parent=11 // pred_check
          %p249 = pneg %p190
        $region38: #{tpu_custom_call.1} parent=11 // pred_check_branch
          %251 = sbr.rel (%p249) target = $region40
        $region39: #{tpu_custom_call.1} parent=11 // pred_region
          _
        $region40: #{tpu_custom_call.1} parent=11 // pred_fallthru
          _
      $region12: #{tpu_custom_call.1} parent=5 // pred_fallthru
        _
      %p252 = scmp.lt.s32.totalorder %s17, 2
      // Predicated region
      $region41: #{tpu_custom_call.1} parent=5 // pred_check
        %p253 = pneg %p252
      $region42: #{tpu_custom_call.1} parent=5 // pred_check_branch
        %255 = sbr.rel (%p253) target = $region44
      $region43: #{tpu_custom_call.1} parent=5 // pred_region
        // Predicated region
        $region45: #{tpu_custom_call.1} parent=43 // pred_check
          %p256 = pneg %p37
        $region46: #{tpu_custom_call.1} parent=43 // pred_check_branch
          %258 = sbr.rel (%p256) target = $region48
        $region47: #{tpu_custom_call.1} parent=43 // pred_region
          %p259 = scmp.lt.s32.totalorder %s17, 1
          %s260 = scalar_select %p259, %s17, 1
          %s261 = smul.addr %s260, 8
          %s262 = smul.addr %s261, 8
          %s263 = scalar_lea.vmem %s0, %s262
        $region48: #{tpu_custom_call.1} parent=43 // pred_fallthru
          _
      $region44: #{tpu_custom_call.1} parent=5 // pred_fallthru
        _
      %p264 = scmp.le.s32.totalorder 1, %s17
      %p265 = scmp.lt.s32.totalorder %s17, 3
      %p266 = pnand %p264, %p265
      %p267 = pneg %p266
      // Predicated region
      $region49: #{tpu_custom_call.1} parent=5 // pred_check
        _
      $region50: #{tpu_custom_call.1} parent=5 // pred_check_branch
        %269 = sbr.rel (%p266) target = $region52
      $region51: #{tpu_custom_call.1} parent=5 // pred_region
        %s270 = ssub.s32 %s17, 1
        %p271 = scmp.lt.s32.totalorder %s22, 1
        %s272 = scalar_select %p271, %s22, 1
        %s273 = smul.addr %s272, 8
        %s274 = smul.addr %s273, 8
        %s275 = scalar_lea.vmem %s0, %s274
        %p276 = pneg %p43
        %p277 = pneg %p40
        %p278 = pneg %p64
        %p279 = pneg %p61
        %p280 = pneg %p85
        %p281 = pneg %p82
        %p282 = pneg %p106
        %p283 = pneg %p103
        %p284 = pneg %p127
        %p285 = pneg %p124
        %p286 = pneg %p148
        %p287 = pneg %p145
        %p288 = pneg %p169
        %p289 = pneg %p166
        %p290 = pneg %p190
        %p291 = pneg %p187
        %p292 = pneg %p216
        %p293 = pneg %p213
        %s294 = sand.u32 %s203, 1
        %s295 = scalar_lea.sflag [#allocation5], %s294
        %s296 = sand.u32 %s203, 1
        %s297 = smul.addr %s296, 8
        %s298 = scalar_lea.vmem [#allocation4], %s297
        %p299 = scmp.lt.s32.totalorder %s22, 1
        %s300 = scalar_select %p299, %s22, 1
        %s301 = smul.addr %s300, 8
        %s302 = smul.addr %s301, 8
        %s303 = scalar_lea.vmem %s0, %s302
        %v304 = vld [vmem:[%s303] sm:$0xff]
        %v305 = vld [vmem:[%s303 + $0x8] sm:$0xff]
        %v306 = vld [vmem:[%s303 + $0x10] sm:$0xff]
        %v307 = vld [vmem:[%s303 + $0x18] sm:$0xff]
        %v308 = vld [vmem:[%s303 + $0x20] sm:$0xff]
        %v309 = vld [vmem:[%s303 + $0x28] sm:$0xff]
        %v310 = vld [vmem:[%s303 + $0x30] sm:$0xff]
        %v311 = vld [vmem:[%s303 + $0x38] sm:$0xff]
        %v312 = vmax.f32 %v304, 0.0
        %v313 = vmax.f32 %v305, 0.0
        %v314 = vmax.f32 %v306, 0.0
        %v315 = vmax.f32 %v307, 0.0
        %v316 = vmax.f32 %v308, 0.0
        %v317 = vmax.f32 %v309, 0.0
        %v318 = vmax.f32 %v310, 0.0
        %v319 = vmax.f32 %v311, 0.0
        %vm320 = vcmask 146432
        %321 = vst.msk [vmem:[#allocation2] sm:$0xff] %vm320, 0.0
        %322 = vst.msk [vmem:[#allocation2 + $0x8] sm:$0xff] %vm320, 0.0
        %vm323 = vcmask 140288
        %324 = vst.msk [vmem:[#allocation2 + $0x10] sm:$0x3] %vm323, 0.0
        %325 = vst.msk [vmem:[#allocation2 + $0x18] sm:$0xff] %vm320, 0.0
        %326 = vst.msk [vmem:[#allocation2 + $0x20] sm:$0xff] %vm320, 0.0
        %327 = vst.msk [vmem:[#allocation2 + $0x28] sm:$0x3] %vm323, 0.0
        %328 = vst.msk [vmem:[#allocation2 + $0x30] sm:$0xff] %vm320, 0.0
        %329 = vst.msk [vmem:[#allocation2 + $0x38] sm:$0xff] %vm320, 0.0
        %330 = vst.msk [vmem:[#allocation2 + $0x40] sm:$0x3] %vm323, 0.0
        %331 = vst.msk [vmem:[#allocation2 + $0x48] sm:$0xff] %vm320, 0.0
        %332 = vst.msk [vmem:[#allocation2 + $0x50] sm:$0xff] %vm320, 0.0
        %333 = vst.msk [vmem:[#allocation2 + $0x58] sm:$0x3] %vm323, 0.0
        %342 = vrot.lane.b32.xlu0 %v312, 1
        %v343 = vpop.permute.xlu0 %342
        %344 = vrot.lane.b32.xlu0 %v313, 1
        %v345 = vpop.permute.xlu0 %344
        %346 = vrot.lane.b32.xlu0 %v314, 1
        %v347 = vpop.permute.xlu0 %346
        %348 = vrot.lane.b32.xlu0 %v315, 1
        %v349 = vpop.permute.xlu0 %348
        %350 = vrot.lane.b32.xlu0 %v316, 1
        %v351 = vpop.permute.xlu0 %350
        %352 = vrot.lane.b32.xlu0 %v317, 1
        %v353 = vpop.permute.xlu0 %352
        %354 = vrot.lane.b32.xlu0 %v318, 1
        %v355 = vpop.permute.xlu0 %354
        %356 = vrot.lane.b32.xlu0 %v319, 1
        %v357 = vpop.permute.xlu0 %356
        %vm366 = vcmask 138248
        %367 = vst.msk [vmem:[#allocation2 + $0x1] sm:$0xff] %vm366, %v343
        %368 = vst.msk [vmem:[#allocation2 + $0x9] sm:$0xff] %vm366, %v345
        %369 = vst.msk [vmem:[#allocation2 + $0x19] sm:$0xff] %vm366, %v347
        %370 = vst.msk [vmem:[#allocation2 + $0x21] sm:$0xff] %vm366, %v349
        %371 = vst.msk [vmem:[#allocation2 + $0x31] sm:$0xff] %vm366, %v351
        %372 = vst.msk [vmem:[#allocation2 + $0x39] sm:$0xff] %vm366, %v353
        %373 = vst.msk [vmem:[#allocation2 + $0x49] sm:$0xff] %vm366, %v355
        %374 = vst.msk [vmem:[#allocation2 + $0x51] sm:$0xff] %vm366, %v357
        %v375 = vld [vmem:[#allocation2] sm:$0xff]
        %v376 = vld [vmem:[#allocation2 + $0x8] sm:$0xff]
        %v377 = vld [vmem:[#allocation2 + $0x10] sm:$0x3]
        %v378 = vld [vmem:[#allocation2 + $0x18] sm:$0xff]
        %v379 = vld [vmem:[#allocation2 + $0x20] sm:$0xff]
        %v380 = vld [vmem:[#allocation2 + $0x28] sm:$0x3]
        %v381 = vld [vmem:[#allocation2 + $0x30] sm:$0xff]
        %v382 = vld [vmem:[#allocation2 + $0x38] sm:$0xff]
        %v383 = vld [vmem:[#allocation2 + $0x40] sm:$0x3]
        %v384 = vld [vmem:[#allocation2 + $0x48] sm:$0xff]
        %v385 = vld [vmem:[#allocation2 + $0x50] sm:$0xff]
        %v386 = vld [vmem:[#allocation2 + $0x58] sm:$0x3]
        %395 = vrot.lane.b32.xlu0 %v375, 127
        %v396 = vpop.permute.xlu0 %395
        %397 = vrot.lane.b32.xlu0 %v376, 127
        %v398 = vpop.permute.xlu0 %397
        %399 = vrot.lane.b32.xlu0 %v378, 127
        %v400 = vpop.permute.xlu0 %399
        %401 = vrot.lane.b32.xlu0 %v379, 127
        %v402 = vpop.permute.xlu0 %401
        %403 = vrot.lane.b32.xlu0 %v381, 127
        %v404 = vpop.permute.xlu0 %403
        %405 = vrot.lane.b32.xlu0 %v382, 127
        %v406 = vpop.permute.xlu0 %405
        %407 = vrot.lane.b32.xlu0 %v384, 127
        %v408 = vpop.permute.xlu0 %407
        %409 = vrot.lane.b32.xlu0 %v385, 127
        %v410 = vpop.permute.xlu0 %409
        %419 = vrot.lane.b32.xlu0 %v375, 126
        %v420 = vpop.permute.xlu0 %419
        %421 = vrot.lane.b32.xlu0 %v376, 126
        %v422 = vpop.permute.xlu0 %421
        %423 = vrot.lane.b32.xlu0 %v378, 126
        %v424 = vpop.permute.xlu0 %423
        %425 = vrot.lane.b32.xlu0 %v379, 126
        %v426 = vpop.permute.xlu0 %425
        %427 = vrot.lane.b32.xlu0 %v381, 126
        %v428 = vpop.permute.xlu0 %427
        %429 = vrot.lane.b32.xlu0 %v382, 126
        %v430 = vpop.permute.xlu0 %429
        %431 = vrot.lane.b32.xlu0 %v384, 126
        %v432 = vpop.permute.xlu0 %431
        %433 = vrot.lane.b32.xlu0 %v385, 126
        %v434 = vpop.permute.xlu0 %433
        %vm447 = vcmask 1046528
        %v448 = vrot.slane %v375, 1
        %v449 = vrot.slane %v376, 1
        %v450 = vsel %vm447, %v448, %v449
        %v451 = vrot.slane %v377, 1
        %v452 = vsel %vm447, %v449, %v451
        %v453 = vrot.slane %v378, 1
        %v454 = vrot.slane %v379, 1
        %v455 = vsel %vm447, %v453, %v454
        %v456 = vrot.slane %v380, 1
        %v457 = vsel %vm447, %v454, %v456
        %v458 = vrot.slane %v381, 1
        %v459 = vrot.slane %v382, 1
        %v460 = vsel %vm447, %v458, %v459
        %v461 = vrot.slane %v383, 1
        %v462 = vsel %vm447, %v459, %v461
        %v463 = vrot.slane %v384, 1
        %v464 = vrot.slane %v385, 1
        %v465 = vsel %vm447, %v463, %v464
        %v466 = vrot.slane %v386, 1
        %v467 = vsel %vm447, %v464, %v466
        %476 = vrot.lane.b32.xlu0 %v450, 127
        %v477 = vpop.permute.xlu0 %476
        %478 = vrot.lane.b32.xlu0 %v452, 127
        %v479 = vpop.permute.xlu0 %478
        %480 = vrot.lane.b32.xlu0 %v455, 127
        %v481 = vpop.permute.xlu0 %480
        %482 = vrot.lane.b32.xlu0 %v457, 127
        %v483 = vpop.permute.xlu0 %482
        %484 = vrot.lane.b32.xlu0 %v460, 127
        %v485 = vpop.permute.xlu0 %484
        %486 = vrot.lane.b32.xlu0 %v462, 127
        %v487 = vpop.permute.xlu0 %486
        %488 = vrot.lane.b32.xlu0 %v465, 127
        %v489 = vpop.permute.xlu0 %488
        %490 = vrot.lane.b32.xlu0 %v467, 127
        %v491 = vpop.permute.xlu0 %490
        %500 = vrot.lane.b32.xlu0 %v450, 126
        %v501 = vpop.permute.xlu0 %500
        %502 = vrot.lane.b32.xlu0 %v452, 126
        %v503 = vpop.permute.xlu0 %502
        %504 = vrot.lane.b32.xlu0 %v455, 126
        %v505 = vpop.permute.xlu0 %504
        %506 = vrot.lane.b32.xlu0 %v457, 126
        %v507 = vpop.permute.xlu0 %506
        %508 = vrot.lane.b32.xlu0 %v460, 126
        %v509 = vpop.permute.xlu0 %508
        %510 = vrot.lane.b32.xlu0 %v462, 126
        %v511 = vpop.permute.xlu0 %510
        %512 = vrot.lane.b32.xlu0 %v465, 126
        %v513 = vpop.permute.xlu0 %512
        %514 = vrot.lane.b32.xlu0 %v467, 126
        %v515 = vpop.permute.xlu0 %514
        %vm524 = vcmask 1045504
        %v525 = vrot.slane %v375, 2
        %v526 = vrot.slane %v376, 2
        %v527 = vsel %vm524, %v525, %v526
        %v528 = vrot.slane %v377, 2
        %v529 = vsel %vm524, %v526, %v528
        %v530 = vrot.slane %v378, 2
        %v531 = vrot.slane %v379, 2
        %v532 = vsel %vm524, %v530, %v531
        %v533 = vrot.slane %v380, 2
        %v534 = vsel %vm524, %v531, %v533
        %v535 = vrot.slane %v381, 2
        %v536 = vrot.slane %v382, 2
        %v537 = vsel %vm524, %v535, %v536
        %v538 = vrot.slane %v383, 2
        %v539 = vsel %vm524, %v536, %v538
        %v540 = vrot.slane %v384, 2
        %v541 = vrot.slane %v385, 2
        %v542 = vsel %vm524, %v540, %v541
        %v543 = vrot.slane %v386, 2
        %v544 = vsel %vm524, %v541, %v543
        %553 = vrot.lane.b32.xlu0 %v527, 127
        %v554 = vpop.permute.xlu0 %553
        %555 = vrot.lane.b32.xlu0 %v529, 127
        %v556 = vpop.permute.xlu0 %555
        %557 = vrot.lane.b32.xlu0 %v532, 127
        %v558 = vpop.permute.xlu0 %557
        %559 = vrot.lane.b32.xlu0 %v534, 127
        %v560 = vpop.permute.xlu0 %559
        %561 = vrot.lane.b32.xlu0 %v537, 127
        %v562 = vpop.permute.xlu0 %561
        %563 = vrot.lane.b32.xlu0 %v539, 127
        %v564 = vpop.permute.xlu0 %563
        %565 = vrot.lane.b32.xlu0 %v542, 127
        %v566 = vpop.permute.xlu0 %565
        %567 = vrot.lane.b32.xlu0 %v544, 127
        %v568 = vpop.permute.xlu0 %567
        %577 = vrot.lane.b32.xlu0 %v527, 126
        %v578 = vpop.permute.xlu0 %577
        %579 = vrot.lane.b32.xlu0 %v529, 126
        %v580 = vpop.permute.xlu0 %579
        %581 = vrot.lane.b32.xlu0 %v532, 126
        %v582 = vpop.permute.xlu0 %581
        %583 = vrot.lane.b32.xlu0 %v534, 126
        %v584 = vpop.permute.xlu0 %583
        %585 = vrot.lane.b32.xlu0 %v537, 126
        %v586 = vpop.permute.xlu0 %585
        %587 = vrot.lane.b32.xlu0 %v539, 126
        %v588 = vpop.permute.xlu0 %587
        %589 = vrot.lane.b32.xlu0 %v542, 126
        %v590 = vpop.permute.xlu0 %589
        %591 = vrot.lane.b32.xlu0 %v544, 126
        %v592 = vpop.permute.xlu0 %591
        %v601 = vrot.slane %v381, 4
        %vm602 = vcmask 1047556
        %v603 = vsel %vm602, %v601, %v375
        %v604 = vrot.slane %v375, 4
        %v605 = vsel %vm602, %v381, %v604
        %v607 = vunpack.c.l.s4 1983009808
        %v608 = vunpack.c.0.s8 %v607
        %v609 = vperm.slane %v603, %v608
        %v611 = vunpack.c.l.s4 1983009808
        %v612 = vunpack.c.0.s8 %v611
        %v613 = vperm.slane %v605, %v612
        %v614 = vrot.slane %v384, 4
        %v615 = vsel %vm602, %v614, %v378
        %v616 = vrot.slane %v378, 4
        %v617 = vsel %vm602, %v384, %v616
        %v619 = vunpack.c.l.s4 1983009808
        %v620 = vunpack.c.0.s8 %v619
        %v621 = vperm.slane %v615, %v620
        %v623 = vunpack.c.l.s4 1983009808
        %v624 = vunpack.c.0.s8 %v623
        %v625 = vperm.slane %v617, %v624
        %v626 = vrot.slane %v404, 4
        %v627 = vsel %vm602, %v626, %v396
        %v628 = vrot.slane %v396, 4
        %v629 = vsel %vm602, %v404, %v628
        %v631 = vunpack.c.l.s4 1983009808
        %v632 = vunpack.c.0.s8 %v631
        %v633 = vperm.slane %v627, %v632
        %v635 = vunpack.c.l.s4 1983009808
        %v636 = vunpack.c.0.s8 %v635
        %v637 = vperm.slane %v629, %v636
        %v638 = vrot.slane %v408, 4
        %v639 = vsel %vm602, %v638, %v400
        %v640 = vrot.slane %v400, 4
        %v641 = vsel %vm602, %v408, %v640
        %v643 = vunpack.c.l.s4 1983009808
        %v644 = vunpack.c.0.s8 %v643
        %v645 = vperm.slane %v639, %v644
        %v647 = vunpack.c.l.s4 1983009808
        %v648 = vunpack.c.0.s8 %v647
        %v649 = vperm.slane %v641, %v648
        %v650 = vrot.slane %v621, 4
        %v651 = vsel %vm602, %v650, %v609
        %v652 = vrot.slane %v609, 4
        %v653 = vsel %vm602, %v621, %v652
        %v655 = vunpack.c.l.s4 1934713408
        %v656 = vunpack.c.0.s8 %v655
        %v657 = vperm.slane %v651, %v656
        %v659 = vunpack.c.l.s4 1934713408
        %v660 = vunpack.c.0.s8 %v659
        %v661 = vperm.slane %v653, %v660
        %v662 = vrot.slane %v625, 4
        %v663 = vsel %vm602, %v662, %v613
        %v664 = vrot.slane %v613, 4
        %v665 = vsel %vm602, %v625, %v664
        %v667 = vunpack.c.l.s4 1934713408
        %v668 = vunpack.c.0.s8 %v667
        %v669 = vperm.slane %v663, %v668
        %v671 = vunpack.c.l.s4 1934713408
        %v672 = vunpack.c.0.s8 %v671
        %v673 = vperm.slane %v665, %v672
        %v674 = vrot.slane %v645, 4
        %v675 = vsel %vm602, %v674, %v633
        %v676 = vrot.slane %v633, 4
        %v677 = vsel %vm602, %v645, %v676
        %v679 = vunpack.c.l.s4 1934713408
        %v680 = vunpack.c.0.s8 %v679
        %v681 = vperm.slane %v675, %v680
        %v683 = vunpack.c.l.s4 1934713408
        %v684 = vunpack.c.0.s8 %v683
        %v685 = vperm.slane %v677, %v684
        %v686 = vrot.slane %v649, 4
        %v687 = vsel %vm602, %v686, %v637
        %v688 = vrot.slane %v637, 4
        %v689 = vsel %vm602, %v649, %v688
        %v691 = vunpack.c.l.s4 1934713408
        %v692 = vunpack.c.0.s8 %v691
        %v693 = vperm.slane %v687, %v692
        %v695 = vunpack.c.l.s4 1934713408
        %v696 = vunpack.c.0.s8 %v695
        %v697 = vperm.slane %v689, %v696
        %v698 = vrot.slane %v681, 4
        %v699 = vsel %vm602, %v698, %v657
        %v700 = vrot.slane %v657, 4
        %v701 = vsel %vm602, %v681, %v700
        %v702 = vrot.slane %v685, 4
        %v703 = vsel %vm602, %v702, %v661
        %v704 = vrot.slane %v661, 4
        %v705 = vsel %vm602, %v685, %v704
        %v706 = vrot.slane %v693, 4
        %v707 = vsel %vm602, %v706, %v669
        %v708 = vrot.slane %v669, 4
        %v709 = vsel %vm602, %v693, %v708
        %v710 = vrot.slane %v697, 4
        %v711 = vsel %vm602, %v710, %v673
        %v712 = vrot.slane %v673, 4
        %v713 = vsel %vm602, %v697, %v712
        %v714 = vrot.slane %v428, 4
        %v715 = vsel %vm602, %v714, %v420
        %v716 = vrot.slane %v420, 4
        %v717 = vsel %vm602, %v428, %v716
        %v719 = vunpack.c.l.s4 1983009808
        %v720 = vunpack.c.0.s8 %v719
        %v721 = vperm.slane %v715, %v720
        %v723 = vunpack.c.l.s4 1983009808
        %v724 = vunpack.c.0.s8 %v723
        %v725 = vperm.slane %v717, %v724
        %v726 = vrot.slane %v432, 4
        %v727 = vsel %vm602, %v726, %v424
        %v728 = vrot.slane %v424, 4
        %v729 = vsel %vm602, %v432, %v728
        %v731 = vunpack.c.l.s4 1983009808
        %v732 = vunpack.c.0.s8 %v731
        %v733 = vperm.slane %v727, %v732
        %v735 = vunpack.c.l.s4 1983009808
        %v736 = vunpack.c.0.s8 %v735
        %v737 = vperm.slane %v729, %v736
        %v738 = vrot.slane %v460, 4
        %v739 = vsel %vm602, %v738, %v450
        %v740 = vrot.slane %v450, 4
        %v741 = vsel %vm602, %v460, %v740
        %v743 = vunpack.c.l.s4 1983009808
        %v744 = vunpack.c.0.s8 %v743
        %v745 = vperm.slane %v739, %v744
        %v747 = vunpack.c.l.s4 1983009808
        %v748 = vunpack.c.0.s8 %v747
        %v749 = vperm.slane %v741, %v748
        %v750 = vrot.slane %v465, 4
        %v751 = vsel %vm602, %v750, %v455
        %v752 = vrot.slane %v455, 4
        %v753 = vsel %vm602, %v465, %v752
        %v755 = vunpack.c.l.s4 1983009808
        %v756 = vunpack.c.0.s8 %v755
        %v757 = vperm.slane %v751, %v756
        %v759 = vunpack.c.l.s4 1983009808
        %v760 = vunpack.c.0.s8 %v759
        %v761 = vperm.slane %v753, %v760
        %v762 = vrot.slane %v733, 4
        %v763 = vsel %vm602, %v762, %v721
        %v764 = vrot.slane %v721, 4
        %v765 = vsel %vm602, %v733, %v764
        %v767 = vunpack.c.l.s4 1934713408
        %v768 = vunpack.c.0.s8 %v767
        %v769 = vperm.slane %v763, %v768
        %v771 = vunpack.c.l.s4 1934713408
        %v772 = vunpack.c.0.s8 %v771
        %v773 = vperm.slane %v765, %v772
        %v774 = vrot.slane %v737, 4
        %v775 = vsel %vm602, %v774, %v725
        %v776 = vrot.slane %v725, 4
        %v777 = vsel %vm602, %v737, %v776
        %v779 = vunpack.c.l.s4 1934713408
        %v780 = vunpack.c.0.s8 %v779
        %v781 = vperm.slane %v775, %v780
        %v783 = vunpack.c.l.s4 1934713408
        %v784 = vunpack.c.0.s8 %v783
        %v785 = vperm.slane %v777, %v784
        %v786 = vrot.slane %v757, 4
        %v787 = vsel %vm602, %v786, %v745
        %v788 = vrot.slane %v745, 4
        %v789 = vsel %vm602, %v757, %v788
        %v791 = vunpack.c.l.s4 1934713408
        %v792 = vunpack.c.0.s8 %v791
        %v793 = vperm.slane %v787, %v792
        %v795 = vunpack.c.l.s4 1934713408
        %v796 = vunpack.c.0.s8 %v795
        %v797 = vperm.slane %v789, %v796
        %v798 = vrot.slane %v761, 4
        %v799 = vsel %vm602, %v798, %v749
        %v800 = vrot.slane %v749, 4
        %v801 = vsel %vm602, %v761, %v800
        %v803 = vunpack.c.l.s4 1934713408
        %v804 = vunpack.c.0.s8 %v803
        %v805 = vperm.slane %v799, %v804
        %v807 = vunpack.c.l.s4 1934713408
        %v808 = vunpack.c.0.s8 %v807
        %v809 = vperm.slane %v801, %v808
        %v810 = vrot.slane %v793, 4
        %v811 = vsel %vm602, %v810, %v769
        %v812 = vrot.slane %v769, 4
        %v813 = vsel %vm602, %v793, %v812
        %v814 = vrot.slane %v797, 4
        %v815 = vsel %vm602, %v814, %v773
        %v816 = vrot.slane %v773, 4
        %v817 = vsel %vm602, %v797, %v816
        %v818 = vrot.slane %v805, 4
        %v819 = vsel %vm602, %v818, %v781
        %v820 = vrot.slane %v781, 4
        %v821 = vsel %vm602, %v805, %v820
        %v822 = vrot.slane %v809, 4
        %v823 = vsel %vm602, %v822, %v785
        %v824 = vrot.slane %v785, 4
        %v825 = vsel %vm602, %v809, %v824
        %v826 = vrot.slane %v485, 4
        %v827 = vsel %vm602, %v826, %v477
        %v828 = vrot.slane %v477, 4
        %v829 = vsel %vm602, %v485, %v828
        %v831 = vunpack.c.l.s4 1983009808
        %v832 = vunpack.c.0.s8 %v831
        %v833 = vperm.slane %v827, %v832
        %v835 = vunpack.c.l.s4 1983009808
        %v836 = vunpack.c.0.s8 %v835
        %v837 = vperm.slane %v829, %v836
        %v838 = vrot.slane %v489, 4
        %v839 = vsel %vm602, %v838, %v481
        %v840 = vrot.slane %v481, 4
        %v841 = vsel %vm602, %v489, %v840
        %v843 = vunpack.c.l.s4 1983009808
        %v844 = vunpack.c.0.s8 %v843
        %v845 = vperm.slane %v839, %v844
        %v847 = vunpack.c.l.s4 1983009808
        %v848 = vunpack.c.0.s8 %v847
        %v849 = vperm.slane %v841, %v848
        %v850 = vrot.slane %v509, 4
        %v851 = vsel %vm602, %v850, %v501
        %v852 = vrot.slane %v501, 4
        %v853 = vsel %vm602, %v509, %v852
        %v855 = vunpack.c.l.s4 1983009808
        %v856 = vunpack.c.0.s8 %v855
        %v857 = vperm.slane %v851, %v856
        %v859 = vunpack.c.l.s4 1983009808
        %v860 = vunpack.c.0.s8 %v859
        %v861 = vperm.slane %v853, %v860
        %v862 = vrot.slane %v513, 4
        %v863 = vsel %vm602, %v862, %v505
        %v864 = vrot.slane %v505, 4
        %v865 = vsel %vm602, %v513, %v864
        %v867 = vunpack.c.l.s4 1983009808
        %v868 = vunpack.c.0.s8 %v867
        %v869 = vperm.slane %v863, %v868
        %v871 = vunpack.c.l.s4 1983009808
        %v872 = vunpack.c.0.s8 %v871
        %v873 = vperm.slane %v865, %v872
        %v874 = vrot.slane %v845, 4
        %v875 = vsel %vm602, %v874, %v833
        %v876 = vrot.slane %v833, 4
        %v877 = vsel %vm602, %v845, %v876
        %v879 = vunpack.c.l.s4 1934713408
        %v880 = vunpack.c.0.s8 %v879
        %v881 = vperm.slane %v875, %v880
        %v883 = vunpack.c.l.s4 1934713408
        %v884 = vunpack.c.0.s8 %v883
        %v885 = vperm.slane %v877, %v884
        %v886 = vrot.slane %v849, 4
        %v887 = vsel %vm602, %v886, %v837
        %v888 = vrot.slane %v837, 4
        %v889 = vsel %vm602, %v849, %v888
        %v891 = vunpack.c.l.s4 1934713408
        %v892 = vunpack.c.0.s8 %v891
        %v893 = vperm.slane %v887, %v892
        %v895 = vunpack.c.l.s4 1934713408
        %v896 = vunpack.c.0.s8 %v895
        %v897 = vperm.slane %v889, %v896
        %v898 = vrot.slane %v869, 4
        %v899 = vsel %vm602, %v898, %v857
        %v900 = vrot.slane %v857, 4
        %v901 = vsel %vm602, %v869, %v900
        %v903 = vunpack.c.l.s4 1934713408
        %v904 = vunpack.c.0.s8 %v903
        %v905 = vperm.slane %v899, %v904
        %v907 = vunpack.c.l.s4 1934713408
        %v908 = vunpack.c.0.s8 %v907
        %v909 = vperm.slane %v901, %v908
        %v910 = vrot.slane %v873, 4
        %v911 = vsel %vm602, %v910, %v861
        %v912 = vrot.slane %v861, 4
        %v913 = vsel %vm602, %v873, %v912
        %v915 = vunpack.c.l.s4 1934713408
        %v916 = vunpack.c.0.s8 %v915
        %v917 = vperm.slane %v911, %v916
        %v919 = vunpack.c.l.s4 1934713408
        %v920 = vunpack.c.0.s8 %v919
        %v921 = vperm.slane %v913, %v920
        %v922 = vrot.slane %v905, 4
        %v923 = vsel %vm602, %v922, %v881
        %v924 = vrot.slane %v881, 4
        %v925 = vsel %vm602, %v905, %v924
        %v926 = vrot.slane %v909, 4
        %v927 = vsel %vm602, %v926, %v885
        %v928 = vrot.slane %v885, 4
        %v929 = vsel %vm602, %v909, %v928
        %v930 = vrot.slane %v917, 4
        %v931 = vsel %vm602, %v930, %v893
        %v932 = vrot.slane %v893, 4
        %v933 = vsel %vm602, %v917, %v932
        %v934 = vrot.slane %v921, 4
        %v935 = vsel %vm602, %v934, %v897
        %v936 = vrot.slane %v897, 4
        %v937 = vsel %vm602, %v921, %v936
        %v938 = vrot.slane %v537, 4
        %v939 = vsel %vm602, %v938, %v527
        %v940 = vrot.slane %v527, 4
        %v941 = vsel %vm602, %v537, %v940
        %v943 = vunpack.c.l.s4 1983009808
        %v944 = vunpack.c.0.s8 %v943
        %v945 = vperm.slane %v939, %v944
        %v947 = vunpack.c.l.s4 1983009808
        %v948 = vunpack.c.0.s8 %v947
        %v949 = vperm.slane %v941, %v948
        %v950 = vrot.slane %v542, 4
        %v951 = vsel %vm602, %v950, %v532
        %v952 = vrot.slane %v532, 4
        %v953 = vsel %vm602, %v542, %v952
        %v955 = vunpack.c.l.s4 1983009808
        %v956 = vunpack.c.0.s8 %v955
        %v957 = vperm.slane %v951, %v956
        %v959 = vunpack.c.l.s4 1983009808
        %v960 = vunpack.c.0.s8 %v959
        %v961 = vperm.slane %v953, %v960
        %v962 = vrot.slane %v562, 4
        %v963 = vsel %vm602, %v962, %v554
        %v964 = vrot.slane %v554, 4
        %v965 = vsel %vm602, %v562, %v964
        %v967 = vunpack.c.l.s4 1983009808
        %v968 = vunpack.c.0.s8 %v967
        %v969 = vperm.slane %v963, %v968
        %v971 = vunpack.c.l.s4 1983009808
        %v972 = vunpack.c.0.s8 %v971
        %v973 = vperm.slane %v965, %v972
        %v974 = vrot.slane %v566, 4
        %v975 = vsel %vm602, %v974, %v558
        %v976 = vrot.slane %v558, 4
        %v977 = vsel %vm602, %v566, %v976
        %v979 = vunpack.c.l.s4 1983009808
        %v980 = vunpack.c.0.s8 %v979
        %v981 = vperm.slane %v975, %v980
        %v983 = vunpack.c.l.s4 1983009808
        %v984 = vunpack.c.0.s8 %v983
        %v985 = vperm.slane %v977, %v984
        %v986 = vrot.slane %v957, 4
        %v987 = vsel %vm602, %v986, %v945
        %v988 = vrot.slane %v945, 4
        %v989 = vsel %vm602, %v957, %v988
        %v991 = vunpack.c.l.s4 1934713408
        %v992 = vunpack.c.0.s8 %v991
        %v993 = vperm.slane %v987, %v992
        %v995 = vunpack.c.l.s4 1934713408
        %v996 = vunpack.c.0.s8 %v995
        %v997 = vperm.slane %v989, %v996
        %v998 = vrot.slane %v961, 4
        %v999 = vsel %vm602, %v998, %v949
        %v1000 = vrot.slane %v949, 4
        %v1001 = vsel %vm602, %v961, %v1000
        %v1003 = vunpack.c.l.s4 1934713408
        %v1004 = vunpack.c.0.s8 %v1003
        %v1005 = vperm.slane %v999, %v1004
        %v1007 = vunpack.c.l.s4 1934713408
        %v1008 = vunpack.c.0.s8 %v1007
        %v1009 = vperm.slane %v1001, %v1008
        %v1010 = vrot.slane %v981, 4
        %v1011 = vsel %vm602, %v1010, %v969
        %v1012 = vrot.slane %v969, 4
        %v1013 = vsel %vm602, %v981, %v1012
        %v1015 = vunpack.c.l.s4 1934713408
        %v1016 = vunpack.c.0.s8 %v1015
        %v1017 = vperm.slane %v1011, %v1016
        %v1019 = vunpack.c.l.s4 1934713408
        %v1020 = vunpack.c.0.s8 %v1019
        %v1021 = vperm.slane %v1013, %v1020
        %v1022 = vrot.slane %v985, 4
        %v1023 = vsel %vm602, %v1022, %v973
        %v1024 = vrot.slane %v973, 4
        %v1025 = vsel %vm602, %v985, %v1024
        %v1027 = vunpack.c.l.s4 1934713408
        %v1028 = vunpack.c.0.s8 %v1027
        %v1029 = vperm.slane %v1023, %v1028
        %v1031 = vunpack.c.l.s4 1934713408
        %v1032 = vunpack.c.0.s8 %v1031
        %v1033 = vperm.slane %v1025, %v1032
        %v1034 = vrot.slane %v1017, 4
        %v1035 = vsel %vm602, %v1034, %v993
        %v1036 = vrot.slane %v993, 4
        %v1037 = vsel %vm602, %v1017, %v1036
        %v1038 = vrot.slane %v1021, 4
        %v1039 = vsel %vm602, %v1038, %v997
        %v1040 = vrot.slane %v997, 4
        %v1041 = vsel %vm602, %v1021, %v1040
        %v1042 = vrot.slane %v1029, 4
        %v1043 = vsel %vm602, %v1042, %v1005
        %v1044 = vrot.slane %v1005, 4
        %v1045 = vsel %vm602, %v1029, %v1044
        %v1046 = vrot.slane %v1033, 4
        %v1047 = vsel %vm602, %v1046, %v1009
        %v1048 = vrot.slane %v1009, 4
        %v1049 = vsel %vm602, %v1033, %v1048
        %v1050 = vrot.slane %v586, 4
        %v1051 = vsel %vm602, %v1050, %v578
        %v1052 = vrot.slane %v578, 4
        %v1053 = vsel %vm602, %v586, %v1052
        %v1055 = vunpack.c.l.s4 1983009808
        %v1056 = vunpack.c.0.s8 %v1055
        %v1057 = vperm.slane %v1051, %v1056
        %v1059 = vunpack.c.l.s4 1983009808
        %v1060 = vunpack.c.0.s8 %v1059
        %v1061 = vperm.slane %v1053, %v1060
        %v1062 = vrot.slane %v590, 4
        %v1063 = vsel %vm602, %v1062, %v582
        %v1064 = vrot.slane %v582, 4
        %v1065 = vsel %vm602, %v590, %v1064
        %v1067 = vunpack.c.l.s4 1983009808
        %v1068 = vunpack.c.0.s8 %v1067
        %v1069 = vperm.slane %v1063, %v1068
        %v1071 = vunpack.c.l.s4 1983009808
        %v1072 = vunpack.c.0.s8 %v1071
        %v1073 = vperm.slane %v1065, %v1072
        %v1074 = vrot.slane %v1069, 4
        %v1075 = vsel %vm602, %v1074, %v1057
        %v1076 = vrot.slane %v1057, 4
        %v1077 = vsel %vm602, %v1069, %v1076
        %v1079 = vunpack.c.l.s4 1934713408
        %v1080 = vunpack.c.0.s8 %v1079
        %v1081 = vperm.slane %v1075, %v1080
        %v1083 = vunpack.c.l.s4 1934713408
        %v1084 = vunpack.c.0.s8 %v1083
        %v1085 = vperm.slane %v1077, %v1084
        %v1086 = vrot.slane %v1073, 4
        %v1087 = vsel %vm602, %v1086, %v1061
        %v1088 = vrot.slane %v1061, 4
        %v1089 = vsel %vm602, %v1073, %v1088
        %v1091 = vunpack.c.l.s4 1934713408
        %v1092 = vunpack.c.0.s8 %v1091
        %v1093 = vperm.slane %v1087, %v1092
        %v1095 = vunpack.c.l.s4 1934713408
        %v1096 = vunpack.c.0.s8 %v1095
        %v1097 = vperm.slane %v1089, %v1096
        %v1098 = vrot.slane %v1081, 4
        %v1099 = vsel %vm602, 0.0, %v1098
        %v1100 = vrot.slane %v1085, 4
        %v1101 = vsel %vm602, 0.0, %v1100
        %v1102 = vrot.slane %v1093, 4
        %v1103 = vsel %vm602, 0.0, %v1102
        %v1104 = vrot.slane %v1097, 4
        %v1105 = vsel %vm602, 0.0, %v1104
        %v1106 = vrot.slane %v382, 4
        %v1107 = vsel %vm602, %v1106, %v376
        %v1108 = vrot.slane %v376, 4
        %v1109 = vsel %vm602, %v382, %v1108
        %v1111 = vunpack.c.l.s4 1983009808
        %v1112 = vunpack.c.0.s8 %v1111
        %v1113 = vperm.slane %v1107, %v1112
        %v1115 = vunpack.c.l.s4 1983009808
        %v1116 = vunpack.c.0.s8 %v1115
        %v1117 = vperm.slane %v1109, %v1116
        %v1118 = vrot.slane %v385, 4
        %v1119 = vsel %vm602, %v1118, %v379
        %v1120 = vrot.slane %v379, 4
        %v1121 = vsel %vm602, %v385, %v1120
        %v1123 = vunpack.c.l.s4 1983009808
        %v1124 = vunpack.c.0.s8 %v1123
        %v1125 = vperm.slane %v1119, %v1124
        %v1127 = vunpack.c.l.s4 1983009808
        %v1128 = vunpack.c.0.s8 %v1127
        %v1129 = vperm.slane %v1121, %v1128
        %v1130 = vrot.slane %v406, 4
        %v1131 = vsel %vm602, %v1130, %v398
        %v1132 = vrot.slane %v398, 4
        %v1133 = vsel %vm602, %v406, %v1132
        %v1135 = vunpack.c.l.s4 1983009808
        %v1136 = vunpack.c.0.s8 %v1135
        %v1137 = vperm.slane %v1131, %v1136
        %v1139 = vunpack.c.l.s4 1983009808
        %v1140 = vunpack.c.0.s8 %v1139
        %v1141 = vperm.slane %v1133, %v1140
        %v1142 = vrot.slane %v410, 4
        %v1143 = vsel %vm602, %v1142, %v402
        %v1144 = vrot.slane %v402, 4
        %v1145 = vsel %vm602, %v410, %v1144
        %v1147 = vunpack.c.l.s4 1983009808
        %v1148 = vunpack.c.0.s8 %v1147
        %v1149 = vperm.slane %v1143, %v1148
        %v1151 = vunpack.c.l.s4 1983009808
        %v1152 = vunpack.c.0.s8 %v1151
        %v1153 = vperm.slane %v1145, %v1152
        %v1154 = vrot.slane %v1125, 4
        %v1155 = vsel %vm602, %v1154, %v1113
        %v1156 = vrot.slane %v1113, 4
        %v1157 = vsel %vm602, %v1125, %v1156
        %v1159 = vunpack.c.l.s4 1934713408
        %v1160 = vunpack.c.0.s8 %v1159
        %v1161 = vperm.slane %v1155, %v1160
        %v1163 = vunpack.c.l.s4 1934713408
        %v1164 = vunpack.c.0.s8 %v1163
        %v1165 = vperm.slane %v1157, %v1164
        %v1166 = vrot.slane %v1129, 4
        %v1167 = vsel %vm602, %v1166, %v1117
        %v1168 = vrot.slane %v1117, 4
        %v1169 = vsel %vm602, %v1129, %v1168
        %v1171 = vunpack.c.l.s4 1934713408
        %v1172 = vunpack.c.0.s8 %v1171
        %v1173 = vperm.slane %v1167, %v1172
        %v1175 = vunpack.c.l.s4 1934713408
        %v1176 = vunpack.c.0.s8 %v1175
        %v1177 = vperm.slane %v1169, %v1176
        %v1178 = vrot.slane %v1149, 4
        %v1179 = vsel %vm602, %v1178, %v1137
        %v1180 = vrot.slane %v1137, 4
        %v1181 = vsel %vm602, %v1149, %v1180
        %v1183 = vunpack.c.l.s4 1934713408
        %v1184 = vunpack.c.0.s8 %v1183
        %v1185 = vperm.slane %v1179, %v1184
        %v1187 = vunpack.c.l.s4 1934713408
        %v1188 = vunpack.c.0.s8 %v1187
        %v1189 = vperm.slane %v1181, %v1188
        %v1190 = vrot.slane %v1153, 4
        %v1191 = vsel %vm602, %v1190, %v1141
        %v1192 = vrot.slane %v1141, 4
        %v1193 = vsel %vm602, %v1153, %v1192
        %v1195 = vunpack.c.l.s4 1934713408
        %v1196 = vunpack.c.0.s8 %v1195
        %v1197 = vperm.slane %v1191, %v1196
        %v1199 = vunpack.c.l.s4 1934713408
        %v1200 = vunpack.c.0.s8 %v1199
        %v1201 = vperm.slane %v1193, %v1200
        %v1202 = vrot.slane %v1185, 4
        %v1203 = vsel %vm602, %v1202, %v1161
        %v1204 = vrot.slane %v1161, 4
        %v1205 = vsel %vm602, %v1185, %v1204
        %v1206 = vrot.slane %v1189, 4
        %v1207 = vsel %vm602, %v1206, %v1165
        %v1208 = vrot.slane %v1165, 4
        %v1209 = vsel %vm602, %v1189, %v1208
        %v1210 = vrot.slane %v1197, 4
        %v1211 = vsel %vm602, %v1210, %v1173
        %v1212 = vrot.slane %v1173, 4
        %v1213 = vsel %vm602, %v1197, %v1212
        %v1214 = vrot.slane %v1201, 4
        %v1215 = vsel %vm602, %v1214, %v1177
        %v1216 = vrot.slane %v1177, 4
        %v1217 = vsel %vm602, %v1201, %v1216
        %v1218 = vrot.slane %v430, 4
        %v1219 = vsel %vm602, %v1218, %v422
        %v1220 = vrot.slane %v422, 4
        %v1221 = vsel %vm602, %v430, %v1220
        %v1223 = vunpack.c.l.s4 1983009808
        %v1224 = vunpack.c.0.s8 %v1223
        %v1225 = vperm.slane %v1219, %v1224
        %v1227 = vunpack.c.l.s4 1983009808
        %v1228 = vunpack.c.0.s8 %v1227
        %v1229 = vperm.slane %v1221, %v1228
        %v1230 = vrot.slane %v434, 4
        %v1231 = vsel %vm602, %v1230, %v426
        %v1232 = vrot.slane %v426, 4
        %v1233 = vsel %vm602, %v434, %v1232
        %v1235 = vunpack.c.l.s4 1983009808
        %v1236 = vunpack.c.0.s8 %v1235
        %v1237 = vperm.slane %v1231, %v1236
        %v1239 = vunpack.c.l.s4 1983009808
        %v1240 = vunpack.c.0.s8 %v1239
        %v1241 = vperm.slane %v1233, %v1240
        %v1242 = vrot.slane %v462, 4
        %v1243 = vsel %vm602, %v1242, %v452
        %v1244 = vrot.slane %v452, 4
        %v1245 = vsel %vm602, %v462, %v1244
        %v1247 = vunpack.c.l.s4 1983009808
        %v1248 = vunpack.c.0.s8 %v1247
        %v1249 = vperm.slane %v1243, %v1248
        %v1251 = vunpack.c.l.s4 1983009808
        %v1252 = vunpack.c.0.s8 %v1251
        %v1253 = vperm.slane %v1245, %v1252
        %v1254 = vrot.slane %v467, 4
        %v1255 = vsel %vm602, %v1254, %v457
        %v1256 = vrot.slane %v457, 4
        %v1257 = vsel %vm602, %v467, %v1256
        %v1259 = vunpack.c.l.s4 1983009808
        %v1260 = vunpack.c.0.s8 %v1259
        %v1261 = vperm.slane %v1255, %v1260
        %v1263 = vunpack.c.l.s4 1983009808
        %v1264 = vunpack.c.0.s8 %v1263
        %v1265 = vperm.slane %v1257, %v1264
        %v1266 = vrot.slane %v1237, 4
        %v1267 = vsel %vm602, %v1266, %v1225
        %v1268 = vrot.slane %v1225, 4
        %v1269 = vsel %vm602, %v1237, %v1268
        %v1271 = vunpack.c.l.s4 1934713408
        %v1272 = vunpack.c.0.s8 %v1271
        %v1273 = vperm.slane %v1267, %v1272
        %v1275 = vunpack.c.l.s4 1934713408
        %v1276 = vunpack.c.0.s8 %v1275
        %v1277 = vperm.slane %v1269, %v1276
        %v1278 = vrot.slane %v1241, 4
        %v1279 = vsel %vm602, %v1278, %v1229
        %v1280 = vrot.slane %v1229, 4
        %v1281 = vsel %vm602, %v1241, %v1280
        %v1283 = vunpack.c.l.s4 1934713408
        %v1284 = vunpack.c.0.s8 %v1283
        %v1285 = vperm.slane %v1279, %v1284
        %v1287 = vunpack.c.l.s4 1934713408
        %v1288 = vunpack.c.0.s8 %v1287
        %v1289 = vperm.slane %v1281, %v1288
        %v1290 = vrot.slane %v1261, 4
        %v1291 = vsel %vm602, %v1290, %v1249
        %v1292 = vrot.slane %v1249, 4
        %v1293 = vsel %vm602, %v1261, %v1292
        %v1295 = vunpack.c.l.s4 1934713408
        %v1296 = vunpack.c.0.s8 %v1295
        %v1297 = vperm.slane %v1291, %v1296
        %v1299 = vunpack.c.l.s4 1934713408
        %v1300 = vunpack.c.0.s8 %v1299
        %v1301 = vperm.slane %v1293, %v1300
        %v1302 = vrot.slane %v1265, 4
        %v1303 = vsel %vm602, %v1302, %v1253
        %v1304 = vrot.slane %v1253, 4
        %v1305 = vsel %vm602, %v1265, %v1304
        %v1307 = vunpack.c.l.s4 1934713408
        %v1308 = vunpack.c.0.s8 %v1307
        %v1309 = vperm.slane %v1303, %v1308
        %v1311 = vunpack.c.l.s4 1934713408
        %v1312 = vunpack.c.0.s8 %v1311
        %v1313 = vperm.slane %v1305, %v1312
        %v1314 = vrot.slane %v1297, 4
        %v1315 = vsel %vm602, %v1314, %v1273
        %v1316 = vrot.slane %v1273, 4
        %v1317 = vsel %vm602, %v1297, %v1316
        %v1318 = vrot.slane %v1301, 4
        %v1319 = vsel %vm602, %v1318, %v1277
        %v1320 = vrot.slane %v1277, 4
        %v1321 = vsel %vm602, %v1301, %v1320
        %v1322 = vrot.slane %v1309, 4
        %v1323 = vsel %vm602, %v1322, %v1285
        %v1324 = vrot.slane %v1285, 4
        %v1325 = vsel %vm602, %v1309, %v1324
        %v1326 = vrot.slane %v1313, 4
        %v1327 = vsel %vm602, %v1326, %v1289
        %v1328 = vrot.slane %v1289, 4
        %v1329 = vsel %vm602, %v1313, %v1328
        %v1330 = vrot.slane %v487, 4
        %v1331 = vsel %vm602, %v1330, %v479
        %v1332 = vrot.slane %v479, 4
        %v1333 = vsel %vm602, %v487, %v1332
        %v1335 = vunpack.c.l.s4 1983009808
        %v1336 = vunpack.c.0.s8 %v1335
        %v1337 = vperm.slane %v1331, %v1336
        %v1339 = vunpack.c.l.s4 1983009808
        %v1340 = vunpack.c.0.s8 %v1339
        %v1341 = vperm.slane %v1333, %v1340
        %v1342 = vrot.slane %v491, 4
        %v1343 = vsel %vm602, %v1342, %v483
        %v1344 = vrot.slane %v483, 4
        %v1345 = vsel %vm602, %v491, %v1344
        %v1347 = vunpack.c.l.s4 1983009808
        %v1348 = vunpack.c.0.s8 %v1347
        %v1349 = vperm.slane %v1343, %v1348
        %v1351 = vunpack.c.l.s4 1983009808
        %v1352 = vunpack.c.0.s8 %v1351
        %v1353 = vperm.slane %v1345, %v1352
        %v1354 = vrot.slane %v511, 4
        %v1355 = vsel %vm602, %v1354, %v503
        %v1356 = vrot.slane %v503, 4
        %v1357 = vsel %vm602, %v511, %v1356
        %v1359 = vunpack.c.l.s4 1983009808
        %v1360 = vunpack.c.0.s8 %v1359
        %v1361 = vperm.slane %v1355, %v1360
        %v1363 = vunpack.c.l.s4 1983009808
        %v1364 = vunpack.c.0.s8 %v1363
        %v1365 = vperm.slane %v1357, %v1364
        %v1366 = vrot.slane %v515, 4
        %v1367 = vsel %vm602, %v1366, %v507
        %v1368 = vrot.slane %v507, 4
        %v1369 = vsel %vm602, %v515, %v1368
        %v1371 = vunpack.c.l.s4 1983009808
        %v1372 = vunpack.c.0.s8 %v1371
        %v1373 = vperm.slane %v1367, %v1372
        %v1375 = vunpack.c.l.s4 1983009808
        %v1376 = vunpack.c.0.s8 %v1375
        %v1377 = vperm.slane %v1369, %v1376
        %v1378 = vrot.slane %v1349, 4
        %v1379 = vsel %vm602, %v1378, %v1337
        %v1380 = vrot.slane %v1337, 4
        %v1381 = vsel %vm602, %v1349, %v1380
        %v1383 = vunpack.c.l.s4 1934713408
        %v1384 = vunpack.c.0.s8 %v1383
        %v1385 = vperm.slane %v1379, %v1384
        %v1387 = vunpack.c.l.s4 1934713408
        %v1388 = vunpack.c.0.s8 %v1387
        %v1389 = vperm.slane %v1381, %v1388
        %v1390 = vrot.slane %v1353, 4
        %v1391 = vsel %vm602, %v1390, %v1341
        %v1392 = vrot.slane %v1341, 4
        %v1393 = vsel %vm602, %v1353, %v1392
        %v1395 = vunpack.c.l.s4 1934713408
        %v1396 = vunpack.c.0.s8 %v1395
        %v1397 = vperm.slane %v1391, %v1396
        %v1399 = vunpack.c.l.s4 1934713408
        %v1400 = vunpack.c.0.s8 %v1399
        %v1401 = vperm.slane %v1393, %v1400
        %v1402 = vrot.slane %v1373, 4
        %v1403 = vsel %vm602, %v1402, %v1361
        %v1404 = vrot.slane %v1361, 4
        %v1405 = vsel %vm602, %v1373, %v1404
        %v1407 = vunpack.c.l.s4 1934713408
        %v1408 = vunpack.c.0.s8 %v1407
        %v1409 = vperm.slane %v1403, %v1408
        %v1411 = vunpack.c.l.s4 1934713408
        %v1412 = vunpack.c.0.s8 %v1411
        %v1413 = vperm.slane %v1405, %v1412
        %v1414 = vrot.slane %v1377, 4
        %v1415 = vsel %vm602, %v1414, %v1365
        %v1416 = vrot.slane %v1365, 4
        %v1417 = vsel %vm602, %v1377, %v1416
        %v1419 = vunpack.c.l.s4 1934713408
        %v1420 = vunpack.c.0.s8 %v1419
        %v1421 = vperm.slane %v1415, %v1420
        %v1423 = vunpack.c.l.s4 1934713408
        %v1424 = vunpack.c.0.s8 %v1423
        %v1425 = vperm.slane %v1417, %v1424
        %v1426 = vrot.slane %v1409, 4
        %v1427 = vsel %vm602, %v1426, %v1385
        %v1428 = vrot.slane %v1385, 4
        %v1429 = vsel %vm602, %v1409, %v1428
        %v1430 = vrot.slane %v1413, 4
        %v1431 = vsel %vm602, %v1430, %v1389
        %v1432 = vrot.slane %v1389, 4
        %v1433 = vsel %vm602, %v1413, %v1432
        %v1434 = vrot.slane %v1421, 4
        %v1435 = vsel %vm602, %v1434, %v1397
        %v1436 = vrot.slane %v1397, 4
        %v1437 = vsel %vm602, %v1421, %v1436
        %v1438 = vrot.slane %v1425, 4
        %v1439 = vsel %vm602, %v1438, %v1401
        %v1440 = vrot.slane %v1401, 4
        %v1441 = vsel %vm602, %v1425, %v1440
        %v1442 = vrot.slane %v539, 4
        %v1443 = vsel %vm602, %v1442, %v529
        %v1444 = vrot.slane %v529, 4
        %v1445 = vsel %vm602, %v539, %v1444
        %v1447 = vunpack.c.l.s4 1983009808
        %v1448 = vunpack.c.0.s8 %v1447
        %v1449 = vperm.slane %v1443, %v1448
        %v1451 = vunpack.c.l.s4 1983009808
        %v1452 = vunpack.c.0.s8 %v1451
        %v1453 = vperm.slane %v1445, %v1452
        %v1454 = vrot.slane %v544, 4
        %v1455 = vsel %vm602, %v1454, %v534
        %v1456 = vrot.slane %v534, 4
        %v1457 = vsel %vm602, %v544, %v1456
        %v1459 = vunpack.c.l.s4 1983009808
        %v1460 = vunpack.c.0.s8 %v1459
        %v1461 = vperm.slane %v1455, %v1460
        %v1463 = vunpack.c.l.s4 1983009808
        %v1464 = vunpack.c.0.s8 %v1463
        %v1465 = vperm.slane %v1457, %v1464
        %v1466 = vrot.slane %v564, 4
        %v1467 = vsel %vm602, %v1466, %v556
        %v1468 = vrot.slane %v556, 4
        %v1469 = vsel %vm602, %v564, %v1468
        %v1471 = vunpack.c.l.s4 1983009808
        %v1472 = vunpack.c.0.s8 %v1471
        %v1473 = vperm.slane %v1467, %v1472
        %v1475 = vunpack.c.l.s4 1983009808
        %v1476 = vunpack.c.0.s8 %v1475
        %v1477 = vperm.slane %v1469, %v1476
        %v1478 = vrot.slane %v568, 4
        %v1479 = vsel %vm602, %v1478, %v560
        %v1480 = vrot.slane %v560, 4
        %v1481 = vsel %vm602, %v568, %v1480
        %v1483 = vunpack.c.l.s4 1983009808
        %v1484 = vunpack.c.0.s8 %v1483
        %v1485 = vperm.slane %v1479, %v1484
        %v1487 = vunpack.c.l.s4 1983009808
        %v1488 = vunpack.c.0.s8 %v1487
        %v1489 = vperm.slane %v1481, %v1488
        %v1490 = vrot.slane %v1461, 4
        %v1491 = vsel %vm602, %v1490, %v1449
        %v1492 = vrot.slane %v1449, 4
        %v1493 = vsel %vm602, %v1461, %v1492
        %v1495 = vunpack.c.l.s4 1934713408
        %v1496 = vunpack.c.0.s8 %v1495
        %v1497 = vperm.slane %v1491, %v1496
        %v1499 = vunpack.c.l.s4 1934713408
        %v1500 = vunpack.c.0.s8 %v1499
        %v1501 = vperm.slane %v1493, %v1500
        %v1502 = vrot.slane %v1465, 4
        %v1503 = vsel %vm602, %v1502, %v1453
        %v1504 = vrot.slane %v1453, 4
        %v1505 = vsel %vm602, %v1465, %v1504
        %v1507 = vunpack.c.l.s4 1934713408
        %v1508 = vunpack.c.0.s8 %v1507
        %v1509 = vperm.slane %v1503, %v1508
        %v1511 = vunpack.c.l.s4 1934713408
        %v1512 = vunpack.c.0.s8 %v1511
        %v1513 = vperm.slane %v1505, %v1512
        %v1514 = vrot.slane %v1485, 4
        %v1515 = vsel %vm602, %v1514, %v1473
        %v1516 = vrot.slane %v1473, 4
        %v1517 = vsel %vm602, %v1485, %v1516
        %v1519 = vunpack.c.l.s4 1934713408
        %v1520 = vunpack.c.0.s8 %v1519
        %v1521 = vperm.slane %v1515, %v1520
        %v1523 = vunpack.c.l.s4 1934713408
        %v1524 = vunpack.c.0.s8 %v1523
        %v1525 = vperm.slane %v1517, %v1524
        %v1526 = vrot.slane %v1489, 4
        %v1527 = vsel %vm602, %v1526, %v1477
        %v1528 = vrot.slane %v1477, 4
        %v1529 = vsel %vm602, %v1489, %v1528
        %v1531 = vunpack.c.l.s4 1934713408
        %v1532 = vunpack.c.0.s8 %v1531
        %v1533 = vperm.slane %v1527, %v1532
        %v1535 = vunpack.c.l.s4 1934713408
        %v1536 = vunpack.c.0.s8 %v1535
        %v1537 = vperm.slane %v1529, %v1536
        %v1538 = vrot.slane %v1521, 4
        %v1539 = vsel %vm602, %v1538, %v1497
        %v1540 = vrot.slane %v1497, 4
        %v1541 = vsel %vm602, %v1521, %v1540
        %v1542 = vrot.slane %v1525, 4
        %v1543 = vsel %vm602, %v1542, %v1501
        %v1544 = vrot.slane %v1501, 4
        %v1545 = vsel %vm602, %v1525, %v1544
        %v1546 = vrot.slane %v1533, 4
        %v1547 = vsel %vm602, %v1546, %v1509
        %v1548 = vrot.slane %v1509, 4
        %v1549 = vsel %vm602, %v1533, %v1548
        %v1550 = vrot.slane %v1537, 4
        %v1551 = vsel %vm602, %v1550, %v1513
        %v1552 = vrot.slane %v1513, 4
        %v1553 = vsel %vm602, %v1537, %v1552
        %v1554 = vrot.slane %v588, 4
        %v1555 = vsel %vm602, %v1554, %v580
        %v1556 = vrot.slane %v580, 4
        %v1557 = vsel %vm602, %v588, %v1556
        %v1559 = vunpack.c.l.s4 1983009808
        %v1560 = vunpack.c.0.s8 %v1559
        %v1561 = vperm.slane %v1555, %v1560
        %v1563 = vunpack.c.l.s4 1983009808
        %v1564 = vunpack.c.0.s8 %v1563
        %v1565 = vperm.slane %v1557, %v1564
        %v1566 = vrot.slane %v592, 4
        %v1567 = vsel %vm602, %v1566, %v584
        %v1568 = vrot.slane %v584, 4
        %v1569 = vsel %vm602, %v592, %v1568
        %v1571 = vunpack.c.l.s4 1983009808
        %v1572 = vunpack.c.0.s8 %v1571
        %v1573 = vperm.slane %v1567, %v1572
        %v1575 = vunpack.c.l.s4 1983009808
        %v1576 = vunpack.c.0.s8 %v1575
        %v1577 = vperm.slane %v1569, %v1576
        %v1578 = vrot.slane %v1573, 4
        %v1579 = vsel %vm602, %v1578, %v1561
        %v1580 = vrot.slane %v1561, 4
        %v1581 = vsel %vm602, %v1573, %v1580
        %v1583 = vunpack.c.l.s4 1934713408
        %v1584 = vunpack.c.0.s8 %v1583
        %v1585 = vperm.slane %v1579, %v1584
        %v1587 = vunpack.c.l.s4 1934713408
        %v1588 = vunpack.c.0.s8 %v1587
        %v1589 = vperm.slane %v1581, %v1588
        %v1590 = vrot.slane %v1577, 4
        %v1591 = vsel %vm602, %v1590, %v1565
        %v1592 = vrot.slane %v1565, 4
        %v1593 = vsel %vm602, %v1577, %v1592
        %v1595 = vunpack.c.l.s4 1934713408
        %v1596 = vunpack.c.0.s8 %v1595
        %v1597 = vperm.slane %v1591, %v1596
        %v1599 = vunpack.c.l.s4 1934713408
        %v1600 = vunpack.c.0.s8 %v1599
        %v1601 = vperm.slane %v1593, %v1600
        %v1602 = vrot.slane %v1585, 4
        %v1603 = vsel %vm602, 0.0, %v1602
        %v1604 = vrot.slane %v1589, 4
        %v1605 = vsel %vm602, 0.0, %v1604
        %v1606 = vrot.slane %v1597, 4
        %v1607 = vsel %vm602, 0.0, %v1606
        %v1608 = vrot.slane %v1601, 4
        %v1609 = vsel %vm602, 0.0, %v1608
        %1615 = vrot.lane.b32.xlu0 %v701, 16
        %v1616 = vpop.permute.xlu0 %1615
        %1617 = vrot.lane.b32.xlu0 %v813, 16
        %v1618 = vpop.permute.xlu0 %1617
        %1619 = vrot.lane.b32.xlu0 %v925, 16
        %v1620 = vpop.permute.xlu0 %1619
        %1621 = vrot.lane.b32.xlu0 %v1037, 16
        %v1622 = vpop.permute.xlu0 %1621
        %1623 = vrot.lane.b32.xlu0 %v1099, 16
        %v1624 = vpop.permute.xlu0 %1623
        %1635 = vrot.lane.b32.xlu0 %v703, 32
        %v1636 = vpop.permute.xlu0 %1635
        %1637 = vrot.lane.b32.xlu0 %v815, 32
        %v1638 = vpop.permute.xlu0 %1637
        %1639 = vrot.lane.b32.xlu0 %v927, 32
        %v1640 = vpop.permute.xlu0 %1639
        %1641 = vrot.lane.b32.xlu0 %v1039, 32
        %v1642 = vpop.permute.xlu0 %1641
        %1643 = vrot.lane.b32.xlu0 %v1085, 32
        %v1644 = vpop.permute.xlu0 %1643
        %1655 = vrot.lane.b32.xlu0 %v705, 48
        %v1656 = vpop.permute.xlu0 %1655
        %1657 = vrot.lane.b32.xlu0 %v817, 48
        %v1658 = vpop.permute.xlu0 %1657
        %1659 = vrot.lane.b32.xlu0 %v929, 48
        %v1660 = vpop.permute.xlu0 %1659
        %1661 = vrot.lane.b32.xlu0 %v1041, 48
        %v1662 = vpop.permute.xlu0 %1661
        %1663 = vrot.lane.b32.xlu0 %v1101, 48
        %v1664 = vpop.permute.xlu0 %1663
        %1675 = vrot.lane.b32.xlu0 %v707, 64
        %v1676 = vpop.permute.xlu0 %1675
        %1677 = vrot.lane.b32.xlu0 %v819, 64
        %v1678 = vpop.permute.xlu0 %1677
        %1679 = vrot.lane.b32.xlu0 %v931, 64
        %v1680 = vpop.permute.xlu0 %1679
        %1681 = vrot.lane.b32.xlu0 %v1043, 64
        %v1682 = vpop.permute.xlu0 %1681
        %1683 = vrot.lane.b32.xlu0 %v1093, 64
        %v1684 = vpop.permute.xlu0 %1683
        %1695 = vrot.lane.b32.xlu0 %v709, 80
        %v1696 = vpop.permute.xlu0 %1695
        %1697 = vrot.lane.b32.xlu0 %v821, 80
        %v1698 = vpop.permute.xlu0 %1697
        %1699 = vrot.lane.b32.xlu0 %v933, 80
        %v1700 = vpop.permute.xlu0 %1699
        %1701 = vrot.lane.b32.xlu0 %v1045, 80
        %v1702 = vpop.permute.xlu0 %1701
        %1703 = vrot.lane.b32.xlu0 %v1103, 80
        %v1704 = vpop.permute.xlu0 %1703
        %1715 = vrot.lane.b32.xlu0 %v711, 96
        %v1716 = vpop.permute.xlu0 %1715
        %1717 = vrot.lane.b32.xlu0 %v823, 96
        %v1718 = vpop.permute.xlu0 %1717
        %1719 = vrot.lane.b32.xlu0 %v935, 96
        %v1720 = vpop.permute.xlu0 %1719
        %1721 = vrot.lane.b32.xlu0 %v1047, 96
        %v1722 = vpop.permute.xlu0 %1721
        %1723 = vrot.lane.b32.xlu0 %v1097, 96
        %v1724 = vpop.permute.xlu0 %1723
        %1735 = vrot.lane.b32.xlu0 %v713, 112
        %v1736 = vpop.permute.xlu0 %1735
        %1737 = vrot.lane.b32.xlu0 %v825, 112
        %v1738 = vpop.permute.xlu0 %1737
        %1739 = vrot.lane.b32.xlu0 %v937, 112
        %v1740 = vpop.permute.xlu0 %1739
        %1741 = vrot.lane.b32.xlu0 %v1049, 112
        %v1742 = vpop.permute.xlu0 %1741
        %1743 = vrot.lane.b32.xlu0 %v1105, 112
        %v1744 = vpop.permute.xlu0 %1743
        %1755 = vrot.lane.b32.xlu0 %v1205, 16
        %v1756 = vpop.permute.xlu0 %1755
        %1757 = vrot.lane.b32.xlu0 %v1317, 16
        %v1758 = vpop.permute.xlu0 %1757
        %1759 = vrot.lane.b32.xlu0 %v1429, 16
        %v1760 = vpop.permute.xlu0 %1759
        %1761 = vrot.lane.b32.xlu0 %v1541, 16
        %v1762 = vpop.permute.xlu0 %1761
        %1763 = vrot.lane.b32.xlu0 %v1603, 16
        %v1764 = vpop.permute.xlu0 %1763
        %1775 = vrot.lane.b32.xlu0 %v1207, 32
        %v1776 = vpop.permute.xlu0 %1775
        %1777 = vrot.lane.b32.xlu0 %v1319, 32
        %v1778 = vpop.permute.xlu0 %1777
        %1779 = vrot.lane.b32.xlu0 %v1431, 32
        %v1780 = vpop.permute.xlu0 %1779
        %1781 = vrot.lane.b32.xlu0 %v1543, 32
        %v1782 = vpop.permute.xlu0 %1781
        %1783 = vrot.lane.b32.xlu0 %v1589, 32
        %v1784 = vpop.permute.xlu0 %1783
        %1795 = vrot.lane.b32.xlu0 %v1209, 48
        %v1796 = vpop.permute.xlu0 %1795
        %1797 = vrot.lane.b32.xlu0 %v1321, 48
        %v1798 = vpop.permute.xlu0 %1797
        %1799 = vrot.lane.b32.xlu0 %v1433, 48
        %v1800 = vpop.permute.xlu0 %1799
        %1801 = vrot.lane.b32.xlu0 %v1545, 48
        %v1802 = vpop.permute.xlu0 %1801
        %1803 = vrot.lane.b32.xlu0 %v1605, 48
        %v1804 = vpop.permute.xlu0 %1803
        %1815 = vrot.lane.b32.xlu0 %v1211, 64
        %v1816 = vpop.permute.xlu0 %1815
        %1817 = vrot.lane.b32.xlu0 %v1323, 64
        %v1818 = vpop.permute.xlu0 %1817
        %1819 = vrot.lane.b32.xlu0 %v1435, 64
        %v1820 = vpop.permute.xlu0 %1819
        %1821 = vrot.lane.b32.xlu0 %v1547, 64
        %v1822 = vpop.permute.xlu0 %1821
        %1823 = vrot.lane.b32.xlu0 %v1597, 64
        %v1824 = vpop.permute.xlu0 %1823
        %1835 = vrot.lane.b32.xlu0 %v1213, 80
        %v1836 = vpop.permute.xlu0 %1835
        %1837 = vrot.lane.b32.xlu0 %v1325, 80
        %v1838 = vpop.permute.xlu0 %1837
        %1839 = vrot.lane.b32.xlu0 %v1437, 80
        %v1840 = vpop.permute.xlu0 %1839
        %1841 = vrot.lane.b32.xlu0 %v1549, 80
        %v1842 = vpop.permute.xlu0 %1841
        %1843 = vrot.lane.b32.xlu0 %v1607, 80
        %v1844 = vpop.permute.xlu0 %1843
        %1855 = vrot.lane.b32.xlu0 %v1215, 96
        %v1856 = vpop.permute.xlu0 %1855
        %1857 = vrot.lane.b32.xlu0 %v1327, 96
        %v1858 = vpop.permute.xlu0 %1857
        %1859 = vrot.lane.b32.xlu0 %v1439, 96
        %v1860 = vpop.permute.xlu0 %1859
        %1861 = vrot.lane.b32.xlu0 %v1551, 96
        %v1862 = vpop.permute.xlu0 %1861
        %1863 = vrot.lane.b32.xlu0 %v1601, 96
        %v1864 = vpop.permute.xlu0 %1863
        %1875 = vrot.lane.b32.xlu0 %v1217, 112
        %v1876 = vpop.permute.xlu0 %1875
        %1877 = vrot.lane.b32.xlu0 %v1329, 112
        %v1878 = vpop.permute.xlu0 %1877
        %1879 = vrot.lane.b32.xlu0 %v1441, 112
        %v1880 = vpop.permute.xlu0 %1879
        %1881 = vrot.lane.b32.xlu0 %v1553, 112
        %v1882 = vpop.permute.xlu0 %1881
        %1883 = vrot.lane.b32.xlu0 %v1609, 112
        %v1884 = vpop.permute.xlu0 %1883
        %vm1890 = vcmask 130048
        %v1891 = vsel %vm1890, %v699, %v1616
        %v1892 = vsel %vm1890, %v811, %v1618
        %v1893 = vsel %vm1890, %v923, %v1620
        %v1894 = vsel %vm1890, %v1035, %v1622
        %v1895 = vsel %vm1890, %v1081, %v1624
        %vm1896 = vcmask 261120
        %v1897 = vsel %vm1896, %v1891, %v1636
        %v1898 = vsel %vm1896, %v1892, %v1638
        %v1899 = vsel %vm1896, %v1893, %v1640
        %v1900 = vsel %vm1896, %v1894, %v1642
        %v1901 = vsel %vm1896, %v1895, %v1644
        %vm1902 = vcmask 392192
        %v1903 = vsel %vm1902, %v1897, %v1656
        %v1904 = vsel %vm1902, %v1898, %v1658
        %v1905 = vsel %vm1902, %v1899, %v1660
        %v1906 = vsel %vm1902, %v1900, %v1662
        %v1907 = vsel %vm1902, %v1901, %v1664
        %vm1908 = vcmask 523264
        %v1909 = vsel %vm1908, %v1903, %v1676
        %v1910 = vsel %vm1908, %v1904, %v1678
        %v1911 = vsel %vm1908, %v1905, %v1680
        %v1912 = vsel %vm1908, %v1906, %v1682
        %v1913 = vsel %vm1908, %v1907, %v1684
        %vm1914 = vcmask 654336
        %v1915 = vsel %vm1914, %v1909, %v1696
        %v1916 = vsel %vm1914, %v1910, %v1698
        %v1917 = vsel %vm1914, %v1911, %v1700
        %v1918 = vsel %vm1914, %v1912, %v1702
        %v1919 = vsel %vm1914, %v1913, %v1704
        %vm1920 = vcmask 785408
        %v1921 = vsel %vm1920, %v1915, %v1716
        %v1922 = vsel %vm1920, %v1916, %v1718
        %v1923 = vsel %vm1920, %v1917, %v1720
        %v1924 = vsel %vm1920, %v1918, %v1722
        %v1925 = vsel %vm1920, %v1919, %v1724
        %vm1926 = vcmask 916480
        %v1927 = vsel %vm1926, %v1921, %v1736
        %v1928 = vsel %vm1926, %v1922, %v1738
        %v1929 = vsel %vm1926, %v1923, %v1740
        %v1930 = vsel %vm1926, %v1924, %v1742
        %v1931 = vsel %vm1926, %v1925, %v1744
        %v1932 = vsel %vm1890, %v1203, %v1756
        %v1933 = vsel %vm1890, %v1315, %v1758
        %v1934 = vsel %vm1890, %v1427, %v1760
        %v1935 = vsel %vm1890, %v1539, %v1762
        %v1936 = vsel %vm1890, %v1585, %v1764
        %v1937 = vsel %vm1896, %v1932, %v1776
        %v1938 = vsel %vm1896, %v1933, %v1778
        %v1939 = vsel %vm1896, %v1934, %v1780
        %v1940 = vsel %vm1896, %v1935, %v1782
        %v1941 = vsel %vm1896, %v1936, %v1784
        %v1942 = vsel %vm1902, %v1937, %v1796
        %v1943 = vsel %vm1902, %v1938, %v1798
        %v1944 = vsel %vm1902, %v1939, %v1800
        %v1945 = vsel %vm1902, %v1940, %v1802
        %v1946 = vsel %vm1902, %v1941, %v1804
        %v1947 = vsel %vm1908, %v1942, %v1816
        %v1948 = vsel %vm1908, %v1943, %v1818
        %v1949 = vsel %vm1908, %v1944, %v1820
        %v1950 = vsel %vm1908, %v1945, %v1822
        %v1951 = vsel %vm1908, %v1946, %v1824
        %v1952 = vsel %vm1914, %v1947, %v1836
        %v1953 = vsel %vm1914, %v1948, %v1838
        %v1954 = vsel %vm1914, %v1949, %v1840
        %v1955 = vsel %vm1914, %v1950, %v1842
        %v1956 = vsel %vm1914, %v1951, %v1844
        %v1957 = vsel %vm1920, %v1952, %v1856
        %v1958 = vsel %vm1920, %v1953, %v1858
        %v1959 = vsel %vm1920, %v1954, %v1860
        %v1960 = vsel %vm1920, %v1955, %v1862
        %v1961 = vsel %vm1920, %v1956, %v1864
        %v1962 = vsel %vm1926, %v1957, %v1876
        %v1963 = vsel %vm1926, %v1958, %v1878
        %v1964 = vsel %vm1926, %v1959, %v1880
        %v1965 = vsel %vm1926, %v1960, %v1882
        %v1966 = vsel %vm1926, %v1961, %v1884
        %v1967 = vld [vmem:[%s1] sm:$0xff]
        %v1968 = vld [vmem:[%s2] sm:$0xff]
        %1970 = vset.pattern.permute.xlu0 0
        %1971 = vperm.xlu0 %1970, %v1968
        %v1972 = vpop.permute.xlu0 %1971
        %vm1974 = vcmask 293888
        %v1976 = vsel %vm1974, %v1967, 0
        %vm1978 = vcmask 1043456
        %v1980 = vsel %vm1978, %v1931, 0
        %v1983 = vsel %vm1978, %v1966, 0
        %1985 = vmatpush.msra.mxu0 0.0
        %1986 = vmatpush.msra.mxu0 0.0
        %1987 = vmatpush.msra.mxu0 0.0
        %1988 = vmatpush.msra.mxu0 0.0
        %1989 = vmatpush.msra.mxu0 0.0
        %1990 = vmatpush.msra.mxu0 0.0
        %1991 = vmatpush.msra.mxu0 0.0
        %1992 = vmatpush.msra.mxu0 0.0
        %1993 = vmatpush.msra.mxu0 0.0
        %1994 = vmatpush.msra.mxu0 0.0
        %1995 = vmatpush.msra.mxu0 0.0
        %1996 = vmatpush.msra.mxu0 %v1980
        %1997 = vmatpush.msra.mxu0 %v1930
        %1998 = vmatpush.msra.mxu0 %v1929
        %1999 = vmatpush.msra.mxu0 %v1928
        %2000 = vmatpush.msra.mxu0 %v1927
        %2001 = vmatmul.f32.gmra.mxu0 %v1976
        %v2002 = vpop.f32.mrf.mxu0
        %v2003 = vadd.f32 %v1972, %v2002
        %2004 = vdwg.mxu0
        %2005 = vmatpush.msra.mxu0 0.0
        %2006 = vmatpush.msra.mxu0 0.0
        %2007 = vmatpush.msra.mxu0 0.0
        %2008 = vmatpush.msra.mxu0 0.0
        %2009 = vmatpush.msra.mxu0 0.0
        %2010 = vmatpush.msra.mxu0 0.0
        %2011 = vmatpush.msra.mxu0 0.0
        %2012 = vmatpush.msra.mxu0 0.0
        %2013 = vmatpush.msra.mxu0 0.0
        %2014 = vmatpush.msra.mxu0 0.0
        %2015 = vmatpush.msra.mxu0 0.0
        %2016 = vmatpush.msra.mxu0 %v1983
        %2017 = vmatpush.msra.mxu0 %v1965
        %2018 = vmatpush.msra.mxu0 %v1964
        %2019 = vmatpush.msra.mxu0 %v1963
        %2020 = vmatpush.msra.mxu0 %v1962
        %2021 = vmatmul.f32.gmra.mxu0 %v1976
        %v2022 = vpop.f32.mrf.mxu0
        %v2023 = vadd.f32 %v1972, %v2022
        %2024 = vdwg.mxu0
        %v2025 = vmax.f32 %v2003, 0.0
        %v2026 = vmax.f32 %v2023, 0.0
        %2028 = vrot.lane.b32.xlu0 %v2025, 112
        %v2029 = vpop.permute.xlu0 %2028
        %2031 = vrot.lane.b32.xlu0 %v2025, 96
        %v2032 = vpop.permute.xlu0 %2031
        %2034 = vrot.lane.b32.xlu0 %v2025, 80
        %v2035 = vpop.permute.xlu0 %2034
        %2037 = vrot.lane.b32.xlu0 %v2025, 64
        %v2038 = vpop.permute.xlu0 %2037
        %2040 = vrot.lane.b32.xlu0 %v2025, 48
        %v2041 = vpop.permute.xlu0 %2040
        %2043 = vrot.lane.b32.xlu0 %v2025, 32
        %v2044 = vpop.permute.xlu0 %2043
        %2046 = vrot.lane.b32.xlu0 %v2025, 16
        %v2047 = vpop.permute.xlu0 %2046
        %2050 = vrot.lane.b32.xlu0 %v2026, 112
        %v2051 = vpop.permute.xlu0 %2050
        %2053 = vrot.lane.b32.xlu0 %v2026, 96
        %v2054 = vpop.permute.xlu0 %2053
        %2056 = vrot.lane.b32.xlu0 %v2026, 80
        %v2057 = vpop.permute.xlu0 %2056
        %2059 = vrot.lane.b32.xlu0 %v2026, 64
        %v2060 = vpop.permute.xlu0 %2059
        %2062 = vrot.lane.b32.xlu0 %v2026, 48
        %v2063 = vpop.permute.xlu0 %2062
        %2065 = vrot.lane.b32.xlu0 %v2026, 32
        %v2066 = vpop.permute.xlu0 %2065
        %2068 = vrot.lane.b32.xlu0 %v2026, 16
        %v2069 = vpop.permute.xlu0 %2068
        %v2071 = vrot.slane %v2032, 4
        %v2072 = vsel %vm602, %v2071, %v2025
        %v2073 = vrot.slane %v2025, 4
        %v2074 = vsel %vm602, %v2032, %v2073
        %v2076 = vunpack.c.l.s4 1983009808
        %v2077 = vunpack.c.0.s8 %v2076
        %v2078 = vperm.slane %v2072, %v2077
        %v2080 = vunpack.c.l.s4 1983009808
        %v2081 = vunpack.c.0.s8 %v2080
        %v2082 = vperm.slane %v2074, %v2081
        %v2083 = vrot.slane %v2035, 4
        %v2084 = vsel %vm602, %v2083, %v2029
        %v2085 = vrot.slane %v2029, 4
        %v2086 = vsel %vm602, %v2035, %v2085
        %v2088 = vunpack.c.l.s4 1983009808
        %v2089 = vunpack.c.0.s8 %v2088
        %v2090 = vperm.slane %v2084, %v2089
        %v2092 = vunpack.c.l.s4 1983009808
        %v2093 = vunpack.c.0.s8 %v2092
        %v2094 = vperm.slane %v2086, %v2093
        %v2095 = vrot.slane %v2044, 4
        %v2096 = vsel %vm602, %v2095, %v2038
        %v2097 = vrot.slane %v2038, 4
        %v2098 = vsel %vm602, %v2044, %v2097
        %v2100 = vunpack.c.l.s4 1983009808
        %v2101 = vunpack.c.0.s8 %v2100
        %v2102 = vperm.slane %v2096, %v2101
        %v2104 = vunpack.c.l.s4 1983009808
        %v2105 = vunpack.c.0.s8 %v2104
        %v2106 = vperm.slane %v2098, %v2105
        %v2107 = vrot.slane %v2047, 4
        %v2108 = vsel %vm602, %v2107, %v2041
        %v2109 = vrot.slane %v2041, 4
        %v2110 = vsel %vm602, %v2047, %v2109
        %v2112 = vunpack.c.l.s4 1983009808
        %v2113 = vunpack.c.0.s8 %v2112
        %v2114 = vperm.slane %v2108, %v2113
        %v2116 = vunpack.c.l.s4 1983009808
        %v2117 = vunpack.c.0.s8 %v2116
        %v2118 = vperm.slane %v2110, %v2117
        %v2119 = vrot.slane %v2090, 4
        %v2120 = vsel %vm602, %v2119, %v2078
        %v2121 = vrot.slane %v2078, 4
        %v2122 = vsel %vm602, %v2090, %v2121
        %v2124 = vunpack.c.l.s4 1934713408
        %v2125 = vunpack.c.0.s8 %v2124
        %v2126 = vperm.slane %v2120, %v2125
        %v2128 = vunpack.c.l.s4 1934713408
        %v2129 = vunpack.c.0.s8 %v2128
        %v2130 = vperm.slane %v2122, %v2129
        %v2131 = vrot.slane %v2094, 4
        %v2132 = vsel %vm602, %v2131, %v2082
        %v2133 = vrot.slane %v2082, 4
        %v2134 = vsel %vm602, %v2094, %v2133
        %v2136 = vunpack.c.l.s4 1934713408
        %v2137 = vunpack.c.0.s8 %v2136
        %v2138 = vperm.slane %v2132, %v2137
        %v2140 = vunpack.c.l.s4 1934713408
        %v2141 = vunpack.c.0.s8 %v2140
        %v2142 = vperm.slane %v2134, %v2141
        %v2143 = vrot.slane %v2114, 4
        %v2144 = vsel %vm602, %v2143, %v2102
        %v2145 = vrot.slane %v2102, 4
        %v2146 = vsel %vm602, %v2114, %v2145
        %v2148 = vunpack.c.l.s4 1934713408
        %v2149 = vunpack.c.0.s8 %v2148
        %v2150 = vperm.slane %v2144, %v2149
        %v2152 = vunpack.c.l.s4 1934713408
        %v2153 = vunpack.c.0.s8 %v2152
        %v2154 = vperm.slane %v2146, %v2153
        %v2155 = vrot.slane %v2118, 4
        %v2156 = vsel %vm602, %v2155, %v2106
        %v2157 = vrot.slane %v2106, 4
        %v2158 = vsel %vm602, %v2118, %v2157
        %v2160 = vunpack.c.l.s4 1934713408
        %v2161 = vunpack.c.0.s8 %v2160
        %v2162 = vperm.slane %v2156, %v2161
        %v2164 = vunpack.c.l.s4 1934713408
        %v2165 = vunpack.c.0.s8 %v2164
        %v2166 = vperm.slane %v2158, %v2165
        %v2167 = vrot.slane %v2150, 4
        %v2168 = vsel %vm602, %v2167, %v2126
        %v2169 = vrot.slane %v2126, 4
        %v2170 = vsel %vm602, %v2150, %v2169
        %v2171 = vrot.slane %v2154, 4
        %v2172 = vsel %vm602, %v2171, %v2130
        %v2173 = vrot.slane %v2130, 4
        %v2174 = vsel %vm602, %v2154, %v2173
        %v2175 = vrot.slane %v2162, 4
        %v2176 = vsel %vm602, %v2175, %v2138
        %v2177 = vrot.slane %v2138, 4
        %v2178 = vsel %vm602, %v2162, %v2177
        %v2179 = vrot.slane %v2166, 4
        %v2180 = vsel %vm602, %v2179, %v2142
        %v2181 = vrot.slane %v2142, 4
        %v2182 = vsel %vm602, %v2166, %v2181
        %v2183 = vrot.slane %v2054, 4
        %v2184 = vsel %vm602, %v2183, %v2026
        %v2185 = vrot.slane %v2026, 4
        %v2186 = vsel %vm602, %v2054, %v2185
        %v2188 = vunpack.c.l.s4 1983009808
        %v2189 = vunpack.c.0.s8 %v2188
        %v2190 = vperm.slane %v2184, %v2189
        %v2192 = vunpack.c.l.s4 1983009808
        %v2193 = vunpack.c.0.s8 %v2192
        %v2194 = vperm.slane %v2186, %v2193
        %v2195 = vrot.slane %v2057, 4
        %v2196 = vsel %vm602, %v2195, %v2051
        %v2197 = vrot.slane %v2051, 4
        %v2198 = vsel %vm602, %v2057, %v2197
        %v2200 = vunpack.c.l.s4 1983009808
        %v2201 = vunpack.c.0.s8 %v2200
        %v2202 = vperm.slane %v2196, %v2201
        %v2204 = vunpack.c.l.s4 1983009808
        %v2205 = vunpack.c.0.s8 %v2204
        %v2206 = vperm.slane %v2198, %v2205
        %v2207 = vrot.slane %v2066, 4
        %v2208 = vsel %vm602, %v2207, %v2060
        %v2209 = vrot.slane %v2060, 4
        %v2210 = vsel %vm602, %v2066, %v2209
        %v2212 = vunpack.c.l.s4 1983009808
        %v2213 = vunpack.c.0.s8 %v2212
        %v2214 = vperm.slane %v2208, %v2213
        %v2216 = vunpack.c.l.s4 1983009808
        %v2217 = vunpack.c.0.s8 %v2216
        %v2218 = vperm.slane %v2210, %v2217
        %v2219 = vrot.slane %v2069, 4
        %v2220 = vsel %vm602, %v2219, %v2063
        %v2221 = vrot.slane %v2063, 4
        %v2222 = vsel %vm602, %v2069, %v2221
        %v2224 = vunpack.c.l.s4 1983009808
        %v2225 = vunpack.c.0.s8 %v2224
        %v2226 = vperm.slane %v2220, %v2225
        %v2228 = vunpack.c.l.s4 1983009808
        %v2229 = vunpack.c.0.s8 %v2228
        %v2230 = vperm.slane %v2222, %v2229
        %v2231 = vrot.slane %v2202, 4
        %v2232 = vsel %vm602, %v2231, %v2190
        %v2233 = vrot.slane %v2190, 4
        %v2234 = vsel %vm602, %v2202, %v2233
        %v2236 = vunpack.c.l.s4 1934713408
        %v2237 = vunpack.c.0.s8 %v2236
        %v2238 = vperm.slane %v2232, %v2237
        %v2240 = vunpack.c.l.s4 1934713408
        %v2241 = vunpack.c.0.s8 %v2240
        %v2242 = vperm.slane %v2234, %v2241
        %v2243 = vrot.slane %v2206, 4
        %v2244 = vsel %vm602, %v2243, %v2194
        %v2245 = vrot.slane %v2194, 4
        %v2246 = vsel %vm602, %v2206, %v2245
        %v2248 = vunpack.c.l.s4 1934713408
        %v2249 = vunpack.c.0.s8 %v2248
        %v2250 = vperm.slane %v2244, %v2249
        %v2252 = vunpack.c.l.s4 1934713408
        %v2253 = vunpack.c.0.s8 %v2252
        %v2254 = vperm.slane %v2246, %v2253
        %v2255 = vrot.slane %v2226, 4
        %v2256 = vsel %vm602, %v2255, %v2214
        %v2257 = vrot.slane %v2214, 4
        %v2258 = vsel %vm602, %v2226, %v2257
        %v2260 = vunpack.c.l.s4 1934713408
        %v2261 = vunpack.c.0.s8 %v2260
        %v2262 = vperm.slane %v2256, %v2261
        %v2264 = vunpack.c.l.s4 1934713408
        %v2265 = vunpack.c.0.s8 %v2264
        %v2266 = vperm.slane %v2258, %v2265
        %v2267 = vrot.slane %v2230, 4
        %v2268 = vsel %vm602, %v2267, %v2218
        %v2269 = vrot.slane %v2218, 4
        %v2270 = vsel %vm602, %v2230, %v2269
        %v2272 = vunpack.c.l.s4 1934713408
        %v2273 = vunpack.c.0.s8 %v2272
        %v2274 = vperm.slane %v2268, %v2273
        %v2276 = vunpack.c.l.s4 1934713408
        %v2277 = vunpack.c.0.s8 %v2276
        %v2278 = vperm.slane %v2270, %v2277
        %v2279 = vrot.slane %v2262, 4
        %v2280 = vsel %vm602, %v2279, %v2238
        %v2281 = vrot.slane %v2238, 4
        %v2282 = vsel %vm602, %v2262, %v2281
        %v2283 = vrot.slane %v2266, 4
        %v2284 = vsel %vm602, %v2283, %v2242
        %v2285 = vrot.slane %v2242, 4
        %v2286 = vsel %vm602, %v2266, %v2285
        %v2287 = vrot.slane %v2274, 4
        %v2288 = vsel %vm602, %v2287, %v2250
        %v2289 = vrot.slane %v2250, 4
        %v2290 = vsel %vm602, %v2274, %v2289
        %v2291 = vrot.slane %v2278, 4
        %v2292 = vsel %vm602, %v2291, %v2254
        %v2293 = vrot.slane %v2254, 4
        %v2294 = vsel %vm602, %v2278, %v2293
        %2295 = vst.msk [vmem:[#allocation3] sm:$0xff] %vm320, 0.0
        %2296 = vst.msk [vmem:[#allocation3 + $0x8] sm:$0xff] %vm320, 0.0
        %2297 = vst.msk [vmem:[#allocation3 + $0x10] sm:$0x3] %vm323, 0.0
        %2298 = vst.msk [vmem:[#allocation3 + $0x18] sm:$0xff] %vm320, 0.0
        %2299 = vst.msk [vmem:[#allocation3 + $0x20] sm:$0xff] %vm320, 0.0
        %2300 = vst.msk [vmem:[#allocation3 + $0x28] sm:$0x3] %vm323, 0.0
        %2301 = vst.msk [vmem:[#allocation3 + $0x30] sm:$0xff] %vm320, 0.0
        %2302 = vst.msk [vmem:[#allocation3 + $0x38] sm:$0xff] %vm320, 0.0
        %2303 = vst.msk [vmem:[#allocation3 + $0x40] sm:$0x3] %vm323, 0.0
        %2304 = vst.msk [vmem:[#allocation3 + $0x48] sm:$0xff] %vm320, 0.0
        %2305 = vst.msk [vmem:[#allocation3 + $0x50] sm:$0xff] %vm320, 0.0
        %2306 = vst.msk [vmem:[#allocation3 + $0x58] sm:$0x3] %vm323, 0.0
        %2307 = vst.msk [vmem:[#allocation3 + $0x60] sm:$0xff] %vm320, 0.0
        %2308 = vst.msk [vmem:[#allocation3 + $0x68] sm:$0xff] %vm320, 0.0
        %2309 = vst.msk [vmem:[#allocation3 + $0x70] sm:$0x3] %vm323, 0.0
        %2310 = vst.msk [vmem:[#allocation3 + $0x78] sm:$0xff] %vm320, 0.0
        %2311 = vst.msk [vmem:[#allocation3 + $0x80] sm:$0xff] %vm320, 0.0
        %2312 = vst.msk [vmem:[#allocation3 + $0x88] sm:$0x3] %vm323, 0.0
        %2313 = vst.msk [vmem:[#allocation3 + $0x90] sm:$0xff] %vm320, 0.0
        %2314 = vst.msk [vmem:[#allocation3 + $0x98] sm:$0xff] %vm320, 0.0
        %2315 = vst.msk [vmem:[#allocation3 + $0xa0] sm:$0x3] %vm323, 0.0
        %2316 = vst.msk [vmem:[#allocation3 + $0xa8] sm:$0xff] %vm320, 0.0
        %2317 = vst.msk [vmem:[#allocation3 + $0xb0] sm:$0xff] %vm320, 0.0
        %2318 = vst.msk [vmem:[#allocation3 + $0xb8] sm:$0x3] %vm323, 0.0
        %2335 = vrot.lane.b32.xlu0 %v2168, 1
        %v2336 = vpop.permute.xlu0 %2335
        %2337 = vrot.lane.b32.xlu0 %v2280, 1
        %v2338 = vpop.permute.xlu0 %2337
        %2339 = vrot.lane.b32.xlu0 %v2170, 1
        %v2340 = vpop.permute.xlu0 %2339
        %2341 = vrot.lane.b32.xlu0 %v2282, 1
        %v2342 = vpop.permute.xlu0 %2341
        %2343 = vrot.lane.b32.xlu0 %v2172, 1
        %v2344 = vpop.permute.xlu0 %2343
        %2345 = vrot.lane.b32.xlu0 %v2284, 1
        %v2346 = vpop.permute.xlu0 %2345
        %2347 = vrot.lane.b32.xlu0 %v2174, 1
        %v2348 = vpop.permute.xlu0 %2347
        %2349 = vrot.lane.b32.xlu0 %v2286, 1
        %v2350 = vpop.permute.xlu0 %2349
        %2351 = vrot.lane.b32.xlu0 %v2176, 1
        %v2352 = vpop.permute.xlu0 %2351
        %2353 = vrot.lane.b32.xlu0 %v2288, 1
        %v2354 = vpop.permute.xlu0 %2353
        %2355 = vrot.lane.b32.xlu0 %v2178, 1
        %v2356 = vpop.permute.xlu0 %2355
        %2357 = vrot.lane.b32.xlu0 %v2290, 1
        %v2358 = vpop.permute.xlu0 %2357
        %2359 = vrot.lane.b32.xlu0 %v2180, 1
        %v2360 = vpop.permute.xlu0 %2359
        %2361 = vrot.lane.b32.xlu0 %v2292, 1
        %v2362 = vpop.permute.xlu0 %2361
        %2363 = vrot.lane.b32.xlu0 %v2182, 1
        %v2364 = vpop.permute.xlu0 %2363
        %2365 = vrot.lane.b32.xlu0 %v2294, 1
        %v2366 = vpop.permute.xlu0 %2365
        %2383 = vst.msk [vmem:[#allocation3 + $0x1] sm:$0xff] %vm366, %v2336
        %2384 = vst.msk [vmem:[#allocation3 + $0x9] sm:$0xff] %vm366, %v2338
        %2385 = vst.msk [vmem:[#allocation3 + $0x19] sm:$0xff] %vm366, %v2340
        %2386 = vst.msk [vmem:[#allocation3 + $0x21] sm:$0xff] %vm366, %v2342
        %2387 = vst.msk [vmem:[#allocation3 + $0x31] sm:$0xff] %vm366, %v2344
        %2388 = vst.msk [vmem:[#allocation3 + $0x39] sm:$0xff] %vm366, %v2346
        %2389 = vst.msk [vmem:[#allocation3 + $0x49] sm:$0xff] %vm366, %v2348
        %2390 = vst.msk [vmem:[#allocation3 + $0x51] sm:$0xff] %vm366, %v2350
        %2391 = vst.msk [vmem:[#allocation3 + $0x61] sm:$0xff] %vm366, %v2352
        %2392 = vst.msk [vmem:[#allocation3 + $0x69] sm:$0xff] %vm366, %v2354
        %2393 = vst.msk [vmem:[#allocation3 + $0x79] sm:$0xff] %vm366, %v2356
        %2394 = vst.msk [vmem:[#allocation3 + $0x81] sm:$0xff] %vm366, %v2358
        %2395 = vst.msk [vmem:[#allocation3 + $0x91] sm:$0xff] %vm366, %v2360
        %2396 = vst.msk [vmem:[#allocation3 + $0x99] sm:$0xff] %vm366, %v2362
        %2397 = vst.msk [vmem:[#allocation3 + $0xa9] sm:$0xff] %vm366, %v2364
        %2398 = vst.msk [vmem:[#allocation3 + $0xb1] sm:$0xff] %vm366, %v2366
        %v2399 = vld [vmem:[#allocation3] sm:$0xff]
        %v2400 = vld [vmem:[#allocation3 + $0x8] sm:$0xff]
        %v2401 = vld [vmem:[#allocation3 + $0x10] sm:$0x3]
        %v2402 = vld [vmem:[#allocation3 + $0x18] sm:$0xff]
        %v2403 = vld [vmem:[#allocation3 + $0x20] sm:$0xff]
        %v2404 = vld [vmem:[#allocation3 + $0x28] sm:$0x3]
        %v2405 = vld [vmem:[#allocation3 + $0x30] sm:$0xff]
        %v2406 = vld [vmem:[#allocation3 + $0x38] sm:$0xff]
        %v2407 = vld [vmem:[#allocation3 + $0x40] sm:$0x3]
        %v2408 = vld [vmem:[#allocation3 + $0x48] sm:$0xff]
        %v2409 = vld [vmem:[#allocation3 + $0x50] sm:$0xff]
        %v2410 = vld [vmem:[#allocation3 + $0x58] sm:$0x3]
        %v2411 = vld [vmem:[#allocation3 + $0x60] sm:$0xff]
        %v2412 = vld [vmem:[#allocation3 + $0x68] sm:$0xff]
        %v2413 = vld [vmem:[#allocation3 + $0x70] sm:$0x3]
        %v2414 = vld [vmem:[#allocation3 + $0x78] sm:$0xff]
        %v2415 = vld [vmem:[#allocation3 + $0x80] sm:$0xff]
        %v2416 = vld [vmem:[#allocation3 + $0x88] sm:$0x3]
        %v2417 = vld [vmem:[#allocation3 + $0x90] sm:$0xff]
        %v2418 = vld [vmem:[#allocation3 + $0x98] sm:$0xff]
        %v2419 = vld [vmem:[#allocation3 + $0xa0] sm:$0x3]
        %v2420 = vld [vmem:[#allocation3 + $0xa8] sm:$0xff]
        %v2421 = vld [vmem:[#allocation3 + $0xb0] sm:$0xff]
        %v2422 = vld [vmem:[#allocation3 + $0xb8] sm:$0x3]
        %2439 = vrot.lane.b32.xlu0 %v2399, 127
        %v2440 = vpop.permute.xlu0 %2439
        %2441 = vrot.lane.b32.xlu0 %v2400, 127
        %v2442 = vpop.permute.xlu0 %2441
        %2443 = vrot.lane.b32.xlu0 %v2402, 127
        %v2444 = vpop.permute.xlu0 %2443
        %2445 = vrot.lane.b32.xlu0 %v2403, 127
        %v2446 = vpop.permute.xlu0 %2445
        %2447 = vrot.lane.b32.xlu0 %v2405, 127
        %v2448 = vpop.permute.xlu0 %2447
        %2449 = vrot.lane.b32.xlu0 %v2406, 127
        %v2450 = vpop.permute.xlu0 %2449
        %2451 = vrot.lane.b32.xlu0 %v2408, 127
        %v2452 = vpop.permute.xlu0 %2451
        %2453 = vrot.lane.b32.xlu0 %v2409, 127
        %v2454 = vpop.permute.xlu0 %2453
        %2455 = vrot.lane.b32.xlu0 %v2411, 127
        %v2456 = vpop.permute.xlu0 %2455
        %2457 = vrot.lane.b32.xlu0 %v2412, 127
        %v2458 = vpop.permute.xlu0 %2457
        %2459 = vrot.lane.b32.xlu0 %v2414, 127
        %v2460 = vpop.permute.xlu0 %2459
        %2461 = vrot.lane.b32.xlu0 %v2415, 127
        %v2462 = vpop.permute.xlu0 %2461
        %2463 = vrot.lane.b32.xlu0 %v2417, 127
        %v2464 = vpop.permute.xlu0 %2463
        %2465 = vrot.lane.b32.xlu0 %v2418, 127
        %v2466 = vpop.permute.xlu0 %2465
        %2467 = vrot.lane.b32.xlu0 %v2420, 127
        %v2468 = vpop.permute.xlu0 %2467
        %2469 = vrot.lane.b32.xlu0 %v2421, 127
        %v2470 = vpop.permute.xlu0 %2469
        %2487 = vrot.lane.b32.xlu0 %v2399, 126
        %v2488 = vpop.permute.xlu0 %2487
        %2489 = vrot.lane.b32.xlu0 %v2400, 126
        %v2490 = vpop.permute.xlu0 %2489
        %2491 = vrot.lane.b32.xlu0 %v2402, 126
        %v2492 = vpop.permute.xlu0 %2491
        %2493 = vrot.lane.b32.xlu0 %v2403, 126
        %v2494 = vpop.permute.xlu0 %2493
        %2495 = vrot.lane.b32.xlu0 %v2405, 126
        %v2496 = vpop.permute.xlu0 %2495
        %2497 = vrot.lane.b32.xlu0 %v2406, 126
        %v2498 = vpop.permute.xlu0 %2497
        %2499 = vrot.lane.b32.xlu0 %v2408, 126
        %v2500 = vpop.permute.xlu0 %2499
        %2501 = vrot.lane.b32.xlu0 %v2409, 126
        %v2502 = vpop.permute.xlu0 %2501
        %2503 = vrot.lane.b32.xlu0 %v2411, 126
        %v2504 = vpop.permute.xlu0 %2503
        %2505 = vrot.lane.b32.xlu0 %v2412, 126
        %v2506 = vpop.permute.xlu0 %2505
        %2507 = vrot.lane.b32.xlu0 %v2414, 126
        %v2508 = vpop.permute.xlu0 %2507
        %2509 = vrot.lane.b32.xlu0 %v2415, 126
        %v2510 = vpop.permute.xlu0 %2509
        %2511 = vrot.lane.b32.xlu0 %v2417, 126
        %v2512 = vpop.permute.xlu0 %2511
        %2513 = vrot.lane.b32.xlu0 %v2418, 126
        %v2514 = vpop.permute.xlu0 %2513
        %2515 = vrot.lane.b32.xlu0 %v2420, 126
        %v2516 = vpop.permute.xlu0 %2515
        %2517 = vrot.lane.b32.xlu0 %v2421, 126
        %v2518 = vpop.permute.xlu0 %2517
        %v2543 = vrot.slane %v2399, 1
        %v2544 = vrot.slane %v2400, 1
        %v2545 = vsel %vm447, %v2543, %v2544
        %v2546 = vrot.slane %v2401, 1
        %v2547 = vsel %vm447, %v2544, %v2546
        %v2548 = vrot.slane %v2402, 1
        %v2549 = vrot.slane %v2403, 1
        %v2550 = vsel %vm447, %v2548, %v2549
        %v2551 = vrot.slane %v2404, 1
        %v2552 = vsel %vm447, %v2549, %v2551
        %v2553 = vrot.slane %v2405, 1
        %v2554 = vrot.slane %v2406, 1
        %v2555 = vsel %vm447, %v2553, %v2554
        %v2556 = vrot.slane %v2407, 1
        %v2557 = vsel %vm447, %v2554, %v2556
        %v2558 = vrot.slane %v2408, 1
        %v2559 = vrot.slane %v2409, 1
        %v2560 = vsel %vm447, %v2558, %v2559
        %v2561 = vrot.slane %v2410, 1
        %v2562 = vsel %vm447, %v2559, %v2561
        %v2563 = vrot.slane %v2411, 1
        %v2564 = vrot.slane %v2412, 1
        %v2565 = vsel %vm447, %v2563, %v2564
        %v2566 = vrot.slane %v2413, 1
        %v2567 = vsel %vm447, %v2564, %v2566
        %v2568 = vrot.slane %v2414, 1
        %v2569 = vrot.slane %v2415, 1
        %v2570 = vsel %vm447, %v2568, %v2569
        %v2571 = vrot.slane %v2416, 1
        %v2572 = vsel %vm447, %v2569, %v2571
        %v2573 = vrot.slane %v2417, 1
        %v2574 = vrot.slane %v2418, 1
        %v2575 = vsel %vm447, %v2573, %v2574
        %v2576 = vrot.slane %v2419, 1
        %v2577 = vsel %vm447, %v2574, %v2576
        %v2578 = vrot.slane %v2420, 1
        %v2579 = vrot.slane %v2421, 1
        %v2580 = vsel %vm447, %v2578, %v2579
        %v2581 = vrot.slane %v2422, 1
        %v2582 = vsel %vm447, %v2579, %v2581
        %2599 = vrot.lane.b32.xlu0 %v2545, 127
        %v2600 = vpop.permute.xlu0 %2599
        %2601 = vrot.lane.b32.xlu0 %v2547, 127
        %v2602 = vpop.permute.xlu0 %2601
        %2603 = vrot.lane.b32.xlu0 %v2550, 127
        %v2604 = vpop.permute.xlu0 %2603
        %2605 = vrot.lane.b32.xlu0 %v2552, 127
        %v2606 = vpop.permute.xlu0 %2605
        %2607 = vrot.lane.b32.xlu0 %v2555, 127
        %v2608 = vpop.permute.xlu0 %2607
        %2609 = vrot.lane.b32.xlu0 %v2557, 127
        %v2610 = vpop.permute.xlu0 %2609
        %2611 = vrot.lane.b32.xlu0 %v2560, 127
        %v2612 = vpop.permute.xlu0 %2611
        %2613 = vrot.lane.b32.xlu0 %v2562, 127
        %v2614 = vpop.permute.xlu0 %2613
        %2615 = vrot.lane.b32.xlu0 %v2565, 127
        %v2616 = vpop.permute.xlu0 %2615
        %2617 = vrot.lane.b32.xlu0 %v2567, 127
        %v2618 = vpop.permute.xlu0 %2617
        %2619 = vrot.lane.b32.xlu0 %v2570, 127
        %v2620 = vpop.permute.xlu0 %2619
        %2621 = vrot.lane.b32.xlu0 %v2572, 127
        %v2622 = vpop.permute.xlu0 %2621
        %2623 = vrot.lane.b32.xlu0 %v2575, 127
        %v2624 = vpop.permute.xlu0 %2623
        %2625 = vrot.lane.b32.xlu0 %v2577, 127
        %v2626 = vpop.permute.xlu0 %2625
        %2627 = vrot.lane.b32.xlu0 %v2580, 127
        %v2628 = vpop.permute.xlu0 %2627
        %2629 = vrot.lane.b32.xlu0 %v2582, 127
        %v2630 = vpop.permute.xlu0 %2629
        %2647 = vrot.lane.b32.xlu0 %v2545, 126
        %v2648 = vpop.permute.xlu0 %2647
        %2649 = vrot.lane.b32.xlu0 %v2547, 126
        %v2650 = vpop.permute.xlu0 %2649
        %2651 = vrot.lane.b32.xlu0 %v2550, 126
        %v2652 = vpop.permute.xlu0 %2651
        %2653 = vrot.lane.b32.xlu0 %v2552, 126
        %v2654 = vpop.permute.xlu0 %2653
        %2655 = vrot.lane.b32.xlu0 %v2555, 126
        %v2656 = vpop.permute.xlu0 %2655
        %2657 = vrot.lane.b32.xlu0 %v2557, 126
        %v2658 = vpop.permute.xlu0 %2657
        %2659 = vrot.lane.b32.xlu0 %v2560, 126
        %v2660 = vpop.permute.xlu0 %2659
        %2661 = vrot.lane.b32.xlu0 %v2562, 126
        %v2662 = vpop.permute.xlu0 %2661
        %2663 = vrot.lane.b32.xlu0 %v2565, 126
        %v2664 = vpop.permute.xlu0 %2663
        %2665 = vrot.lane.b32.xlu0 %v2567, 126
        %v2666 = vpop.permute.xlu0 %2665
        %2667 = vrot.lane.b32.xlu0 %v2570, 126
        %v2668 = vpop.permute.xlu0 %2667
        %2669 = vrot.lane.b32.xlu0 %v2572, 126
        %v2670 = vpop.permute.xlu0 %2669
        %2671 = vrot.lane.b32.xlu0 %v2575, 126
        %v2672 = vpop.permute.xlu0 %2671
        %2673 = vrot.lane.b32.xlu0 %v2577, 126
        %v2674 = vpop.permute.xlu0 %2673
        %2675 = vrot.lane.b32.xlu0 %v2580, 126
        %v2676 = vpop.permute.xlu0 %2675
        %2677 = vrot.lane.b32.xlu0 %v2582, 126
        %v2678 = vpop.permute.xlu0 %2677
        %v2695 = vrot.slane %v2399, 2
        %v2696 = vrot.slane %v2400, 2
        %v2697 = vsel %vm524, %v2695, %v2696
        %v2698 = vrot.slane %v2401, 2
        %v2699 = vsel %vm524, %v2696, %v2698
        %v2700 = vrot.slane %v2402, 2
        %v2701 = vrot.slane %v2403, 2
        %v2702 = vsel %vm524, %v2700, %v2701
        %v2703 = vrot.slane %v2404, 2
        %v2704 = vsel %vm524, %v2701, %v2703
        %v2705 = vrot.slane %v2405, 2
        %v2706 = vrot.slane %v2406, 2
        %v2707 = vsel %vm524, %v2705, %v2706
        %v2708 = vrot.slane %v2407, 2
        %v2709 = vsel %vm524, %v2706, %v2708
        %v2710 = vrot.slane %v2408, 2
        %v2711 = vrot.slane %v2409, 2
        %v2712 = vsel %vm524, %v2710, %v2711
        %v2713 = vrot.slane %v2410, 2
        %v2714 = vsel %vm524, %v2711, %v2713
        %v2715 = vrot.slane %v2411, 2
        %v2716 = vrot.slane %v2412, 2
        %v2717 = vsel %vm524, %v2715, %v2716
        %v2718 = vrot.slane %v2413, 2
        %v2719 = vsel %vm524, %v2716, %v2718
        %v2720 = vrot.slane %v2414, 2
        %v2721 = vrot.slane %v2415, 2
        %v2722 = vsel %vm524, %v2720, %v2721
        %v2723 = vrot.slane %v2416, 2
        %v2724 = vsel %vm524, %v2721, %v2723
        %v2725 = vrot.slane %v2417, 2
        %v2726 = vrot.slane %v2418, 2
        %v2727 = vsel %vm524, %v2725, %v2726
        %v2728 = vrot.slane %v2419, 2
        %v2729 = vsel %vm524, %v2726, %v2728
        %v2730 = vrot.slane %v2420, 2
        %v2731 = vrot.slane %v2421, 2
        %v2732 = vsel %vm524, %v2730, %v2731
        %v2733 = vrot.slane %v2422, 2
        %v2734 = vsel %vm524, %v2731, %v2733
        %2751 = vrot.lane.b32.xlu0 %v2697, 127
        %v2752 = vpop.permute.xlu0 %2751
        %2753 = vrot.lane.b32.xlu0 %v2699, 127
        %v2754 = vpop.permute.xlu0 %2753
        %2755 = vrot.lane.b32.xlu0 %v2702, 127
        %v2756 = vpop.permute.xlu0 %2755
        %2757 = vrot.lane.b32.xlu0 %v2704, 127
        %v2758 = vpop.permute.xlu0 %2757
        %2759 = vrot.lane.b32.xlu0 %v2707, 127
        %v2760 = vpop.permute.xlu0 %2759
        %2761 = vrot.lane.b32.xlu0 %v2709, 127
        %v2762 = vpop.permute.xlu0 %2761
        %2763 = vrot.lane.b32.xlu0 %v2712, 127
        %v2764 = vpop.permute.xlu0 %2763
        %2765 = vrot.lane.b32.xlu0 %v2714, 127
        %v2766 = vpop.permute.xlu0 %2765
        %2767 = vrot.lane.b32.xlu0 %v2717, 127
        %v2768 = vpop.permute.xlu0 %2767
        %2769 = vrot.lane.b32.xlu0 %v2719, 127
        %v2770 = vpop.permute.xlu0 %2769
        %2771 = vrot.lane.b32.xlu0 %v2722, 127
        %v2772 = vpop.permute.xlu0 %2771
        %2773 = vrot.lane.b32.xlu0 %v2724, 127
        %v2774 = vpop.permute.xlu0 %2773
        %2775 = vrot.lane.b32.xlu0 %v2727, 127
        %v2776 = vpop.permute.xlu0 %2775
        %2777 = vrot.lane.b32.xlu0 %v2729, 127
        %v2778 = vpop.permute.xlu0 %2777
        %2779 = vrot.lane.b32.xlu0 %v2732, 127
        %v2780 = vpop.permute.xlu0 %2779
        %2781 = vrot.lane.b32.xlu0 %v2734, 127
        %v2782 = vpop.permute.xlu0 %2781
        %2799 = vrot.lane.b32.xlu0 %v2697, 126
        %v2800 = vpop.permute.xlu0 %2799
        %2801 = vrot.lane.b32.xlu0 %v2699, 126
        %v2802 = vpop.permute.xlu0 %2801
        %2803 = vrot.lane.b32.xlu0 %v2702, 126
        %v2804 = vpop.permute.xlu0 %2803
        %2805 = vrot.lane.b32.xlu0 %v2704, 126
        %v2806 = vpop.permute.xlu0 %2805
        %2807 = vrot.lane.b32.xlu0 %v2707, 126
        %v2808 = vpop.permute.xlu0 %2807
        %2809 = vrot.lane.b32.xlu0 %v2709, 126
        %v2810 = vpop.permute.xlu0 %2809
        %2811 = vrot.lane.b32.xlu0 %v2712, 126
        %v2812 = vpop.permute.xlu0 %2811
        %2813 = vrot.lane.b32.xlu0 %v2714, 126
        %v2814 = vpop.permute.xlu0 %2813
        %2815 = vrot.lane.b32.xlu0 %v2717, 126
        %v2816 = vpop.permute.xlu0 %2815
        %2817 = vrot.lane.b32.xlu0 %v2719, 126
        %v2818 = vpop.permute.xlu0 %2817
        %2819 = vrot.lane.b32.xlu0 %v2722, 126
        %v2820 = vpop.permute.xlu0 %2819
        %2821 = vrot.lane.b32.xlu0 %v2724, 126
        %v2822 = vpop.permute.xlu0 %2821
        %2823 = vrot.lane.b32.xlu0 %v2727, 126
        %v2824 = vpop.permute.xlu0 %2823
        %2825 = vrot.lane.b32.xlu0 %v2729, 126
        %v2826 = vpop.permute.xlu0 %2825
        %2827 = vrot.lane.b32.xlu0 %v2732, 126
        %v2828 = vpop.permute.xlu0 %2827
        %2829 = vrot.lane.b32.xlu0 %v2734, 126
        %v2830 = vpop.permute.xlu0 %2829
        %v2847 = vrot.slane %v2405, 4
        %v2848 = vsel %vm602, %v2847, %v2399
        %v2849 = vrot.slane %v2399, 4
        %v2850 = vsel %vm602, %v2405, %v2849
        %v2852 = vunpack.c.l.s4 1983009808
        %v2853 = vunpack.c.0.s8 %v2852
        %v2854 = vperm.slane %v2848, %v2853
        %v2856 = vunpack.c.l.s4 1983009808
        %v2857 = vunpack.c.0.s8 %v2856
        %v2858 = vperm.slane %v2850, %v2857
        %v2859 = vrot.slane %v2408, 4
        %v2860 = vsel %vm602, %v2859, %v2402
        %v2861 = vrot.slane %v2402, 4
        %v2862 = vsel %vm602, %v2408, %v2861
        %v2864 = vunpack.c.l.s4 1983009808
        %v2865 = vunpack.c.0.s8 %v2864
        %v2866 = vperm.slane %v2860, %v2865
        %v2868 = vunpack.c.l.s4 1983009808
        %v2869 = vunpack.c.0.s8 %v2868
        %v2870 = vperm.slane %v2862, %v2869
        %v2871 = vrot.slane %v2417, 4
        %v2872 = vsel %vm602, %v2871, %v2411
        %v2873 = vrot.slane %v2411, 4
        %v2874 = vsel %vm602, %v2417, %v2873
        %v2876 = vunpack.c.l.s4 1983009808
        %v2877 = vunpack.c.0.s8 %v2876
        %v2878 = vperm.slane %v2872, %v2877
        %v2880 = vunpack.c.l.s4 1983009808
        %v2881 = vunpack.c.0.s8 %v2880
        %v2882 = vperm.slane %v2874, %v2881
        %v2883 = vrot.slane %v2420, 4
        %v2884 = vsel %vm602, %v2883, %v2414
        %v2885 = vrot.slane %v2414, 4
        %v2886 = vsel %vm602, %v2420, %v2885
        %v2888 = vunpack.c.l.s4 1983009808
        %v2889 = vunpack.c.0.s8 %v2888
        %v2890 = vperm.slane %v2884, %v2889
        %v2892 = vunpack.c.l.s4 1983009808
        %v2893 = vunpack.c.0.s8 %v2892
        %v2894 = vperm.slane %v2886, %v2893
        %v2895 = vrot.slane %v2866, 4
        %v2896 = vsel %vm602, %v2895, %v2854
        %v2897 = vrot.slane %v2854, 4
        %v2898 = vsel %vm602, %v2866, %v2897
        %v2900 = vunpack.c.l.s4 1934713408
        %v2901 = vunpack.c.0.s8 %v2900
        %v2902 = vperm.slane %v2896, %v2901
        %v2904 = vunpack.c.l.s4 1934713408
        %v2905 = vunpack.c.0.s8 %v2904
        %v2906 = vperm.slane %v2898, %v2905
        %v2907 = vrot.slane %v2870, 4
        %v2908 = vsel %vm602, %v2907, %v2858
        %v2909 = vrot.slane %v2858, 4
        %v2910 = vsel %vm602, %v2870, %v2909
        %v2912 = vunpack.c.l.s4 1934713408
        %v2913 = vunpack.c.0.s8 %v2912
        %v2914 = vperm.slane %v2908, %v2913
        %v2916 = vunpack.c.l.s4 1934713408
        %v2917 = vunpack.c.0.s8 %v2916
        %v2918 = vperm.slane %v2910, %v2917
        %v2919 = vrot.slane %v2890, 4
        %v2920 = vsel %vm602, %v2919, %v2878
        %v2921 = vrot.slane %v2878, 4
        %v2922 = vsel %vm602, %v2890, %v2921
        %v2924 = vunpack.c.l.s4 1934713408
        %v2925 = vunpack.c.0.s8 %v2924
        %v2926 = vperm.slane %v2920, %v2925
        %v2928 = vunpack.c.l.s4 1934713408
        %v2929 = vunpack.c.0.s8 %v2928
        %v2930 = vperm.slane %v2922, %v2929
        %v2931 = vrot.slane %v2894, 4
        %v2932 = vsel %vm602, %v2931, %v2882
        %v2933 = vrot.slane %v2882, 4
        %v2934 = vsel %vm602, %v2894, %v2933
        %v2936 = vunpack.c.l.s4 1934713408
        %v2937 = vunpack.c.0.s8 %v2936
        %v2938 = vperm.slane %v2932, %v2937
        %v2940 = vunpack.c.l.s4 1934713408
        %v2941 = vunpack.c.0.s8 %v2940
        %v2942 = vperm.slane %v2934, %v2941
        %v2943 = vrot.slane %v2926, 4
        %v2944 = vsel %vm602, %v2943, %v2902
        %v2945 = vrot.slane %v2902, 4
        %v2946 = vsel %vm602, %v2926, %v2945
        %v2947 = vrot.slane %v2930, 4
        %v2948 = vsel %vm602, %v2947, %v2906
        %v2949 = vrot.slane %v2906, 4
        %v2950 = vsel %vm602, %v2930, %v2949
        %v2951 = vrot.slane %v2938, 4
        %v2952 = vsel %vm602, %v2951, %v2914
        %v2953 = vrot.slane %v2914, 4
        %v2954 = vsel %vm602, %v2938, %v2953
        %v2955 = vrot.slane %v2942, 4
        %v2956 = vsel %vm602, %v2955, %v2918
        %v2957 = vrot.slane %v2918, 4
        %v2958 = vsel %vm602, %v2942, %v2957
        %v2959 = vrot.slane %v2448, 4
        %v2960 = vsel %vm602, %v2959, %v2440
        %v2961 = vrot.slane %v2440, 4
        %v2962 = vsel %vm602, %v2448, %v2961
        %v2964 = vunpack.c.l.s4 1983009808
        %v2965 = vunpack.c.0.s8 %v2964
        %v2966 = vperm.slane %v2960, %v2965
        %v2968 = vunpack.c.l.s4 1983009808
        %v2969 = vunpack.c.0.s8 %v2968
        %v2970 = vperm.slane %v2962, %v2969
        %v2971 = vrot.slane %v2452, 4
        %v2972 = vsel %vm602, %v2971, %v2444
        %v2973 = vrot.slane %v2444, 4
        %v2974 = vsel %vm602, %v2452, %v2973
        %v2976 = vunpack.c.l.s4 1983009808
        %v2977 = vunpack.c.0.s8 %v2976
        %v2978 = vperm.slane %v2972, %v2977
        %v2980 = vunpack.c.l.s4 1983009808
        %v2981 = vunpack.c.0.s8 %v2980
        %v2982 = vperm.slane %v2974, %v2981
        %v2983 = vrot.slane %v2464, 4
        %v2984 = vsel %vm602, %v2983, %v2456
        %v2985 = vrot.slane %v2456, 4
        %v2986 = vsel %vm602, %v2464, %v2985
        %v2988 = vunpack.c.l.s4 1983009808
        %v2989 = vunpack.c.0.s8 %v2988
        %v2990 = vperm.slane %v2984, %v2989
        %v2992 = vunpack.c.l.s4 1983009808
        %v2993 = vunpack.c.0.s8 %v2992
        %v2994 = vperm.slane %v2986, %v2993
        %v2995 = vrot.slane %v2468, 4
        %v2996 = vsel %vm602, %v2995, %v2460
        %v2997 = vrot.slane %v2460, 4
        %v2998 = vsel %vm602, %v2468, %v2997
        %v3000 = vunpack.c.l.s4 1983009808
        %v3001 = vunpack.c.0.s8 %v3000
        %v3002 = vperm.slane %v2996, %v3001
        %v3004 = vunpack.c.l.s4 1983009808
        %v3005 = vunpack.c.0.s8 %v3004
        %v3006 = vperm.slane %v2998, %v3005
        %v3007 = vrot.slane %v2978, 4
        %v3008 = vsel %vm602, %v3007, %v2966
        %v3009 = vrot.slane %v2966, 4
        %v3010 = vsel %vm602, %v2978, %v3009
        %v3012 = vunpack.c.l.s4 1934713408
        %v3013 = vunpack.c.0.s8 %v3012
        %v3014 = vperm.slane %v3008, %v3013
        %v3016 = vunpack.c.l.s4 1934713408
        %v3017 = vunpack.c.0.s8 %v3016
        %v3018 = vperm.slane %v3010, %v3017
        %v3019 = vrot.slane %v2982, 4
        %v3020 = vsel %vm602, %v3019, %v2970
        %v3021 = vrot.slane %v2970, 4
        %v3022 = vsel %vm602, %v2982, %v3021
        %v3024 = vunpack.c.l.s4 1934713408
        %v3025 = vunpack.c.0.s8 %v3024
        %v3026 = vperm.slane %v3020, %v3025
        %v3028 = vunpack.c.l.s4 1934713408
        %v3029 = vunpack.c.0.s8 %v3028
        %v3030 = vperm.slane %v3022, %v3029
        %v3031 = vrot.slane %v3002, 4
        %v3032 = vsel %vm602, %v3031, %v2990
        %v3033 = vrot.slane %v2990, 4
        %v3034 = vsel %vm602, %v3002, %v3033
        %v3036 = vunpack.c.l.s4 1934713408
        %v3037 = vunpack.c.0.s8 %v3036
        %v3038 = vperm.slane %v3032, %v3037
        %v3040 = vunpack.c.l.s4 1934713408
        %v3041 = vunpack.c.0.s8 %v3040
        %v3042 = vperm.slane %v3034, %v3041
        %v3043 = vrot.slane %v3006, 4
        %v3044 = vsel %vm602, %v3043, %v2994
        %v3045 = vrot.slane %v2994, 4
        %v3046 = vsel %vm602, %v3006, %v3045
        %v3048 = vunpack.c.l.s4 1934713408
        %v3049 = vunpack.c.0.s8 %v3048
        %v3050 = vperm.slane %v3044, %v3049
        %v3052 = vunpack.c.l.s4 1934713408
        %v3053 = vunpack.c.0.s8 %v3052
        %v3054 = vperm.slane %v3046, %v3053
        %v3055 = vrot.slane %v3038, 4
        %v3056 = vsel %vm602, %v3055, %v3014
        %v3057 = vrot.slane %v3014, 4
        %v3058 = vsel %vm602, %v3038, %v3057
        %v3059 = vrot.slane %v3042, 4
        %v3060 = vsel %vm602, %v3059, %v3018
        %v3061 = vrot.slane %v3018, 4
        %v3062 = vsel %vm602, %v3042, %v3061
        %v3063 = vrot.slane %v3050, 4
        %v3064 = vsel %vm602, %v3063, %v3026
        %v3065 = vrot.slane %v3026, 4
        %v3066 = vsel %vm602, %v3050, %v3065
        %v3067 = vrot.slane %v3054, 4
        %v3068 = vsel %vm602, %v3067, %v3030
        %v3069 = vrot.slane %v3030, 4
        %v3070 = vsel %vm602, %v3054, %v3069
        %v3071 = vrot.slane %v2496, 4
        %v3072 = vsel %vm602, %v3071, %v2488
        %v3073 = vrot.slane %v2488, 4
        %v3074 = vsel %vm602, %v2496, %v3073
        %v3076 = vunpack.c.l.s4 1983009808
        %v3077 = vunpack.c.0.s8 %v3076
        %v3078 = vperm.slane %v3072, %v3077
        %v3080 = vunpack.c.l.s4 1983009808
        %v3081 = vunpack.c.0.s8 %v3080
        %v3082 = vperm.slane %v3074, %v3081
        %v3083 = vrot.slane %v2500, 4
        %v3084 = vsel %vm602, %v3083, %v2492
        %v3085 = vrot.slane %v2492, 4
        %v3086 = vsel %vm602, %v2500, %v3085
        %v3088 = vunpack.c.l.s4 1983009808
        %v3089 = vunpack.c.0.s8 %v3088
        %v3090 = vperm.slane %v3084, %v3089
        %v3092 = vunpack.c.l.s4 1983009808
        %v3093 = vunpack.c.0.s8 %v3092
        %v3094 = vperm.slane %v3086, %v3093
        %v3095 = vrot.slane %v2512, 4
        %v3096 = vsel %vm602, %v3095, %v2504
        %v3097 = vrot.slane %v2504, 4
        %v3098 = vsel %vm602, %v2512, %v3097
        %v3100 = vunpack.c.l.s4 1983009808
        %v3101 = vunpack.c.0.s8 %v3100
        %v3102 = vperm.slane %v3096, %v3101
        %v3104 = vunpack.c.l.s4 1983009808
        %v3105 = vunpack.c.0.s8 %v3104
        %v3106 = vperm.slane %v3098, %v3105
        %v3107 = vrot.slane %v2516, 4
        %v3108 = vsel %vm602, %v3107, %v2508
        %v3109 = vrot.slane %v2508, 4
        %v3110 = vsel %vm602, %v2516, %v3109
        %v3112 = vunpack.c.l.s4 1983009808
        %v3113 = vunpack.c.0.s8 %v3112
        %v3114 = vperm.slane %v3108, %v3113
        %v3116 = vunpack.c.l.s4 1983009808
        %v3117 = vunpack.c.0.s8 %v3116
        %v3118 = vperm.slane %v3110, %v3117
        %v3119 = vrot.slane %v3090, 4
        %v3120 = vsel %vm602, %v3119, %v3078
        %v3121 = vrot.slane %v3078, 4
        %v3122 = vsel %vm602, %v3090, %v3121
        %v3124 = vunpack.c.l.s4 1934713408
        %v3125 = vunpack.c.0.s8 %v3124
        %v3126 = vperm.slane %v3120, %v3125
        %v3128 = vunpack.c.l.s4 1934713408
        %v3129 = vunpack.c.0.s8 %v3128
        %v3130 = vperm.slane %v3122, %v3129
        %v3131 = vrot.slane %v3094, 4
        %v3132 = vsel %vm602, %v3131, %v3082
        %v3133 = vrot.slane %v3082, 4
        %v3134 = vsel %vm602, %v3094, %v3133
        %v3136 = vunpack.c.l.s4 1934713408
        %v3137 = vunpack.c.0.s8 %v3136
        %v3138 = vperm.slane %v3132, %v3137
        %v3140 = vunpack.c.l.s4 1934713408
        %v3141 = vunpack.c.0.s8 %v3140
        %v3142 = vperm.slane %v3134, %v3141
        %v3143 = vrot.slane %v3114, 4
        %v3144 = vsel %vm602, %v3143, %v3102
        %v3145 = vrot.slane %v3102, 4
        %v3146 = vsel %vm602, %v3114, %v3145
        %v3148 = vunpack.c.l.s4 1934713408
        %v3149 = vunpack.c.0.s8 %v3148
        %v3150 = vperm.slane %v3144, %v3149
        %v3152 = vunpack.c.l.s4 1934713408
        %v3153 = vunpack.c.0.s8 %v3152
        %v3154 = vperm.slane %v3146, %v3153
        %v3155 = vrot.slane %v3118, 4
        %v3156 = vsel %vm602, %v3155, %v3106
        %v3157 = vrot.slane %v3106, 4
        %v3158 = vsel %vm602, %v3118, %v3157
        %v3160 = vunpack.c.l.s4 1934713408
        %v3161 = vunpack.c.0.s8 %v3160
        %v3162 = vperm.slane %v3156, %v3161
        %v3164 = vunpack.c.l.s4 1934713408
        %v3165 = vunpack.c.0.s8 %v3164
        %v3166 = vperm.slane %v3158, %v3165
        %v3167 = vrot.slane %v3150, 4
        %v3168 = vsel %vm602, %v3167, %v3126
        %v3169 = vrot.slane %v3126, 4
        %v3170 = vsel %vm602, %v3150, %v3169
        %v3171 = vrot.slane %v3154, 4
        %v3172 = vsel %vm602, %v3171, %v3130
        %v3173 = vrot.slane %v3130, 4
        %v3174 = vsel %vm602, %v3154, %v3173
        %v3175 = vrot.slane %v3162, 4
        %v3176 = vsel %vm602, %v3175, %v3138
        %v3177 = vrot.slane %v3138, 4
        %v3178 = vsel %vm602, %v3162, %v3177
        %v3179 = vrot.slane %v3166, 4
        %v3180 = vsel %vm602, %v3179, %v3142
        %v3181 = vrot.slane %v3142, 4
        %v3182 = vsel %vm602, %v3166, %v3181
        %v3183 = vrot.slane %v2555, 4
        %v3184 = vsel %vm602, %v3183, %v2545
        %v3185 = vrot.slane %v2545, 4
        %v3186 = vsel %vm602, %v2555, %v3185
        %v3188 = vunpack.c.l.s4 1983009808
        %v3189 = vunpack.c.0.s8 %v3188
        %v3190 = vperm.slane %v3184, %v3189
        %v3192 = vunpack.c.l.s4 1983009808
        %v3193 = vunpack.c.0.s8 %v3192
        %v3194 = vperm.slane %v3186, %v3193
        %v3195 = vrot.slane %v2560, 4
        %v3196 = vsel %vm602, %v3195, %v2550
        %v3197 = vrot.slane %v2550, 4
        %v3198 = vsel %vm602, %v2560, %v3197
        %v3200 = vunpack.c.l.s4 1983009808
        %v3201 = vunpack.c.0.s8 %v3200
        %v3202 = vperm.slane %v3196, %v3201
        %v3204 = vunpack.c.l.s4 1983009808
        %v3205 = vunpack.c.0.s8 %v3204
        %v3206 = vperm.slane %v3198, %v3205
        %v3207 = vrot.slane %v2575, 4
        %v3208 = vsel %vm602, %v3207, %v2565
        %v3209 = vrot.slane %v2565, 4
        %v3210 = vsel %vm602, %v2575, %v3209
        %v3212 = vunpack.c.l.s4 1983009808
        %v3213 = vunpack.c.0.s8 %v3212
        %v3214 = vperm.slane %v3208, %v3213
        %v3216 = vunpack.c.l.s4 1983009808
        %v3217 = vunpack.c.0.s8 %v3216
        %v3218 = vperm.slane %v3210, %v3217
        %v3219 = vrot.slane %v2580, 4
        %v3220 = vsel %vm602, %v3219, %v2570
        %v3221 = vrot.slane %v2570, 4
        %v3222 = vsel %vm602, %v2580, %v3221
        %v3224 = vunpack.c.l.s4 1983009808
        %v3225 = vunpack.c.0.s8 %v3224
        %v3226 = vperm.slane %v3220, %v3225
        %v3228 = vunpack.c.l.s4 1983009808
        %v3229 = vunpack.c.0.s8 %v3228
        %v3230 = vperm.slane %v3222, %v3229
        %v3231 = vrot.slane %v3202, 4
        %v3232 = vsel %vm602, %v3231, %v3190
        %v3233 = vrot.slane %v3190, 4
        %v3234 = vsel %vm602, %v3202, %v3233
        %v3236 = vunpack.c.l.s4 1934713408
        %v3237 = vunpack.c.0.s8 %v3236
        %v3238 = vperm.slane %v3232, %v3237
        %v3240 = vunpack.c.l.s4 1934713408
        %v3241 = vunpack.c.0.s8 %v3240
        %v3242 = vperm.slane %v3234, %v3241
        %v3243 = vrot.slane %v3206, 4
        %v3244 = vsel %vm602, %v3243, %v3194
        %v3245 = vrot.slane %v3194, 4
        %v3246 = vsel %vm602, %v3206, %v3245
        %v3248 = vunpack.c.l.s4 1934713408
        %v3249 = vunpack.c.0.s8 %v3248
        %v3250 = vperm.slane %v3244, %v3249
        %v3252 = vunpack.c.l.s4 1934713408
        %v3253 = vunpack.c.0.s8 %v3252
        %v3254 = vperm.slane %v3246, %v3253
        %v3255 = vrot.slane %v3226, 4
        %v3256 = vsel %vm602, %v3255, %v3214
        %v3257 = vrot.slane %v3214, 4
        %v3258 = vsel %vm602, %v3226, %v3257
        %v3260 = vunpack.c.l.s4 1934713408
        %v3261 = vunpack.c.0.s8 %v3260
        %v3262 = vperm.slane %v3256, %v3261
        %v3264 = vunpack.c.l.s4 1934713408
        %v3265 = vunpack.c.0.s8 %v3264
        %v3266 = vperm.slane %v3258, %v3265
        %v3267 = vrot.slane %v3230, 4
        %v3268 = vsel %vm602, %v3267, %v3218
        %v3269 = vrot.slane %v3218, 4
        %v3270 = vsel %vm602, %v3230, %v3269
        %v3272 = vunpack.c.l.s4 1934713408
        %v3273 = vunpack.c.0.s8 %v3272
        %v3274 = vperm.slane %v3268, %v3273
        %v3276 = vunpack.c.l.s4 1934713408
        %v3277 = vunpack.c.0.s8 %v3276
        %v3278 = vperm.slane %v3270, %v3277
        %v3279 = vrot.slane %v3262, 4
        %v3280 = vsel %vm602, %v3279, %v3238
        %v3281 = vrot.slane %v3238, 4
        %v3282 = vsel %vm602, %v3262, %v3281
        %v3283 = vrot.slane %v3266, 4
        %v3284 = vsel %vm602, %v3283, %v3242
        %v3285 = vrot.slane %v3242, 4
        %v3286 = vsel %vm602, %v3266, %v3285
        %v3287 = vrot.slane %v3274, 4
        %v3288 = vsel %vm602, %v3287, %v3250
        %v3289 = vrot.slane %v3250, 4
        %v3290 = vsel %vm602, %v3274, %v3289
        %v3291 = vrot.slane %v3278, 4
        %v3292 = vsel %vm602, %v3291, %v3254
        %v3293 = vrot.slane %v3254, 4
        %v3294 = vsel %vm602, %v3278, %v3293
        %v3295 = vrot.slane %v2608, 4
        %v3296 = vsel %vm602, %v3295, %v2600
        %v3297 = vrot.slane %v2600, 4
        %v3298 = vsel %vm602, %v2608, %v3297
        %v3300 = vunpack.c.l.s4 1983009808
        %v3301 = vunpack.c.0.s8 %v3300
        %v3302 = vperm.slane %v3296, %v3301
        %v3304 = vunpack.c.l.s4 1983009808
        %v3305 = vunpack.c.0.s8 %v3304
        %v3306 = vperm.slane %v3298, %v3305
        %v3307 = vrot.slane %v2612, 4
        %v3308 = vsel %vm602, %v3307, %v2604
        %v3309 = vrot.slane %v2604, 4
        %v3310 = vsel %vm602, %v2612, %v3309
        %v3312 = vunpack.c.l.s4 1983009808
        %v3313 = vunpack.c.0.s8 %v3312
        %v3314 = vperm.slane %v3308, %v3313
        %v3316 = vunpack.c.l.s4 1983009808
        %v3317 = vunpack.c.0.s8 %v3316
        %v3318 = vperm.slane %v3310, %v3317
        %v3319 = vrot.slane %v2624, 4
        %v3320 = vsel %vm602, %v3319, %v2616
        %v3321 = vrot.slane %v2616, 4
        %v3322 = vsel %vm602, %v2624, %v3321
        %v3324 = vunpack.c.l.s4 1983009808
        %v3325 = vunpack.c.0.s8 %v3324
        %v3326 = vperm.slane %v3320, %v3325
        %v3328 = vunpack.c.l.s4 1983009808
        %v3329 = vunpack.c.0.s8 %v3328
        %v3330 = vperm.slane %v3322, %v3329
        %v3331 = vrot.slane %v2628, 4
        %v3332 = vsel %vm602, %v3331, %v2620
        %v3333 = vrot.slane %v2620, 4
        %v3334 = vsel %vm602, %v2628, %v3333
        %v3336 = vunpack.c.l.s4 1983009808
        %v3337 = vunpack.c.0.s8 %v3336
        %v3338 = vperm.slane %v3332, %v3337
        %v3340 = vunpack.c.l.s4 1983009808
        %v3341 = vunpack.c.0.s8 %v3340
        %v3342 = vperm.slane %v3334, %v3341
        %v3343 = vrot.slane %v3314, 4
        %v3344 = vsel %vm602, %v3343, %v3302
        %v3345 = vrot.slane %v3302, 4
        %v3346 = vsel %vm602, %v3314, %v3345
        %v3348 = vunpack.c.l.s4 1934713408
        %v3349 = vunpack.c.0.s8 %v3348
        %v3350 = vperm.slane %v3344, %v3349
        %v3352 = vunpack.c.l.s4 1934713408
        %v3353 = vunpack.c.0.s8 %v3352
        %v3354 = vperm.slane %v3346, %v3353
        %v3355 = vrot.slane %v3318, 4
        %v3356 = vsel %vm602, %v3355, %v3306
        %v3357 = vrot.slane %v3306, 4
        %v3358 = vsel %vm602, %v3318, %v3357
        %v3360 = vunpack.c.l.s4 1934713408
        %v3361 = vunpack.c.0.s8 %v3360
        %v3362 = vperm.slane %v3356, %v3361
        %v3364 = vunpack.c.l.s4 1934713408
        %v3365 = vunpack.c.0.s8 %v3364
        %v3366 = vperm.slane %v3358, %v3365
        %v3367 = vrot.slane %v3338, 4
        %v3368 = vsel %vm602, %v3367, %v3326
        %v3369 = vrot.slane %v3326, 4
        %v3370 = vsel %vm602, %v3338, %v3369
        %v3372 = vunpack.c.l.s4 1934713408
        %v3373 = vunpack.c.0.s8 %v3372
        %v3374 = vperm.slane %v3368, %v3373
        %v3376 = vunpack.c.l.s4 1934713408
        %v3377 = vunpack.c.0.s8 %v3376
        %v3378 = vperm.slane %v3370, %v3377
        %v3379 = vrot.slane %v3342, 4
        %v3380 = vsel %vm602, %v3379, %v3330
        %v3381 = vrot.slane %v3330, 4
        %v3382 = vsel %vm602, %v3342, %v3381
        %v3384 = vunpack.c.l.s4 1934713408
        %v3385 = vunpack.c.0.s8 %v3384
        %v3386 = vperm.slane %v3380, %v3385
        %v3388 = vunpack.c.l.s4 1934713408
        %v3389 = vunpack.c.0.s8 %v3388
        %v3390 = vperm.slane %v3382, %v3389
        %v3391 = vrot.slane %v3374, 4
        %v3392 = vsel %vm602, %v3391, %v3350
        %v3393 = vrot.slane %v3350, 4
        %v3394 = vsel %vm602, %v3374, %v3393
        %v3395 = vrot.slane %v3378, 4
        %v3396 = vsel %vm602, %v3395, %v3354
        %v3397 = vrot.slane %v3354, 4
        %v3398 = vsel %vm602, %v3378, %v3397
        %v3399 = vrot.slane %v3386, 4
        %v3400 = vsel %vm602, %v3399, %v3362
        %v3401 = vrot.slane %v3362, 4
        %v3402 = vsel %vm602, %v3386, %v3401
        %v3403 = vrot.slane %v3390, 4
        %v3404 = vsel %vm602, %v3403, %v3366
        %v3405 = vrot.slane %v3366, 4
        %v3406 = vsel %vm602, %v3390, %v3405
        %v3407 = vrot.slane %v2656, 4
        %v3408 = vsel %vm602, %v3407, %v2648
        %v3409 = vrot.slane %v2648, 4
        %v3410 = vsel %vm602, %v2656, %v3409
        %v3412 = vunpack.c.l.s4 1983009808
        %v3413 = vunpack.c.0.s8 %v3412
        %v3414 = vperm.slane %v3408, %v3413
        %v3416 = vunpack.c.l.s4 1983009808
        %v3417 = vunpack.c.0.s8 %v3416
        %v3418 = vperm.slane %v3410, %v3417
        %v3419 = vrot.slane %v2660, 4
        %v3420 = vsel %vm602, %v3419, %v2652
        %v3421 = vrot.slane %v2652, 4
        %v3422 = vsel %vm602, %v2660, %v3421
        %v3424 = vunpack.c.l.s4 1983009808
        %v3425 = vunpack.c.0.s8 %v3424
        %v3426 = vperm.slane %v3420, %v3425
        %v3428 = vunpack.c.l.s4 1983009808
        %v3429 = vunpack.c.0.s8 %v3428
        %v3430 = vperm.slane %v3422, %v3429
        %v3431 = vrot.slane %v2672, 4
        %v3432 = vsel %vm602, %v3431, %v2664
        %v3433 = vrot.slane %v2664, 4
        %v3434 = vsel %vm602, %v2672, %v3433
        %v3436 = vunpack.c.l.s4 1983009808
        %v3437 = vunpack.c.0.s8 %v3436
        %v3438 = vperm.slane %v3432, %v3437
        %v3440 = vunpack.c.l.s4 1983009808
        %v3441 = vunpack.c.0.s8 %v3440
        %v3442 = vperm.slane %v3434, %v3441
        %v3443 = vrot.slane %v2676, 4
        %v3444 = vsel %vm602, %v3443, %v2668
        %v3445 = vrot.slane %v2668, 4
        %v3446 = vsel %vm602, %v2676, %v3445
        %v3448 = vunpack.c.l.s4 1983009808
        %v3449 = vunpack.c.0.s8 %v3448
        %v3450 = vperm.slane %v3444, %v3449
        %v3452 = vunpack.c.l.s4 1983009808
        %v3453 = vunpack.c.0.s8 %v3452
        %v3454 = vperm.slane %v3446, %v3453
        %v3455 = vrot.slane %v3426, 4
        %v3456 = vsel %vm602, %v3455, %v3414
        %v3457 = vrot.slane %v3414, 4
        %v3458 = vsel %vm602, %v3426, %v3457
        %v3460 = vunpack.c.l.s4 1934713408
        %v3461 = vunpack.c.0.s8 %v3460
        %v3462 = vperm.slane %v3456, %v3461
        %v3464 = vunpack.c.l.s4 1934713408
        %v3465 = vunpack.c.0.s8 %v3464
        %v3466 = vperm.slane %v3458, %v3465
        %v3467 = vrot.slane %v3430, 4
        %v3468 = vsel %vm602, %v3467, %v3418
        %v3469 = vrot.slane %v3418, 4
        %v3470 = vsel %vm602, %v3430, %v3469
        %v3472 = vunpack.c.l.s4 1934713408
        %v3473 = vunpack.c.0.s8 %v3472
        %v3474 = vperm.slane %v3468, %v3473
        %v3476 = vunpack.c.l.s4 1934713408
        %v3477 = vunpack.c.0.s8 %v3476
        %v3478 = vperm.slane %v3470, %v3477
        %v3479 = vrot.slane %v3450, 4
        %v3480 = vsel %vm602, %v3479, %v3438
        %v3481 = vrot.slane %v3438, 4
        %v3482 = vsel %vm602, %v3450, %v3481
        %v3484 = vunpack.c.l.s4 1934713408
        %v3485 = vunpack.c.0.s8 %v3484
        %v3486 = vperm.slane %v3480, %v3485
        %v3488 = vunpack.c.l.s4 1934713408
        %v3489 = vunpack.c.0.s8 %v3488
        %v3490 = vperm.slane %v3482, %v3489
        %v3491 = vrot.slane %v3454, 4
        %v3492 = vsel %vm602, %v3491, %v3442
        %v3493 = vrot.slane %v3442, 4
        %v3494 = vsel %vm602, %v3454, %v3493
        %v3496 = vunpack.c.l.s4 1934713408
        %v3497 = vunpack.c.0.s8 %v3496
        %v3498 = vperm.slane %v3492, %v3497
        %v3500 = vunpack.c.l.s4 1934713408
        %v3501 = vunpack.c.0.s8 %v3500
        %v3502 = vperm.slane %v3494, %v3501
        %v3503 = vrot.slane %v3486, 4
        %v3504 = vsel %vm602, %v3503, %v3462
        %v3505 = vrot.slane %v3462, 4
        %v3506 = vsel %vm602, %v3486, %v3505
        %v3507 = vrot.slane %v3490, 4
        %v3508 = vsel %vm602, %v3507, %v3466
        %v3509 = vrot.slane %v3466, 4
        %v3510 = vsel %vm602, %v3490, %v3509
        %v3511 = vrot.slane %v3498, 4
        %v3512 = vsel %vm602, %v3511, %v3474
        %v3513 = vrot.slane %v3474, 4
        %v3514 = vsel %vm602, %v3498, %v3513
        %v3515 = vrot.slane %v3502, 4
        %v3516 = vsel %vm602, %v3515, %v3478
        %v3517 = vrot.slane %v3478, 4
        %v3518 = vsel %vm602, %v3502, %v3517
        %v3519 = vrot.slane %v2707, 4
        %v3520 = vsel %vm602, %v3519, %v2697
        %v3521 = vrot.slane %v2697, 4
        %v3522 = vsel %vm602, %v2707, %v3521
        %v3524 = vunpack.c.l.s4 1983009808
        %v3525 = vunpack.c.0.s8 %v3524
        %v3526 = vperm.slane %v3520, %v3525
        %v3528 = vunpack.c.l.s4 1983009808
        %v3529 = vunpack.c.0.s8 %v3528
        %v3530 = vperm.slane %v3522, %v3529
        %v3531 = vrot.slane %v2712, 4
        %v3532 = vsel %vm602, %v3531, %v2702
        %v3533 = vrot.slane %v2702, 4
        %v3534 = vsel %vm602, %v2712, %v3533
        %v3536 = vunpack.c.l.s4 1983009808
        %v3537 = vunpack.c.0.s8 %v3536
        %v3538 = vperm.slane %v3532, %v3537
        %v3540 = vunpack.c.l.s4 1983009808
        %v3541 = vunpack.c.0.s8 %v3540
        %v3542 = vperm.slane %v3534, %v3541
        %v3543 = vrot.slane %v2727, 4
        %v3544 = vsel %vm602, %v3543, %v2717
        %v3545 = vrot.slane %v2717, 4
        %v3546 = vsel %vm602, %v2727, %v3545
        %v3548 = vunpack.c.l.s4 1983009808
        %v3549 = vunpack.c.0.s8 %v3548
        %v3550 = vperm.slane %v3544, %v3549
        %v3552 = vunpack.c.l.s4 1983009808
        %v3553 = vunpack.c.0.s8 %v3552
        %v3554 = vperm.slane %v3546, %v3553
        %v3555 = vrot.slane %v2732, 4
        %v3556 = vsel %vm602, %v3555, %v2722
        %v3557 = vrot.slane %v2722, 4
        %v3558 = vsel %vm602, %v2732, %v3557
        %v3560 = vunpack.c.l.s4 1983009808
        %v3561 = vunpack.c.0.s8 %v3560
        %v3562 = vperm.slane %v3556, %v3561
        %v3564 = vunpack.c.l.s4 1983009808
        %v3565 = vunpack.c.0.s8 %v3564
        %v3566 = vperm.slane %v3558, %v3565
        %v3567 = vrot.slane %v3538, 4
        %v3568 = vsel %vm602, %v3567, %v3526
        %v3569 = vrot.slane %v3526, 4
        %v3570 = vsel %vm602, %v3538, %v3569
        %v3572 = vunpack.c.l.s4 1934713408
        %v3573 = vunpack.c.0.s8 %v3572
        %v3574 = vperm.slane %v3568, %v3573
        %v3576 = vunpack.c.l.s4 1934713408
        %v3577 = vunpack.c.0.s8 %v3576
        %v3578 = vperm.slane %v3570, %v3577
        %v3579 = vrot.slane %v3542, 4
        %v3580 = vsel %vm602, %v3579, %v3530
        %v3581 = vrot.slane %v3530, 4
        %v3582 = vsel %vm602, %v3542, %v3581
        %v3584 = vunpack.c.l.s4 1934713408
        %v3585 = vunpack.c.0.s8 %v3584
        %v3586 = vperm.slane %v3580, %v3585
        %v3588 = vunpack.c.l.s4 1934713408
        %v3589 = vunpack.c.0.s8 %v3588
        %v3590 = vperm.slane %v3582, %v3589
        %v3591 = vrot.slane %v3562, 4
        %v3592 = vsel %vm602, %v3591, %v3550
        %v3593 = vrot.slane %v3550, 4
        %v3594 = vsel %vm602, %v3562, %v3593
        %v3596 = vunpack.c.l.s4 1934713408
        %v3597 = vunpack.c.0.s8 %v3596
        %v3598 = vperm.slane %v3592, %v3597
        %v3600 = vunpack.c.l.s4 1934713408
        %v3601 = vunpack.c.0.s8 %v3600
        %v3602 = vperm.slane %v3594, %v3601
        %v3603 = vrot.slane %v3566, 4
        %v3604 = vsel %vm602, %v3603, %v3554
        %v3605 = vrot.slane %v3554, 4
        %v3606 = vsel %vm602, %v3566, %v3605
        %v3608 = vunpack.c.l.s4 1934713408
        %v3609 = vunpack.c.0.s8 %v3608
        %v3610 = vperm.slane %v3604, %v3609
        %v3612 = vunpack.c.l.s4 1934713408
        %v3613 = vunpack.c.0.s8 %v3612
        %v3614 = vperm.slane %v3606, %v3613
        %v3615 = vrot.slane %v3598, 4
        %v3616 = vsel %vm602, %v3615, %v3574
        %v3617 = vrot.slane %v3574, 4
        %v3618 = vsel %vm602, %v3598, %v3617
        %v3619 = vrot.slane %v3602, 4
        %v3620 = vsel %vm602, %v3619, %v3578
        %v3621 = vrot.slane %v3578, 4
        %v3622 = vsel %vm602, %v3602, %v3621
        %v3623 = vrot.slane %v3610, 4
        %v3624 = vsel %vm602, %v3623, %v3586
        %v3625 = vrot.slane %v3586, 4
        %v3626 = vsel %vm602, %v3610, %v3625
        %v3627 = vrot.slane %v3614, 4
        %v3628 = vsel %vm602, %v3627, %v3590
        %v3629 = vrot.slane %v3590, 4
        %v3630 = vsel %vm602, %v3614, %v3629
        %v3631 = vrot.slane %v2760, 4
        %v3632 = vsel %vm602, %v3631, %v2752
        %v3633 = vrot.slane %v2752, 4
        %v3634 = vsel %vm602, %v2760, %v3633
        %v3636 = vunpack.c.l.s4 1983009808
        %v3637 = vunpack.c.0.s8 %v3636
        %v3638 = vperm.slane %v3632, %v3637
        %v3640 = vunpack.c.l.s4 1983009808
        %v3641 = vunpack.c.0.s8 %v3640
        %v3642 = vperm.slane %v3634, %v3641
        %v3643 = vrot.slane %v2764, 4
        %v3644 = vsel %vm602, %v3643, %v2756
        %v3645 = vrot.slane %v2756, 4
        %v3646 = vsel %vm602, %v2764, %v3645
        %v3648 = vunpack.c.l.s4 1983009808
        %v3649 = vunpack.c.0.s8 %v3648
        %v3650 = vperm.slane %v3644, %v3649
        %v3652 = vunpack.c.l.s4 1983009808
        %v3653 = vunpack.c.0.s8 %v3652
        %v3654 = vperm.slane %v3646, %v3653
        %v3655 = vrot.slane %v2776, 4
        %v3656 = vsel %vm602, %v3655, %v2768
        %v3657 = vrot.slane %v2768, 4
        %v3658 = vsel %vm602, %v2776, %v3657
        %v3660 = vunpack.c.l.s4 1983009808
        %v3661 = vunpack.c.0.s8 %v3660
        %v3662 = vperm.slane %v3656, %v3661
        %v3664 = vunpack.c.l.s4 1983009808
        %v3665 = vunpack.c.0.s8 %v3664
        %v3666 = vperm.slane %v3658, %v3665
        %v3667 = vrot.slane %v2780, 4
        %v3668 = vsel %vm602, %v3667, %v2772
        %v3669 = vrot.slane %v2772, 4
        %v3670 = vsel %vm602, %v2780, %v3669
        %v3672 = vunpack.c.l.s4 1983009808
        %v3673 = vunpack.c.0.s8 %v3672
        %v3674 = vperm.slane %v3668, %v3673
        %v3676 = vunpack.c.l.s4 1983009808
        %v3677 = vunpack.c.0.s8 %v3676
        %v3678 = vperm.slane %v3670, %v3677
        %v3679 = vrot.slane %v3650, 4
        %v3680 = vsel %vm602, %v3679, %v3638
        %v3681 = vrot.slane %v3638, 4
        %v3682 = vsel %vm602, %v3650, %v3681
        %v3684 = vunpack.c.l.s4 1934713408
        %v3685 = vunpack.c.0.s8 %v3684
        %v3686 = vperm.slane %v3680, %v3685
        %v3688 = vunpack.c.l.s4 1934713408
        %v3689 = vunpack.c.0.s8 %v3688
        %v3690 = vperm.slane %v3682, %v3689
        %v3691 = vrot.slane %v3654, 4
        %v3692 = vsel %vm602, %v3691, %v3642
        %v3693 = vrot.slane %v3642, 4
        %v3694 = vsel %vm602, %v3654, %v3693
        %v3696 = vunpack.c.l.s4 1934713408
        %v3697 = vunpack.c.0.s8 %v3696
        %v3698 = vperm.slane %v3692, %v3697
        %v3700 = vunpack.c.l.s4 1934713408
        %v3701 = vunpack.c.0.s8 %v3700
        %v3702 = vperm.slane %v3694, %v3701
        %v3703 = vrot.slane %v3674, 4
        %v3704 = vsel %vm602, %v3703, %v3662
        %v3705 = vrot.slane %v3662, 4
        %v3706 = vsel %vm602, %v3674, %v3705
        %v3708 = vunpack.c.l.s4 1934713408
        %v3709 = vunpack.c.0.s8 %v3708
        %v3710 = vperm.slane %v3704, %v3709
        %v3712 = vunpack.c.l.s4 1934713408
        %v3713 = vunpack.c.0.s8 %v3712
        %v3714 = vperm.slane %v3706, %v3713
        %v3715 = vrot.slane %v3678, 4
        %v3716 = vsel %vm602, %v3715, %v3666
        %v3717 = vrot.slane %v3666, 4
        %v3718 = vsel %vm602, %v3678, %v3717
        %v3720 = vunpack.c.l.s4 1934713408
        %v3721 = vunpack.c.0.s8 %v3720
        %v3722 = vperm.slane %v3716, %v3721
        %v3724 = vunpack.c.l.s4 1934713408
        %v3725 = vunpack.c.0.s8 %v3724
        %v3726 = vperm.slane %v3718, %v3725
        %v3727 = vrot.slane %v3710, 4
        %v3728 = vsel %vm602, %v3727, %v3686
        %v3729 = vrot.slane %v3686, 4
        %v3730 = vsel %vm602, %v3710, %v3729
        %v3731 = vrot.slane %v3714, 4
        %v3732 = vsel %vm602, %v3731, %v3690
        %v3733 = vrot.slane %v3690, 4
        %v3734 = vsel %vm602, %v3714, %v3733
        %v3735 = vrot.slane %v3722, 4
        %v3736 = vsel %vm602, %v3735, %v3698
        %v3737 = vrot.slane %v3698, 4
        %v3738 = vsel %vm602, %v3722, %v3737
        %v3739 = vrot.slane %v3726, 4
        %v3740 = vsel %vm602, %v3739, %v3702
        %v3741 = vrot.slane %v3702, 4
        %v3742 = vsel %vm602, %v3726, %v3741
        %v3743 = vrot.slane %v2808, 4
        %v3744 = vsel %vm602, %v3743, %v2800
        %v3745 = vrot.slane %v2800, 4
        %v3746 = vsel %vm602, %v2808, %v3745
        %v3748 = vunpack.c.l.s4 1983009808
        %v3749 = vunpack.c.0.s8 %v3748
        %v3750 = vperm.slane %v3744, %v3749
        %v3752 = vunpack.c.l.s4 1983009808
        %v3753 = vunpack.c.0.s8 %v3752
        %v3754 = vperm.slane %v3746, %v3753
        %v3755 = vrot.slane %v2812, 4
        %v3756 = vsel %vm602, %v3755, %v2804
        %v3757 = vrot.slane %v2804, 4
        %v3758 = vsel %vm602, %v2812, %v3757
        %v3760 = vunpack.c.l.s4 1983009808
        %v3761 = vunpack.c.0.s8 %v3760
        %v3762 = vperm.slane %v3756, %v3761
        %v3764 = vunpack.c.l.s4 1983009808
        %v3765 = vunpack.c.0.s8 %v3764
        %v3766 = vperm.slane %v3758, %v3765
        %v3767 = vrot.slane %v2824, 4
        %v3768 = vsel %vm602, %v3767, %v2816
        %v3769 = vrot.slane %v2816, 4
        %v3770 = vsel %vm602, %v2824, %v3769
        %v3772 = vunpack.c.l.s4 1983009808
        %v3773 = vunpack.c.0.s8 %v3772
        %v3774 = vperm.slane %v3768, %v3773
        %v3776 = vunpack.c.l.s4 1983009808
        %v3777 = vunpack.c.0.s8 %v3776
        %v3778 = vperm.slane %v3770, %v3777
        %v3779 = vrot.slane %v2828, 4
        %v3780 = vsel %vm602, %v3779, %v2820
        %v3781 = vrot.slane %v2820, 4
        %v3782 = vsel %vm602, %v2828, %v3781
        %v3784 = vunpack.c.l.s4 1983009808
        %v3785 = vunpack.c.0.s8 %v3784
        %v3786 = vperm.slane %v3780, %v3785
        %v3788 = vunpack.c.l.s4 1983009808
        %v3789 = vunpack.c.0.s8 %v3788
        %v3790 = vperm.slane %v3782, %v3789
        %v3791 = vrot.slane %v3762, 4
        %v3792 = vsel %vm602, %v3791, %v3750
        %v3793 = vrot.slane %v3750, 4
        %v3794 = vsel %vm602, %v3762, %v3793
        %v3796 = vunpack.c.l.s4 1934713408
        %v3797 = vunpack.c.0.s8 %v3796
        %v3798 = vperm.slane %v3792, %v3797
        %v3800 = vunpack.c.l.s4 1934713408
        %v3801 = vunpack.c.0.s8 %v3800
        %v3802 = vperm.slane %v3794, %v3801
        %v3803 = vrot.slane %v3766, 4
        %v3804 = vsel %vm602, %v3803, %v3754
        %v3805 = vrot.slane %v3754, 4
        %v3806 = vsel %vm602, %v3766, %v3805
        %v3808 = vunpack.c.l.s4 1934713408
        %v3809 = vunpack.c.0.s8 %v3808
        %v3810 = vperm.slane %v3804, %v3809
        %v3812 = vunpack.c.l.s4 1934713408
        %v3813 = vunpack.c.0.s8 %v3812
        %v3814 = vperm.slane %v3806, %v3813
        %v3815 = vrot.slane %v3786, 4
        %v3816 = vsel %vm602, %v3815, %v3774
        %v3817 = vrot.slane %v3774, 4
        %v3818 = vsel %vm602, %v3786, %v3817
        %v3820 = vunpack.c.l.s4 1934713408
        %v3821 = vunpack.c.0.s8 %v3820
        %v3822 = vperm.slane %v3816, %v3821
        %v3824 = vunpack.c.l.s4 1934713408
        %v3825 = vunpack.c.0.s8 %v3824
        %v3826 = vperm.slane %v3818, %v3825
        %v3827 = vrot.slane %v3790, 4
        %v3828 = vsel %vm602, %v3827, %v3778
        %v3829 = vrot.slane %v3778, 4
        %v3830 = vsel %vm602, %v3790, %v3829
        %v3832 = vunpack.c.l.s4 1934713408
        %v3833 = vunpack.c.0.s8 %v3832
        %v3834 = vperm.slane %v3828, %v3833
        %v3836 = vunpack.c.l.s4 1934713408
        %v3837 = vunpack.c.0.s8 %v3836
        %v3838 = vperm.slane %v3830, %v3837
        %v3839 = vrot.slane %v3822, 4
        %v3840 = vsel %vm602, %v3839, %v3798
        %v3841 = vrot.slane %v3798, 4
        %v3842 = vsel %vm602, %v3822, %v3841
        %v3843 = vrot.slane %v3826, 4
        %v3844 = vsel %vm602, %v3843, %v3802
        %v3845 = vrot.slane %v3802, 4
        %v3846 = vsel %vm602, %v3826, %v3845
        %v3847 = vrot.slane %v3834, 4
        %v3848 = vsel %vm602, %v3847, %v3810
        %v3849 = vrot.slane %v3810, 4
        %v3850 = vsel %vm602, %v3834, %v3849
        %v3851 = vrot.slane %v3838, 4
        %v3852 = vsel %vm602, %v3851, %v3814
        %v3853 = vrot.slane %v3814, 4
        %v3854 = vsel %vm602, %v3838, %v3853
        %v3855 = vrot.slane %v2406, 4
        %v3856 = vsel %vm602, %v3855, %v2400
        %v3857 = vrot.slane %v2400, 4
        %v3858 = vsel %vm602, %v2406, %v3857
        %v3860 = vunpack.c.l.s4 1983009808
        %v3861 = vunpack.c.0.s8 %v3860
        %v3862 = vperm.slane %v3856, %v3861
        %v3864 = vunpack.c.l.s4 1983009808
        %v3865 = vunpack.c.0.s8 %v3864
        %v3866 = vperm.slane %v3858, %v3865
        %v3867 = vrot.slane %v2409, 4
        %v3868 = vsel %vm602, %v3867, %v2403
        %v3869 = vrot.slane %v2403, 4
        %v3870 = vsel %vm602, %v2409, %v3869
        %v3872 = vunpack.c.l.s4 1983009808
        %v3873 = vunpack.c.0.s8 %v3872
        %v3874 = vperm.slane %v3868, %v3873
        %v3876 = vunpack.c.l.s4 1983009808
        %v3877 = vunpack.c.0.s8 %v3876
        %v3878 = vperm.slane %v3870, %v3877
        %v3879 = vrot.slane %v2418, 4
        %v3880 = vsel %vm602, %v3879, %v2412
        %v3881 = vrot.slane %v2412, 4
        %v3882 = vsel %vm602, %v2418, %v3881
        %v3884 = vunpack.c.l.s4 1983009808
        %v3885 = vunpack.c.0.s8 %v3884
        %v3886 = vperm.slane %v3880, %v3885
        %v3888 = vunpack.c.l.s4 1983009808
        %v3889 = vunpack.c.0.s8 %v3888
        %v3890 = vperm.slane %v3882, %v3889
        %v3891 = vrot.slane %v2421, 4
        %v3892 = vsel %vm602, %v3891, %v2415
        %v3893 = vrot.slane %v2415, 4
        %v3894 = vsel %vm602, %v2421, %v3893
        %v3896 = vunpack.c.l.s4 1983009808
        %v3897 = vunpack.c.0.s8 %v3896
        %v3898 = vperm.slane %v3892, %v3897
        %v3900 = vunpack.c.l.s4 1983009808
        %v3901 = vunpack.c.0.s8 %v3900
        %v3902 = vperm.slane %v3894, %v3901
        %v3903 = vrot.slane %v3874, 4
        %v3904 = vsel %vm602, %v3903, %v3862
        %v3905 = vrot.slane %v3862, 4
        %v3906 = vsel %vm602, %v3874, %v3905
        %v3908 = vunpack.c.l.s4 1934713408
        %v3909 = vunpack.c.0.s8 %v3908
        %v3910 = vperm.slane %v3904, %v3909
        %v3912 = vunpack.c.l.s4 1934713408
        %v3913 = vunpack.c.0.s8 %v3912
        %v3914 = vperm.slane %v3906, %v3913
        %v3915 = vrot.slane %v3878, 4
        %v3916 = vsel %vm602, %v3915, %v3866
        %v3917 = vrot.slane %v3866, 4
        %v3918 = vsel %vm602, %v3878, %v3917
        %v3920 = vunpack.c.l.s4 1934713408
        %v3921 = vunpack.c.0.s8 %v3920
        %v3922 = vperm.slane %v3916, %v3921
        %v3924 = vunpack.c.l.s4 1934713408
        %v3925 = vunpack.c.0.s8 %v3924
        %v3926 = vperm.slane %v3918, %v3925
        %v3927 = vrot.slane %v3898, 4
        %v3928 = vsel %vm602, %v3927, %v3886
        %v3929 = vrot.slane %v3886, 4
        %v3930 = vsel %vm602, %v3898, %v3929
        %v3932 = vunpack.c.l.s4 1934713408
        %v3933 = vunpack.c.0.s8 %v3932
        %v3934 = vperm.slane %v3928, %v3933
        %v3936 = vunpack.c.l.s4 1934713408
        %v3937 = vunpack.c.0.s8 %v3936
        %v3938 = vperm.slane %v3930, %v3937
        %v3939 = vrot.slane %v3902, 4
        %v3940 = vsel %vm602, %v3939, %v3890
        %v3941 = vrot.slane %v3890, 4
        %v3942 = vsel %vm602, %v3902, %v3941
        %v3944 = vunpack.c.l.s4 1934713408
        %v3945 = vunpack.c.0.s8 %v3944
        %v3946 = vperm.slane %v3940, %v3945
        %v3948 = vunpack.c.l.s4 1934713408
        %v3949 = vunpack.c.0.s8 %v3948
        %v3950 = vperm.slane %v3942, %v3949
        %v3951 = vrot.slane %v3934, 4
        %v3952 = vsel %vm602, %v3951, %v3910
        %v3953 = vrot.slane %v3910, 4
        %v3954 = vsel %vm602, %v3934, %v3953
        %v3955 = vrot.slane %v3938, 4
        %v3956 = vsel %vm602, %v3955, %v3914
        %v3957 = vrot.slane %v3914, 4
        %v3958 = vsel %vm602, %v3938, %v3957
        %v3959 = vrot.slane %v3946, 4
        %v3960 = vsel %vm602, %v3959, %v3922
        %v3961 = vrot.slane %v3922, 4
        %v3962 = vsel %vm602, %v3946, %v3961
        %v3963 = vrot.slane %v3950, 4
        %v3964 = vsel %vm602, %v3963, %v3926
        %v3965 = vrot.slane %v3926, 4
        %v3966 = vsel %vm602, %v3950, %v3965
        %v3967 = vrot.slane %v2450, 4
        %v3968 = vsel %vm602, %v3967, %v2442
        %v3969 = vrot.slane %v2442, 4
        %v3970 = vsel %vm602, %v2450, %v3969
        %v3972 = vunpack.c.l.s4 1983009808
        %v3973 = vunpack.c.0.s8 %v3972
        %v3974 = vperm.slane %v3968, %v3973
        %v3976 = vunpack.c.l.s4 1983009808
        %v3977 = vunpack.c.0.s8 %v3976
        %v3978 = vperm.slane %v3970, %v3977
        %v3979 = vrot.slane %v2454, 4
        %v3980 = vsel %vm602, %v3979, %v2446
        %v3981 = vrot.slane %v2446, 4
        %v3982 = vsel %vm602, %v2454, %v3981
        %v3984 = vunpack.c.l.s4 1983009808
        %v3985 = vunpack.c.0.s8 %v3984
        %v3986 = vperm.slane %v3980, %v3985
        %v3988 = vunpack.c.l.s4 1983009808
        %v3989 = vunpack.c.0.s8 %v3988
        %v3990 = vperm.slane %v3982, %v3989
        %v3991 = vrot.slane %v2466, 4
        %v3992 = vsel %vm602, %v3991, %v2458
        %v3993 = vrot.slane %v2458, 4
        %v3994 = vsel %vm602, %v2466, %v3993
        %v3996 = vunpack.c.l.s4 1983009808
        %v3997 = vunpack.c.0.s8 %v3996
        %v3998 = vperm.slane %v3992, %v3997
        %v4000 = vunpack.c.l.s4 1983009808
        %v4001 = vunpack.c.0.s8 %v4000
        %v4002 = vperm.slane %v3994, %v4001
        %v4003 = vrot.slane %v2470, 4
        %v4004 = vsel %vm602, %v4003, %v2462
        %v4005 = vrot.slane %v2462, 4
        %v4006 = vsel %vm602, %v2470, %v4005
        %v4008 = vunpack.c.l.s4 1983009808
        %v4009 = vunpack.c.0.s8 %v4008
        %v4010 = vperm.slane %v4004, %v4009
        %v4012 = vunpack.c.l.s4 1983009808
        %v4013 = vunpack.c.0.s8 %v4012
        %v4014 = vperm.slane %v4006, %v4013
        %v4015 = vrot.slane %v3986, 4
        %v4016 = vsel %vm602, %v4015, %v3974
        %v4017 = vrot.slane %v3974, 4
        %v4018 = vsel %vm602, %v3986, %v4017
        %v4020 = vunpack.c.l.s4 1934713408
        %v4021 = vunpack.c.0.s8 %v4020
        %v4022 = vperm.slane %v4016, %v4021
        %v4024 = vunpack.c.l.s4 1934713408
        %v4025 = vunpack.c.0.s8 %v4024
        %v4026 = vperm.slane %v4018, %v4025
        %v4027 = vrot.slane %v3990, 4
        %v4028 = vsel %vm602, %v4027, %v3978
        %v4029 = vrot.slane %v3978, 4
        %v4030 = vsel %vm602, %v3990, %v4029
        %v4032 = vunpack.c.l.s4 1934713408
        %v4033 = vunpack.c.0.s8 %v4032
        %v4034 = vperm.slane %v4028, %v4033
        %v4036 = vunpack.c.l.s4 1934713408
        %v4037 = vunpack.c.0.s8 %v4036
        %v4038 = vperm.slane %v4030, %v4037
        %v4039 = vrot.slane %v4010, 4
        %v4040 = vsel %vm602, %v4039, %v3998
        %v4041 = vrot.slane %v3998, 4
        %v4042 = vsel %vm602, %v4010, %v4041
        %v4044 = vunpack.c.l.s4 1934713408
        %v4045 = vunpack.c.0.s8 %v4044
        %v4046 = vperm.slane %v4040, %v4045
        %v4048 = vunpack.c.l.s4 1934713408
        %v4049 = vunpack.c.0.s8 %v4048
        %v4050 = vperm.slane %v4042, %v4049
        %v4051 = vrot.slane %v4014, 4
        %v4052 = vsel %vm602, %v4051, %v4002
        %v4053 = vrot.slane %v4002, 4
        %v4054 = vsel %vm602, %v4014, %v4053
        %v4056 = vunpack.c.l.s4 1934713408
        %v4057 = vunpack.c.0.s8 %v4056
        %v4058 = vperm.slane %v4052, %v4057
        %v4060 = vunpack.c.l.s4 1934713408
        %v4061 = vunpack.c.0.s8 %v4060
        %v4062 = vperm.slane %v4054, %v4061
        %v4063 = vrot.slane %v4046, 4
        %v4064 = vsel %vm602, %v4063, %v4022
        %v4065 = vrot.slane %v4022, 4
        %v4066 = vsel %vm602, %v4046, %v4065
        %v4067 = vrot.slane %v4050, 4
        %v4068 = vsel %vm602, %v4067, %v4026
        %v4069 = vrot.slane %v4026, 4
        %v4070 = vsel %vm602, %v4050, %v4069
        %v4071 = vrot.slane %v4058, 4
        %v4072 = vsel %vm602, %v4071, %v4034
        %v4073 = vrot.slane %v4034, 4
        %v4074 = vsel %vm602, %v4058, %v4073
        %v4075 = vrot.slane %v4062, 4
        %v4076 = vsel %vm602, %v4075, %v4038
        %v4077 = vrot.slane %v4038, 4
        %v4078 = vsel %vm602, %v4062, %v4077
        %v4079 = vrot.slane %v2498, 4
        %v4080 = vsel %vm602, %v4079, %v2490
        %v4081 = vrot.slane %v2490, 4
        %v4082 = vsel %vm602, %v2498, %v4081
        %v4084 = vunpack.c.l.s4 1983009808
        %v4085 = vunpack.c.0.s8 %v4084
        %v4086 = vperm.slane %v4080, %v4085
        %v4088 = vunpack.c.l.s4 1983009808
        %v4089 = vunpack.c.0.s8 %v4088
        %v4090 = vperm.slane %v4082, %v4089
        %v4091 = vrot.slane %v2502, 4
        %v4092 = vsel %vm602, %v4091, %v2494
        %v4093 = vrot.slane %v2494, 4
        %v4094 = vsel %vm602, %v2502, %v4093
        %v4096 = vunpack.c.l.s4 1983009808
        %v4097 = vunpack.c.0.s8 %v4096
        %v4098 = vperm.slane %v4092, %v4097
        %v4100 = vunpack.c.l.s4 1983009808
        %v4101 = vunpack.c.0.s8 %v4100
        %v4102 = vperm.slane %v4094, %v4101
        %v4103 = vrot.slane %v2514, 4
        %v4104 = vsel %vm602, %v4103, %v2506
        %v4105 = vrot.slane %v2506, 4
        %v4106 = vsel %vm602, %v2514, %v4105
        %v4108 = vunpack.c.l.s4 1983009808
        %v4109 = vunpack.c.0.s8 %v4108
        %v4110 = vperm.slane %v4104, %v4109
        %v4112 = vunpack.c.l.s4 1983009808
        %v4113 = vunpack.c.0.s8 %v4112
        %v4114 = vperm.slane %v4106, %v4113
        %v4115 = vrot.slane %v2518, 4
        %v4116 = vsel %vm602, %v4115, %v2510
        %v4117 = vrot.slane %v2510, 4
        %v4118 = vsel %vm602, %v2518, %v4117
        %v4120 = vunpack.c.l.s4 1983009808
        %v4121 = vunpack.c.0.s8 %v4120
        %v4122 = vperm.slane %v4116, %v4121
        %v4124 = vunpack.c.l.s4 1983009808
        %v4125 = vunpack.c.0.s8 %v4124
        %v4126 = vperm.slane %v4118, %v4125
        %v4127 = vrot.slane %v4098, 4
        %v4128 = vsel %vm602, %v4127, %v4086
        %v4129 = vrot.slane %v4086, 4
        %v4130 = vsel %vm602, %v4098, %v4129
        %v4132 = vunpack.c.l.s4 1934713408
        %v4133 = vunpack.c.0.s8 %v4132
        %v4134 = vperm.slane %v4128, %v4133
        %v4136 = vunpack.c.l.s4 1934713408
        %v4137 = vunpack.c.0.s8 %v4136
        %v4138 = vperm.slane %v4130, %v4137
        %v4139 = vrot.slane %v4102, 4
        %v4140 = vsel %vm602, %v4139, %v4090
        %v4141 = vrot.slane %v4090, 4
        %v4142 = vsel %vm602, %v4102, %v4141
        %v4144 = vunpack.c.l.s4 1934713408
        %v4145 = vunpack.c.0.s8 %v4144
        %v4146 = vperm.slane %v4140, %v4145
        %v4148 = vunpack.c.l.s4 1934713408
        %v4149 = vunpack.c.0.s8 %v4148
        %v4150 = vperm.slane %v4142, %v4149
        %v4151 = vrot.slane %v4122, 4
        %v4152 = vsel %vm602, %v4151, %v4110
        %v4153 = vrot.slane %v4110, 4
        %v4154 = vsel %vm602, %v4122, %v4153
        %v4156 = vunpack.c.l.s4 1934713408
        %v4157 = vunpack.c.0.s8 %v4156
        %v4158 = vperm.slane %v4152, %v4157
        %v4160 = vunpack.c.l.s4 1934713408
        %v4161 = vunpack.c.0.s8 %v4160
        %v4162 = vperm.slane %v4154, %v4161
        %v4163 = vrot.slane %v4126, 4
        %v4164 = vsel %vm602, %v4163, %v4114
        %v4165 = vrot.slane %v4114, 4
        %v4166 = vsel %vm602, %v4126, %v4165
        %v4168 = vunpack.c.l.s4 1934713408
        %v4169 = vunpack.c.0.s8 %v4168
        %v4170 = vperm.slane %v4164, %v4169
        %v4172 = vunpack.c.l.s4 1934713408
        %v4173 = vunpack.c.0.s8 %v4172
        %v4174 = vperm.slane %v4166, %v4173
        %v4175 = vrot.slane %v4158, 4
        %v4176 = vsel %vm602, %v4175, %v4134
        %v4177 = vrot.slane %v4134, 4
        %v4178 = vsel %vm602, %v4158, %v4177
        %v4179 = vrot.slane %v4162, 4
        %v4180 = vsel %vm602, %v4179, %v4138
        %v4181 = vrot.slane %v4138, 4
        %v4182 = vsel %vm602, %v4162, %v4181
        %v4183 = vrot.slane %v4170, 4
        %v4184 = vsel %vm602, %v4183, %v4146
        %v4185 = vrot.slane %v4146, 4
        %v4186 = vsel %vm602, %v4170, %v4185
        %v4187 = vrot.slane %v4174, 4
        %v4188 = vsel %vm602, %v4187, %v4150
        %v4189 = vrot.slane %v4150, 4
        %v4190 = vsel %vm602, %v4174, %v4189
        %v4191 = vrot.slane %v2557, 4
        %v4192 = vsel %vm602, %v4191, %v2547
        %v4193 = vrot.slane %v2547, 4
        %v4194 = vsel %vm602, %v2557, %v4193
        %v4196 = vunpack.c.l.s4 1983009808
        %v4197 = vunpack.c.0.s8 %v4196
        %v4198 = vperm.slane %v4192, %v4197
        %v4200 = vunpack.c.l.s4 1983009808
        %v4201 = vunpack.c.0.s8 %v4200
        %v4202 = vperm.slane %v4194, %v4201
        %v4203 = vrot.slane %v2562, 4
        %v4204 = vsel %vm602, %v4203, %v2552
        %v4205 = vrot.slane %v2552, 4
        %v4206 = vsel %vm602, %v2562, %v4205
        %v4208 = vunpack.c.l.s4 1983009808
        %v4209 = vunpack.c.0.s8 %v4208
        %v4210 = vperm.slane %v4204, %v4209
        %v4212 = vunpack.c.l.s4 1983009808
        %v4213 = vunpack.c.0.s8 %v4212
        %v4214 = vperm.slane %v4206, %v4213
        %v4215 = vrot.slane %v2577, 4
        %v4216 = vsel %vm602, %v4215, %v2567
        %v4217 = vrot.slane %v2567, 4
        %v4218 = vsel %vm602, %v2577, %v4217
        %v4220 = vunpack.c.l.s4 1983009808
        %v4221 = vunpack.c.0.s8 %v4220
        %v4222 = vperm.slane %v4216, %v4221
        %v4224 = vunpack.c.l.s4 1983009808
        %v4225 = vunpack.c.0.s8 %v4224
        %v4226 = vperm.slane %v4218, %v4225
        %v4227 = vrot.slane %v2582, 4
        %v4228 = vsel %vm602, %v4227, %v2572
        %v4229 = vrot.slane %v2572, 4
        %v4230 = vsel %vm602, %v2582, %v4229
        %v4232 = vunpack.c.l.s4 1983009808
        %v4233 = vunpack.c.0.s8 %v4232
        %v4234 = vperm.slane %v4228, %v4233
        %v4236 = vunpack.c.l.s4 1983009808
        %v4237 = vunpack.c.0.s8 %v4236
        %v4238 = vperm.slane %v4230, %v4237
        %v4239 = vrot.slane %v4210, 4
        %v4240 = vsel %vm602, %v4239, %v4198
        %v4241 = vrot.slane %v4198, 4
        %v4242 = vsel %vm602, %v4210, %v4241
        %v4244 = vunpack.c.l.s4 1934713408
        %v4245 = vunpack.c.0.s8 %v4244
        %v4246 = vperm.slane %v4240, %v4245
        %v4248 = vunpack.c.l.s4 1934713408
        %v4249 = vunpack.c.0.s8 %v4248
        %v4250 = vperm.slane %v4242, %v4249
        %v4251 = vrot.slane %v4214, 4
        %v4252 = vsel %vm602, %v4251, %v4202
        %v4253 = vrot.slane %v4202, 4
        %v4254 = vsel %vm602, %v4214, %v4253
        %v4256 = vunpack.c.l.s4 1934713408
        %v4257 = vunpack.c.0.s8 %v4256
        %v4258 = vperm.slane %v4252, %v4257
        %v4260 = vunpack.c.l.s4 1934713408
        %v4261 = vunpack.c.0.s8 %v4260
        %v4262 = vperm.slane %v4254, %v4261
        %v4263 = vrot.slane %v4234, 4
        %v4264 = vsel %vm602, %v4263, %v4222
        %v4265 = vrot.slane %v4222, 4
        %v4266 = vsel %vm602, %v4234, %v4265
        %v4268 = vunpack.c.l.s4 1934713408
        %v4269 = vunpack.c.0.s8 %v4268
        %v4270 = vperm.slane %v4264, %v4269
        %v4272 = vunpack.c.l.s4 1934713408
        %v4273 = vunpack.c.0.s8 %v4272
        %v4274 = vperm.slane %v4266, %v4273
        %v4275 = vrot.slane %v4238, 4
        %v4276 = vsel %vm602, %v4275, %v4226
        %v4277 = vrot.slane %v4226, 4
        %v4278 = vsel %vm602, %v4238, %v4277
        %v4280 = vunpack.c.l.s4 1934713408
        %v4281 = vunpack.c.0.s8 %v4280
        %v4282 = vperm.slane %v4276, %v4281
        %v4284 = vunpack.c.l.s4 1934713408
        %v4285 = vunpack.c.0.s8 %v4284
        %v4286 = vperm.slane %v4278, %v4285
        %v4287 = vrot.slane %v4270, 4
        %v4288 = vsel %vm602, %v4287, %v4246
        %v4289 = vrot.slane %v4246, 4
        %v4290 = vsel %vm602, %v4270, %v4289
        %v4291 = vrot.slane %v4274, 4
        %v4292 = vsel %vm602, %v4291, %v4250
        %v4293 = vrot.slane %v4250, 4
        %v4294 = vsel %vm602, %v4274, %v4293
        %v4295 = vrot.slane %v4282, 4
        %v4296 = vsel %vm602, %v4295, %v4258
        %v4297 = vrot.slane %v4258, 4
        %v4298 = vsel %vm602, %v4282, %v4297
        %v4299 = vrot.slane %v4286, 4
        %v4300 = vsel %vm602, %v4299, %v4262
        %v4301 = vrot.slane %v4262, 4
        %v4302 = vsel %vm602, %v4286, %v4301
        %v4303 = vrot.slane %v2610, 4
        %v4304 = vsel %vm602, %v4303, %v2602
        %v4305 = vrot.slane %v2602, 4
        %v4306 = vsel %vm602, %v2610, %v4305
        %v4308 = vunpack.c.l.s4 1983009808
        %v4309 = vunpack.c.0.s8 %v4308
        %v4310 = vperm.slane %v4304, %v4309
        %v4312 = vunpack.c.l.s4 1983009808
        %v4313 = vunpack.c.0.s8 %v4312
        %v4314 = vperm.slane %v4306, %v4313
        %v4315 = vrot.slane %v2614, 4
        %v4316 = vsel %vm602, %v4315, %v2606
        %v4317 = vrot.slane %v2606, 4
        %v4318 = vsel %vm602, %v2614, %v4317
        %v4320 = vunpack.c.l.s4 1983009808
        %v4321 = vunpack.c.0.s8 %v4320
        %v4322 = vperm.slane %v4316, %v4321
        %v4324 = vunpack.c.l.s4 1983009808
        %v4325 = vunpack.c.0.s8 %v4324
        %v4326 = vperm.slane %v4318, %v4325
        %v4327 = vrot.slane %v2626, 4
        %v4328 = vsel %vm602, %v4327, %v2618
        %v4329 = vrot.slane %v2618, 4
        %v4330 = vsel %vm602, %v2626, %v4329
        %v4332 = vunpack.c.l.s4 1983009808
        %v4333 = vunpack.c.0.s8 %v4332
        %v4334 = vperm.slane %v4328, %v4333
        %v4336 = vunpack.c.l.s4 1983009808
        %v4337 = vunpack.c.0.s8 %v4336
        %v4338 = vperm.slane %v4330, %v4337
        %v4339 = vrot.slane %v2630, 4
        %v4340 = vsel %vm602, %v4339, %v2622
        %v4341 = vrot.slane %v2622, 4
        %v4342 = vsel %vm602, %v2630, %v4341
        %v4344 = vunpack.c.l.s4 1983009808
        %v4345 = vunpack.c.0.s8 %v4344
        %v4346 = vperm.slane %v4340, %v4345
        %v4348 = vunpack.c.l.s4 1983009808
        %v4349 = vunpack.c.0.s8 %v4348
        %v4350 = vperm.slane %v4342, %v4349
        %v4351 = vrot.slane %v4322, 4
        %v4352 = vsel %vm602, %v4351, %v4310
        %v4353 = vrot.slane %v4310, 4
        %v4354 = vsel %vm602, %v4322, %v4353
        %v4356 = vunpack.c.l.s4 1934713408
        %v4357 = vunpack.c.0.s8 %v4356
        %v4358 = vperm.slane %v4352, %v4357
        %v4360 = vunpack.c.l.s4 1934713408
        %v4361 = vunpack.c.0.s8 %v4360
        %v4362 = vperm.slane %v4354, %v4361
        %v4363 = vrot.slane %v4326, 4
        %v4364 = vsel %vm602, %v4363, %v4314
        %v4365 = vrot.slane %v4314, 4
        %v4366 = vsel %vm602, %v4326, %v4365
        %v4368 = vunpack.c.l.s4 1934713408
        %v4369 = vunpack.c.0.s8 %v4368
        %v4370 = vperm.slane %v4364, %v4369
        %v4372 = vunpack.c.l.s4 1934713408
        %v4373 = vunpack.c.0.s8 %v4372
        %v4374 = vperm.slane %v4366, %v4373
        %v4375 = vrot.slane %v4346, 4
        %v4376 = vsel %vm602, %v4375, %v4334
        %v4377 = vrot.slane %v4334, 4
        %v4378 = vsel %vm602, %v4346, %v4377
        %v4380 = vunpack.c.l.s4 1934713408
        %v4381 = vunpack.c.0.s8 %v4380
        %v4382 = vperm.slane %v4376, %v4381
        %v4384 = vunpack.c.l.s4 1934713408
        %v4385 = vunpack.c.0.s8 %v4384
        %v4386 = vperm.slane %v4378, %v4385
        %v4387 = vrot.slane %v4350, 4
        %v4388 = vsel %vm602, %v4387, %v4338
        %v4389 = vrot.slane %v4338, 4
        %v4390 = vsel %vm602, %v4350, %v4389
        %v4392 = vunpack.c.l.s4 1934713408
        %v4393 = vunpack.c.0.s8 %v4392
        %v4394 = vperm.slane %v4388, %v4393
        %v4396 = vunpack.c.l.s4 1934713408
        %v4397 = vunpack.c.0.s8 %v4396
        %v4398 = vperm.slane %v4390, %v4397
        %v4399 = vrot.slane %v4382, 4
        %v4400 = vsel %vm602, %v4399, %v4358
        %v4401 = vrot.slane %v4358, 4
        %v4402 = vsel %vm602, %v4382, %v4401
        %v4403 = vrot.slane %v4386, 4
        %v4404 = vsel %vm602, %v4403, %v4362
        %v4405 = vrot.slane %v4362, 4
        %v4406 = vsel %vm602, %v4386, %v4405
        %v4407 = vrot.slane %v4394, 4
        %v4408 = vsel %vm602, %v4407, %v4370
        %v4409 = vrot.slane %v4370, 4
        %v4410 = vsel %vm602, %v4394, %v4409
        %v4411 = vrot.slane %v4398, 4
        %v4412 = vsel %vm602, %v4411, %v4374
        %v4413 = vrot.slane %v4374, 4
        %v4414 = vsel %vm602, %v4398, %v4413
        %v4415 = vrot.slane %v2658, 4
        %v4416 = vsel %vm602, %v4415, %v2650
        %v4417 = vrot.slane %v2650, 4
        %v4418 = vsel %vm602, %v2658, %v4417
        %v4420 = vunpack.c.l.s4 1983009808
        %v4421 = vunpack.c.0.s8 %v4420
        %v4422 = vperm.slane %v4416, %v4421
        %v4424 = vunpack.c.l.s4 1983009808
        %v4425 = vunpack.c.0.s8 %v4424
        %v4426 = vperm.slane %v4418, %v4425
        %v4427 = vrot.slane %v2662, 4
        %v4428 = vsel %vm602, %v4427, %v2654
        %v4429 = vrot.slane %v2654, 4
        %v4430 = vsel %vm602, %v2662, %v4429
        %v4432 = vunpack.c.l.s4 1983009808
        %v4433 = vunpack.c.0.s8 %v4432
        %v4434 = vperm.slane %v4428, %v4433
        %v4436 = vunpack.c.l.s4 1983009808
        %v4437 = vunpack.c.0.s8 %v4436
        %v4438 = vperm.slane %v4430, %v4437
        %v4439 = vrot.slane %v2674, 4
        %v4440 = vsel %vm602, %v4439, %v2666
        %v4441 = vrot.slane %v2666, 4
        %v4442 = vsel %vm602, %v2674, %v4441
        %v4444 = vunpack.c.l.s4 1983009808
        %v4445 = vunpack.c.0.s8 %v4444
        %v4446 = vperm.slane %v4440, %v4445
        %v4448 = vunpack.c.l.s4 1983009808
        %v4449 = vunpack.c.0.s8 %v4448
        %v4450 = vperm.slane %v4442, %v4449
        %v4451 = vrot.slane %v2678, 4
        %v4452 = vsel %vm602, %v4451, %v2670
        %v4453 = vrot.slane %v2670, 4
        %v4454 = vsel %vm602, %v2678, %v4453
        %v4456 = vunpack.c.l.s4 1983009808
        %v4457 = vunpack.c.0.s8 %v4456
        %v4458 = vperm.slane %v4452, %v4457
        %v4460 = vunpack.c.l.s4 1983009808
        %v4461 = vunpack.c.0.s8 %v4460
        %v4462 = vperm.slane %v4454, %v4461
        %v4463 = vrot.slane %v4434, 4
        %v4464 = vsel %vm602, %v4463, %v4422
        %v4465 = vrot.slane %v4422, 4
        %v4466 = vsel %vm602, %v4434, %v4465
        %v4468 = vunpack.c.l.s4 1934713408
        %v4469 = vunpack.c.0.s8 %v4468
        %v4470 = vperm.slane %v4464, %v4469
        %v4472 = vunpack.c.l.s4 1934713408
        %v4473 = vunpack.c.0.s8 %v4472
        %v4474 = vperm.slane %v4466, %v4473
        %v4475 = vrot.slane %v4438, 4
        %v4476 = vsel %vm602, %v4475, %v4426
        %v4477 = vrot.slane %v4426, 4
        %v4478 = vsel %vm602, %v4438, %v4477
        %v4480 = vunpack.c.l.s4 1934713408
        %v4481 = vunpack.c.0.s8 %v4480
        %v4482 = vperm.slane %v4476, %v4481
        %v4484 = vunpack.c.l.s4 1934713408
        %v4485 = vunpack.c.0.s8 %v4484
        %v4486 = vperm.slane %v4478, %v4485
        %v4487 = vrot.slane %v4458, 4
        %v4488 = vsel %vm602, %v4487, %v4446
        %v4489 = vrot.slane %v4446, 4
        %v4490 = vsel %vm602, %v4458, %v4489
        %v4492 = vunpack.c.l.s4 1934713408
        %v4493 = vunpack.c.0.s8 %v4492
        %v4494 = vperm.slane %v4488, %v4493
        %v4496 = vunpack.c.l.s4 1934713408
        %v4497 = vunpack.c.0.s8 %v4496
        %v4498 = vperm.slane %v4490, %v4497
        %v4499 = vrot.slane %v4462, 4
        %v4500 = vsel %vm602, %v4499, %v4450
        %v4501 = vrot.slane %v4450, 4
        %v4502 = vsel %vm602, %v4462, %v4501
        %v4504 = vunpack.c.l.s4 1934713408
        %v4505 = vunpack.c.0.s8 %v4504
        %v4506 = vperm.slane %v4500, %v4505
        %v4508 = vunpack.c.l.s4 1934713408
        %v4509 = vunpack.c.0.s8 %v4508
        %v4510 = vperm.slane %v4502, %v4509
        %v4511 = vrot.slane %v4494, 4
        %v4512 = vsel %vm602, %v4511, %v4470
        %v4513 = vrot.slane %v4470, 4
        %v4514 = vsel %vm602, %v4494, %v4513
        %v4515 = vrot.slane %v4498, 4
        %v4516 = vsel %vm602, %v4515, %v4474
        %v4517 = vrot.slane %v4474, 4
        %v4518 = vsel %vm602, %v4498, %v4517
        %v4519 = vrot.slane %v4506, 4
        %v4520 = vsel %vm602, %v4519, %v4482
        %v4521 = vrot.slane %v4482, 4
        %v4522 = vsel %vm602, %v4506, %v4521
        %v4523 = vrot.slane %v4510, 4
        %v4524 = vsel %vm602, %v4523, %v4486
        %v4525 = vrot.slane %v4486, 4
        %v4526 = vsel %vm602, %v4510, %v4525
        %v4527 = vrot.slane %v2709, 4
        %v4528 = vsel %vm602, %v4527, %v2699
        %v4529 = vrot.slane %v2699, 4
        %v4530 = vsel %vm602, %v2709, %v4529
        %v4532 = vunpack.c.l.s4 1983009808
        %v4533 = vunpack.c.0.s8 %v4532
        %v4534 = vperm.slane %v4528, %v4533
        %v4536 = vunpack.c.l.s4 1983009808
        %v4537 = vunpack.c.0.s8 %v4536
        %v4538 = vperm.slane %v4530, %v4537
        %v4539 = vrot.slane %v2714, 4
        %v4540 = vsel %vm602, %v4539, %v2704
        %v4541 = vrot.slane %v2704, 4
        %v4542 = vsel %vm602, %v2714, %v4541
        %v4544 = vunpack.c.l.s4 1983009808
        %v4545 = vunpack.c.0.s8 %v4544
        %v4546 = vperm.slane %v4540, %v4545
        %v4548 = vunpack.c.l.s4 1983009808
        %v4549 = vunpack.c.0.s8 %v4548
        %v4550 = vperm.slane %v4542, %v4549
        %v4551 = vrot.slane %v2729, 4
        %v4552 = vsel %vm602, %v4551, %v2719
        %v4553 = vrot.slane %v2719, 4
        %v4554 = vsel %vm602, %v2729, %v4553
        %v4556 = vunpack.c.l.s4 1983009808
        %v4557 = vunpack.c.0.s8 %v4556
        %v4558 = vperm.slane %v4552, %v4557
        %v4560 = vunpack.c.l.s4 1983009808
        %v4561 = vunpack.c.0.s8 %v4560
        %v4562 = vperm.slane %v4554, %v4561
        %v4563 = vrot.slane %v2734, 4
        %v4564 = vsel %vm602, %v4563, %v2724
        %v4565 = vrot.slane %v2724, 4
        %v4566 = vsel %vm602, %v2734, %v4565
        %v4568 = vunpack.c.l.s4 1983009808
        %v4569 = vunpack.c.0.s8 %v4568
        %v4570 = vperm.slane %v4564, %v4569
        %v4572 = vunpack.c.l.s4 1983009808
        %v4573 = vunpack.c.0.s8 %v4572
        %v4574 = vperm.slane %v4566, %v4573
        %v4575 = vrot.slane %v4546, 4
        %v4576 = vsel %vm602, %v4575, %v4534
        %v4577 = vrot.slane %v4534, 4
        %v4578 = vsel %vm602, %v4546, %v4577
        %v4580 = vunpack.c.l.s4 1934713408
        %v4581 = vunpack.c.0.s8 %v4580
        %v4582 = vperm.slane %v4576, %v4581
        %v4584 = vunpack.c.l.s4 1934713408
        %v4585 = vunpack.c.0.s8 %v4584
        %v4586 = vperm.slane %v4578, %v4585
        %v4587 = vrot.slane %v4550, 4
        %v4588 = vsel %vm602, %v4587, %v4538
        %v4589 = vrot.slane %v4538, 4
        %v4590 = vsel %vm602, %v4550, %v4589
        %v4592 = vunpack.c.l.s4 1934713408
        %v4593 = vunpack.c.0.s8 %v4592
        %v4594 = vperm.slane %v4588, %v4593
        %v4596 = vunpack.c.l.s4 1934713408
        %v4597 = vunpack.c.0.s8 %v4596
        %v4598 = vperm.slane %v4590, %v4597
        %v4599 = vrot.slane %v4570, 4
        %v4600 = vsel %vm602, %v4599, %v4558
        %v4601 = vrot.slane %v4558, 4
        %v4602 = vsel %vm602, %v4570, %v4601
        %v4604 = vunpack.c.l.s4 1934713408
        %v4605 = vunpack.c.0.s8 %v4604
        %v4606 = vperm.slane %v4600, %v4605
        %v4608 = vunpack.c.l.s4 1934713408
        %v4609 = vunpack.c.0.s8 %v4608
        %v4610 = vperm.slane %v4602, %v4609
        %v4611 = vrot.slane %v4574, 4
        %v4612 = vsel %vm602, %v4611, %v4562
        %v4613 = vrot.slane %v4562, 4
        %v4614 = vsel %vm602, %v4574, %v4613
        %v4616 = vunpack.c.l.s4 1934713408
        %v4617 = vunpack.c.0.s8 %v4616
        %v4618 = vperm.slane %v4612, %v4617
        %v4620 = vunpack.c.l.s4 1934713408
        %v4621 = vunpack.c.0.s8 %v4620
        %v4622 = vperm.slane %v4614, %v4621
        %v4623 = vrot.slane %v4606, 4
        %v4624 = vsel %vm602, %v4623, %v4582
        %v4625 = vrot.slane %v4582, 4
        %v4626 = vsel %vm602, %v4606, %v4625
        %v4627 = vrot.slane %v4610, 4
        %v4628 = vsel %vm602, %v4627, %v4586
        %v4629 = vrot.slane %v4586, 4
        %v4630 = vsel %vm602, %v4610, %v4629
        %v4631 = vrot.slane %v4618, 4
        %v4632 = vsel %vm602, %v4631, %v4594
        %v4633 = vrot.slane %v4594, 4
        %v4634 = vsel %vm602, %v4618, %v4633
        %v4635 = vrot.slane %v4622, 4
        %v4636 = vsel %vm602, %v4635, %v4598
        %v4637 = vrot.slane %v4598, 4
        %v4638 = vsel %vm602, %v4622, %v4637
        %v4639 = vrot.slane %v2762, 4
        %v4640 = vsel %vm602, %v4639, %v2754
        %v4641 = vrot.slane %v2754, 4
        %v4642 = vsel %vm602, %v2762, %v4641
        %v4644 = vunpack.c.l.s4 1983009808
        %v4645 = vunpack.c.0.s8 %v4644
        %v4646 = vperm.slane %v4640, %v4645
        %v4648 = vunpack.c.l.s4 1983009808
        %v4649 = vunpack.c.0.s8 %v4648
        %v4650 = vperm.slane %v4642, %v4649
        %v4651 = vrot.slane %v2766, 4
        %v4652 = vsel %vm602, %v4651, %v2758
        %v4653 = vrot.slane %v2758, 4
        %v4654 = vsel %vm602, %v2766, %v4653
        %v4656 = vunpack.c.l.s4 1983009808
        %v4657 = vunpack.c.0.s8 %v4656
        %v4658 = vperm.slane %v4652, %v4657
        %v4660 = vunpack.c.l.s4 1983009808
        %v4661 = vunpack.c.0.s8 %v4660
        %v4662 = vperm.slane %v4654, %v4661
        %v4663 = vrot.slane %v2778, 4
        %v4664 = vsel %vm602, %v4663, %v2770
        %v4665 = vrot.slane %v2770, 4
        %v4666 = vsel %vm602, %v2778, %v4665
        %v4668 = vunpack.c.l.s4 1983009808
        %v4669 = vunpack.c.0.s8 %v4668
        %v4670 = vperm.slane %v4664, %v4669
        %v4672 = vunpack.c.l.s4 1983009808
        %v4673 = vunpack.c.0.s8 %v4672
        %v4674 = vperm.slane %v4666, %v4673
        %v4675 = vrot.slane %v2782, 4
        %v4676 = vsel %vm602, %v4675, %v2774
        %v4677 = vrot.slane %v2774, 4
        %v4678 = vsel %vm602, %v2782, %v4677
        %v4680 = vunpack.c.l.s4 1983009808
        %v4681 = vunpack.c.0.s8 %v4680
        %v4682 = vperm.slane %v4676, %v4681
        %v4684 = vunpack.c.l.s4 1983009808
        %v4685 = vunpack.c.0.s8 %v4684
        %v4686 = vperm.slane %v4678, %v4685
        %v4687 = vrot.slane %v4658, 4
        %v4688 = vsel %vm602, %v4687, %v4646
        %v4689 = vrot.slane %v4646, 4
        %v4690 = vsel %vm602, %v4658, %v4689
        %v4692 = vunpack.c.l.s4 1934713408
        %v4693 = vunpack.c.0.s8 %v4692
        %v4694 = vperm.slane %v4688, %v4693
        %v4696 = vunpack.c.l.s4 1934713408
        %v4697 = vunpack.c.0.s8 %v4696
        %v4698 = vperm.slane %v4690, %v4697
        %v4699 = vrot.slane %v4662, 4
        %v4700 = vsel %vm602, %v4699, %v4650
        %v4701 = vrot.slane %v4650, 4
        %v4702 = vsel %vm602, %v4662, %v4701
        %v4704 = vunpack.c.l.s4 1934713408
        %v4705 = vunpack.c.0.s8 %v4704
        %v4706 = vperm.slane %v4700, %v4705
        %v4708 = vunpack.c.l.s4 1934713408
        %v4709 = vunpack.c.0.s8 %v4708
        %v4710 = vperm.slane %v4702, %v4709
        %v4711 = vrot.slane %v4682, 4
        %v4712 = vsel %vm602, %v4711, %v4670
        %v4713 = vrot.slane %v4670, 4
        %v4714 = vsel %vm602, %v4682, %v4713
        %v4716 = vunpack.c.l.s4 1934713408
        %v4717 = vunpack.c.0.s8 %v4716
        %v4718 = vperm.slane %v4712, %v4717
        %v4720 = vunpack.c.l.s4 1934713408
        %v4721 = vunpack.c.0.s8 %v4720
        %v4722 = vperm.slane %v4714, %v4721
        %v4723 = vrot.slane %v4686, 4
        %v4724 = vsel %vm602, %v4723, %v4674
        %v4725 = vrot.slane %v4674, 4
        %v4726 = vsel %vm602, %v4686, %v4725
        %v4728 = vunpack.c.l.s4 1934713408
        %v4729 = vunpack.c.0.s8 %v4728
        %v4730 = vperm.slane %v4724, %v4729
        %v4732 = vunpack.c.l.s4 1934713408
        %v4733 = vunpack.c.0.s8 %v4732
        %v4734 = vperm.slane %v4726, %v4733
        %v4735 = vrot.slane %v4718, 4
        %v4736 = vsel %vm602, %v4735, %v4694
        %v4737 = vrot.slane %v4694, 4
        %v4738 = vsel %vm602, %v4718, %v4737
        %v4739 = vrot.slane %v4722, 4
        %v4740 = vsel %vm602, %v4739, %v4698
        %v4741 = vrot.slane %v4698, 4
        %v4742 = vsel %vm602, %v4722, %v4741
        %v4743 = vrot.slane %v4730, 4
        %v4744 = vsel %vm602, %v4743, %v4706
        %v4745 = vrot.slane %v4706, 4
        %v4746 = vsel %vm602, %v4730, %v4745
        %v4747 = vrot.slane %v4734, 4
        %v4748 = vsel %vm602, %v4747, %v4710
        %v4749 = vrot.slane %v4710, 4
        %v4750 = vsel %vm602, %v4734, %v4749
        %v4751 = vrot.slane %v2810, 4
        %v4752 = vsel %vm602, %v4751, %v2802
        %v4753 = vrot.slane %v2802, 4
        %v4754 = vsel %vm602, %v2810, %v4753
        %v4756 = vunpack.c.l.s4 1983009808
        %v4757 = vunpack.c.0.s8 %v4756
        %v4758 = vperm.slane %v4752, %v4757
        %v4760 = vunpack.c.l.s4 1983009808
        %v4761 = vunpack.c.0.s8 %v4760
        %v4762 = vperm.slane %v4754, %v4761
        %v4763 = vrot.slane %v2814, 4
        %v4764 = vsel %vm602, %v4763, %v2806
        %v4765 = vrot.slane %v2806, 4
        %v4766 = vsel %vm602, %v2814, %v4765
        %v4768 = vunpack.c.l.s4 1983009808
        %v4769 = vunpack.c.0.s8 %v4768
        %v4770 = vperm.slane %v4764, %v4769
        %v4772 = vunpack.c.l.s4 1983009808
        %v4773 = vunpack.c.0.s8 %v4772
        %v4774 = vperm.slane %v4766, %v4773
        %v4775 = vrot.slane %v2826, 4
        %v4776 = vsel %vm602, %v4775, %v2818
        %v4777 = vrot.slane %v2818, 4
        %v4778 = vsel %vm602, %v2826, %v4777
        %v4780 = vunpack.c.l.s4 1983009808
        %v4781 = vunpack.c.0.s8 %v4780
        %v4782 = vperm.slane %v4776, %v4781
        %v4784 = vunpack.c.l.s4 1983009808
        %v4785 = vunpack.c.0.s8 %v4784
        %v4786 = vperm.slane %v4778, %v4785
        %v4787 = vrot.slane %v2830, 4
        %v4788 = vsel %vm602, %v4787, %v2822
        %v4789 = vrot.slane %v2822, 4
        %v4790 = vsel %vm602, %v2830, %v4789
        %v4792 = vunpack.c.l.s4 1983009808
        %v4793 = vunpack.c.0.s8 %v4792
        %v4794 = vperm.slane %v4788, %v4793
        %v4796 = vunpack.c.l.s4 1983009808
        %v4797 = vunpack.c.0.s8 %v4796
        %v4798 = vperm.slane %v4790, %v4797
        %v4799 = vrot.slane %v4770, 4
        %v4800 = vsel %vm602, %v4799, %v4758
        %v4801 = vrot.slane %v4758, 4
        %v4802 = vsel %vm602, %v4770, %v4801
        %v4804 = vunpack.c.l.s4 1934713408
        %v4805 = vunpack.c.0.s8 %v4804
        %v4806 = vperm.slane %v4800, %v4805
        %v4808 = vunpack.c.l.s4 1934713408
        %v4809 = vunpack.c.0.s8 %v4808
        %v4810 = vperm.slane %v4802, %v4809
        %v4811 = vrot.slane %v4774, 4
        %v4812 = vsel %vm602, %v4811, %v4762
        %v4813 = vrot.slane %v4762, 4
        %v4814 = vsel %vm602, %v4774, %v4813
        %v4816 = vunpack.c.l.s4 1934713408
        %v4817 = vunpack.c.0.s8 %v4816
        %v4818 = vperm.slane %v4812, %v4817
        %v4820 = vunpack.c.l.s4 1934713408
        %v4821 = vunpack.c.0.s8 %v4820
        %v4822 = vperm.slane %v4814, %v4821
        %v4823 = vrot.slane %v4794, 4
        %v4824 = vsel %vm602, %v4823, %v4782
        %v4825 = vrot.slane %v4782, 4
        %v4826 = vsel %vm602, %v4794, %v4825
        %v4828 = vunpack.c.l.s4 1934713408
        %v4829 = vunpack.c.0.s8 %v4828
        %v4830 = vperm.slane %v4824, %v4829
        %v4832 = vunpack.c.l.s4 1934713408
        %v4833 = vunpack.c.0.s8 %v4832
        %v4834 = vperm.slane %v4826, %v4833
        %v4835 = vrot.slane %v4798, 4
        %v4836 = vsel %vm602, %v4835, %v4786
        %v4837 = vrot.slane %v4786, 4
        %v4838 = vsel %vm602, %v4798, %v4837
        %v4840 = vunpack.c.l.s4 1934713408
        %v4841 = vunpack.c.0.s8 %v4840
        %v4842 = vperm.slane %v4836, %v4841
        %v4844 = vunpack.c.l.s4 1934713408
        %v4845 = vunpack.c.0.s8 %v4844
        %v4846 = vperm.slane %v4838, %v4845
        %v4847 = vrot.slane %v4830, 4
        %v4848 = vsel %vm602, %v4847, %v4806
        %v4849 = vrot.slane %v4806, 4
        %v4850 = vsel %vm602, %v4830, %v4849
        %v4851 = vrot.slane %v4834, 4
        %v4852 = vsel %vm602, %v4851, %v4810
        %v4853 = vrot.slane %v4810, 4
        %v4854 = vsel %vm602, %v4834, %v4853
        %v4855 = vrot.slane %v4842, 4
        %v4856 = vsel %vm602, %v4855, %v4818
        %v4857 = vrot.slane %v4818, 4
        %v4858 = vsel %vm602, %v4842, %v4857
        %v4859 = vrot.slane %v4846, 4
        %v4860 = vsel %vm602, %v4859, %v4822
        %v4861 = vrot.slane %v4822, 4
        %v4862 = vsel %vm602, %v4846, %v4861
        %4872 = vrot.lane.b32.xlu0 %v2946, 16
        %v4873 = vpop.permute.xlu0 %4872
        %4874 = vrot.lane.b32.xlu0 %v3058, 16
        %v4875 = vpop.permute.xlu0 %4874
        %4876 = vrot.lane.b32.xlu0 %v3170, 16
        %v4877 = vpop.permute.xlu0 %4876
        %4878 = vrot.lane.b32.xlu0 %v3282, 16
        %v4879 = vpop.permute.xlu0 %4878
        %4880 = vrot.lane.b32.xlu0 %v3394, 16
        %v4881 = vpop.permute.xlu0 %4880
        %4882 = vrot.lane.b32.xlu0 %v3506, 16
        %v4883 = vpop.permute.xlu0 %4882
        %4884 = vrot.lane.b32.xlu0 %v3618, 16
        %v4885 = vpop.permute.xlu0 %4884
        %4886 = vrot.lane.b32.xlu0 %v3730, 16
        %v4887 = vpop.permute.xlu0 %4886
        %4888 = vrot.lane.b32.xlu0 %v3842, 16
        %v4889 = vpop.permute.xlu0 %4888
        %4908 = vrot.lane.b32.xlu0 %v2948, 32
        %v4909 = vpop.permute.xlu0 %4908
        %4910 = vrot.lane.b32.xlu0 %v3060, 32
        %v4911 = vpop.permute.xlu0 %4910
        %4912 = vrot.lane.b32.xlu0 %v3172, 32
        %v4913 = vpop.permute.xlu0 %4912
        %4914 = vrot.lane.b32.xlu0 %v3284, 32
        %v4915 = vpop.permute.xlu0 %4914
        %4916 = vrot.lane.b32.xlu0 %v3396, 32
        %v4917 = vpop.permute.xlu0 %4916
        %4918 = vrot.lane.b32.xlu0 %v3508, 32
        %v4919 = vpop.permute.xlu0 %4918
        %4920 = vrot.lane.b32.xlu0 %v3620, 32
        %v4921 = vpop.permute.xlu0 %4920
        %4922 = vrot.lane.b32.xlu0 %v3732, 32
        %v4923 = vpop.permute.xlu0 %4922
        %4924 = vrot.lane.b32.xlu0 %v3844, 32
        %v4925 = vpop.permute.xlu0 %4924
        %4944 = vrot.lane.b32.xlu0 %v2950, 48
        %v4945 = vpop.permute.xlu0 %4944
        %4946 = vrot.lane.b32.xlu0 %v3062, 48
        %v4947 = vpop.permute.xlu0 %4946
        %4948 = vrot.lane.b32.xlu0 %v3174, 48
        %v4949 = vpop.permute.xlu0 %4948
        %4950 = vrot.lane.b32.xlu0 %v3286, 48
        %v4951 = vpop.permute.xlu0 %4950
        %4952 = vrot.lane.b32.xlu0 %v3398, 48
        %v4953 = vpop.permute.xlu0 %4952
        %4954 = vrot.lane.b32.xlu0 %v3510, 48
        %v4955 = vpop.permute.xlu0 %4954
        %4956 = vrot.lane.b32.xlu0 %v3622, 48
        %v4957 = vpop.permute.xlu0 %4956
        %4958 = vrot.lane.b32.xlu0 %v3734, 48
        %v4959 = vpop.permute.xlu0 %4958
        %4960 = vrot.lane.b32.xlu0 %v3846, 48
        %v4961 = vpop.permute.xlu0 %4960
        %4980 = vrot.lane.b32.xlu0 %v2952, 64
        %v4981 = vpop.permute.xlu0 %4980
        %4982 = vrot.lane.b32.xlu0 %v3064, 64
        %v4983 = vpop.permute.xlu0 %4982
        %4984 = vrot.lane.b32.xlu0 %v3176, 64
        %v4985 = vpop.permute.xlu0 %4984
        %4986 = vrot.lane.b32.xlu0 %v3288, 64
        %v4987 = vpop.permute.xlu0 %4986
        %4988 = vrot.lane.b32.xlu0 %v3400, 64
        %v4989 = vpop.permute.xlu0 %4988
        %4990 = vrot.lane.b32.xlu0 %v3512, 64
        %v4991 = vpop.permute.xlu0 %4990
        %4992 = vrot.lane.b32.xlu0 %v3624, 64
        %v4993 = vpop.permute.xlu0 %4992
        %4994 = vrot.lane.b32.xlu0 %v3736, 64
        %v4995 = vpop.permute.xlu0 %4994
        %4996 = vrot.lane.b32.xlu0 %v3848, 64
        %v4997 = vpop.permute.xlu0 %4996
        %5016 = vrot.lane.b32.xlu0 %v2954, 80
        %v5017 = vpop.permute.xlu0 %5016
        %5018 = vrot.lane.b32.xlu0 %v3066, 80
        %v5019 = vpop.permute.xlu0 %5018
        %5020 = vrot.lane.b32.xlu0 %v3178, 80
        %v5021 = vpop.permute.xlu0 %5020
        %5022 = vrot.lane.b32.xlu0 %v3290, 80
        %v5023 = vpop.permute.xlu0 %5022
        %5024 = vrot.lane.b32.xlu0 %v3402, 80
        %v5025 = vpop.permute.xlu0 %5024
        %5026 = vrot.lane.b32.xlu0 %v3514, 80
        %v5027 = vpop.permute.xlu0 %5026
        %5028 = vrot.lane.b32.xlu0 %v3626, 80
        %v5029 = vpop.permute.xlu0 %5028
        %5030 = vrot.lane.b32.xlu0 %v3738, 80
        %v5031 = vpop.permute.xlu0 %5030
        %5032 = vrot.lane.b32.xlu0 %v3850, 80
        %v5033 = vpop.permute.xlu0 %5032
        %5052 = vrot.lane.b32.xlu0 %v2956, 96
        %v5053 = vpop.permute.xlu0 %5052
        %5054 = vrot.lane.b32.xlu0 %v3068, 96
        %v5055 = vpop.permute.xlu0 %5054
        %5056 = vrot.lane.b32.xlu0 %v3180, 96
        %v5057 = vpop.permute.xlu0 %5056
        %5058 = vrot.lane.b32.xlu0 %v3292, 96
        %v5059 = vpop.permute.xlu0 %5058
        %5060 = vrot.lane.b32.xlu0 %v3404, 96
        %v5061 = vpop.permute.xlu0 %5060
        %5062 = vrot.lane.b32.xlu0 %v3516, 96
        %v5063 = vpop.permute.xlu0 %5062
        %5064 = vrot.lane.b32.xlu0 %v3628, 96
        %v5065 = vpop.permute.xlu0 %5064
        %5066 = vrot.lane.b32.xlu0 %v3740, 96
        %v5067 = vpop.permute.xlu0 %5066
        %5068 = vrot.lane.b32.xlu0 %v3852, 96
        %v5069 = vpop.permute.xlu0 %5068
        %5088 = vrot.lane.b32.xlu0 %v2958, 112
        %v5089 = vpop.permute.xlu0 %5088
        %5090 = vrot.lane.b32.xlu0 %v3070, 112
        %v5091 = vpop.permute.xlu0 %5090
        %5092 = vrot.lane.b32.xlu0 %v3182, 112
        %v5093 = vpop.permute.xlu0 %5092
        %5094 = vrot.lane.b32.xlu0 %v3294, 112
        %v5095 = vpop.permute.xlu0 %5094
        %5096 = vrot.lane.b32.xlu0 %v3406, 112
        %v5097 = vpop.permute.xlu0 %5096
        %5098 = vrot.lane.b32.xlu0 %v3518, 112
        %v5099 = vpop.permute.xlu0 %5098
        %5100 = vrot.lane.b32.xlu0 %v3630, 112
        %v5101 = vpop.permute.xlu0 %5100
        %5102 = vrot.lane.b32.xlu0 %v3742, 112
        %v5103 = vpop.permute.xlu0 %5102
        %5104 = vrot.lane.b32.xlu0 %v3854, 112
        %v5105 = vpop.permute.xlu0 %5104
        %5124 = vrot.lane.b32.xlu0 %v3954, 16
        %v5125 = vpop.permute.xlu0 %5124
        %5126 = vrot.lane.b32.xlu0 %v4066, 16
        %v5127 = vpop.permute.xlu0 %5126
        %5128 = vrot.lane.b32.xlu0 %v4178, 16
        %v5129 = vpop.permute.xlu0 %5128
        %5130 = vrot.lane.b32.xlu0 %v4290, 16
        %v5131 = vpop.permute.xlu0 %5130
        %5132 = vrot.lane.b32.xlu0 %v4402, 16
        %v5133 = vpop.permute.xlu0 %5132
        %5134 = vrot.lane.b32.xlu0 %v4514, 16
        %v5135 = vpop.permute.xlu0 %5134
        %5136 = vrot.lane.b32.xlu0 %v4626, 16
        %v5137 = vpop.permute.xlu0 %5136
        %5138 = vrot.lane.b32.xlu0 %v4738, 16
        %v5139 = vpop.permute.xlu0 %5138
        %5140 = vrot.lane.b32.xlu0 %v4850, 16
        %v5141 = vpop.permute.xlu0 %5140
        %5160 = vrot.lane.b32.xlu0 %v3956, 32
        %v5161 = vpop.permute.xlu0 %5160
        %5162 = vrot.lane.b32.xlu0 %v4068, 32
        %v5163 = vpop.permute.xlu0 %5162
        %5164 = vrot.lane.b32.xlu0 %v4180, 32
        %v5165 = vpop.permute.xlu0 %5164
        %5166 = vrot.lane.b32.xlu0 %v4292, 32
        %v5167 = vpop.permute.xlu0 %5166
        %5168 = vrot.lane.b32.xlu0 %v4404, 32
        %v5169 = vpop.permute.xlu0 %5168
        %5170 = vrot.lane.b32.xlu0 %v4516, 32
        %v5171 = vpop.permute.xlu0 %5170
        %5172 = vrot.lane.b32.xlu0 %v4628, 32
        %v5173 = vpop.permute.xlu0 %5172
        %5174 = vrot.lane.b32.xlu0 %v4740, 32
        %v5175 = vpop.permute.xlu0 %5174
        %5176 = vrot.lane.b32.xlu0 %v4852, 32
        %v5177 = vpop.permute.xlu0 %5176
        %5196 = vrot.lane.b32.xlu0 %v3958, 48
        %v5197 = vpop.permute.xlu0 %5196
        %5198 = vrot.lane.b32.xlu0 %v4070, 48
        %v5199 = vpop.permute.xlu0 %5198
        %5200 = vrot.lane.b32.xlu0 %v4182, 48
        %v5201 = vpop.permute.xlu0 %5200
        %5202 = vrot.lane.b32.xlu0 %v4294, 48
        %v5203 = vpop.permute.xlu0 %5202
        %5204 = vrot.lane.b32.xlu0 %v4406, 48
        %v5205 = vpop.permute.xlu0 %5204
        %5206 = vrot.lane.b32.xlu0 %v4518, 48
        %v5207 = vpop.permute.xlu0 %5206
        %5208 = vrot.lane.b32.xlu0 %v4630, 48
        %v5209 = vpop.permute.xlu0 %5208
        %5210 = vrot.lane.b32.xlu0 %v4742, 48
        %v5211 = vpop.permute.xlu0 %5210
        %5212 = vrot.lane.b32.xlu0 %v4854, 48
        %v5213 = vpop.permute.xlu0 %5212
        %5232 = vrot.lane.b32.xlu0 %v3960, 64
        %v5233 = vpop.permute.xlu0 %5232
        %5234 = vrot.lane.b32.xlu0 %v4072, 64
        %v5235 = vpop.permute.xlu0 %5234
        %5236 = vrot.lane.b32.xlu0 %v4184, 64
        %v5237 = vpop.permute.xlu0 %5236
        %5238 = vrot.lane.b32.xlu0 %v4296, 64
        %v5239 = vpop.permute.xlu0 %5238
        %5240 = vrot.lane.b32.xlu0 %v4408, 64
        %v5241 = vpop.permute.xlu0 %5240
        %5242 = vrot.lane.b32.xlu0 %v4520, 64
        %v5243 = vpop.permute.xlu0 %5242
        %5244 = vrot.lane.b32.xlu0 %v4632, 64
        %v5245 = vpop.permute.xlu0 %5244
        %5246 = vrot.lane.b32.xlu0 %v4744, 64
        %v5247 = vpop.permute.xlu0 %5246
        %5248 = vrot.lane.b32.xlu0 %v4856, 64
        %v5249 = vpop.permute.xlu0 %5248
        %5268 = vrot.lane.b32.xlu0 %v3962, 80
        %v5269 = vpop.permute.xlu0 %5268
        %5270 = vrot.lane.b32.xlu0 %v4074, 80
        %v5271 = vpop.permute.xlu0 %5270
        %5272 = vrot.lane.b32.xlu0 %v4186, 80
        %v5273 = vpop.permute.xlu0 %5272
        %5274 = vrot.lane.b32.xlu0 %v4298, 80
        %v5275 = vpop.permute.xlu0 %5274
        %5276 = vrot.lane.b32.xlu0 %v4410, 80
        %v5277 = vpop.permute.xlu0 %5276
        %5278 = vrot.lane.b32.xlu0 %v4522, 80
        %v5279 = vpop.permute.xlu0 %5278
        %5280 = vrot.lane.b32.xlu0 %v4634, 80
        %v5281 = vpop.permute.xlu0 %5280
        %5282 = vrot.lane.b32.xlu0 %v4746, 80
        %v5283 = vpop.permute.xlu0 %5282
        %5284 = vrot.lane.b32.xlu0 %v4858, 80
        %v5285 = vpop.permute.xlu0 %5284
        %5304 = vrot.lane.b32.xlu0 %v3964, 96
        %v5305 = vpop.permute.xlu0 %5304
        %5306 = vrot.lane.b32.xlu0 %v4076, 96
        %v5307 = vpop.permute.xlu0 %5306
        %5308 = vrot.lane.b32.xlu0 %v4188, 96
        %v5309 = vpop.permute.xlu0 %5308
        %5310 = vrot.lane.b32.xlu0 %v4300, 96
        %v5311 = vpop.permute.xlu0 %5310
        %5312 = vrot.lane.b32.xlu0 %v4412, 96
        %v5313 = vpop.permute.xlu0 %5312
        %5314 = vrot.lane.b32.xlu0 %v4524, 96
        %v5315 = vpop.permute.xlu0 %5314
        %5316 = vrot.lane.b32.xlu0 %v4636, 96
        %v5317 = vpop.permute.xlu0 %5316
        %5318 = vrot.lane.b32.xlu0 %v4748, 96
        %v5319 = vpop.permute.xlu0 %5318
        %5320 = vrot.lane.b32.xlu0 %v4860, 96
        %v5321 = vpop.permute.xlu0 %5320
        %5340 = vrot.lane.b32.xlu0 %v3966, 112
        %v5341 = vpop.permute.xlu0 %5340
        %5342 = vrot.lane.b32.xlu0 %v4078, 112
        %v5343 = vpop.permute.xlu0 %5342
        %5344 = vrot.lane.b32.xlu0 %v4190, 112
        %v5345 = vpop.permute.xlu0 %5344
        %5346 = vrot.lane.b32.xlu0 %v4302, 112
        %v5347 = vpop.permute.xlu0 %5346
        %5348 = vrot.lane.b32.xlu0 %v4414, 112
        %v5349 = vpop.permute.xlu0 %5348
        %5350 = vrot.lane.b32.xlu0 %v4526, 112
        %v5351 = vpop.permute.xlu0 %5350
        %5352 = vrot.lane.b32.xlu0 %v4638, 112
        %v5353 = vpop.permute.xlu0 %5352
        %5354 = vrot.lane.b32.xlu0 %v4750, 112
        %v5355 = vpop.permute.xlu0 %5354
        %5356 = vrot.lane.b32.xlu0 %v4862, 112
        %v5357 = vpop.permute.xlu0 %5356
        %v5367 = vsel %vm1890, %v2944, %v4873
        %v5368 = vsel %vm1890, %v3056, %v4875
        %v5369 = vsel %vm1890, %v3168, %v4877
        %v5370 = vsel %vm1890, %v3280, %v4879
        %v5371 = vsel %vm1890, %v3392, %v4881
        %v5372 = vsel %vm1890, %v3504, %v4883
        %v5373 = vsel %vm1890, %v3616, %v4885
        %v5374 = vsel %vm1890, %v3728, %v4887
        %v5375 = vsel %vm1890, %v3840, %v4889
        %v5376 = vsel %vm1896, %v5367, %v4909
        %v5377 = vsel %vm1896, %v5368, %v4911
        %v5378 = vsel %vm1896, %v5369, %v4913
        %v5379 = vsel %vm1896, %v5370, %v4915
        %v5380 = vsel %vm1896, %v5371, %v4917
        %v5381 = vsel %vm1896, %v5372, %v4919
        %v5382 = vsel %vm1896, %v5373, %v4921
        %v5383 = vsel %vm1896, %v5374, %v4923
        %v5384 = vsel %vm1896, %v5375, %v4925
        %v5385 = vsel %vm1902, %v5376, %v4945
        %v5386 = vsel %vm1902, %v5377, %v4947
        %v5387 = vsel %vm1902, %v5378, %v4949
        %v5388 = vsel %vm1902, %v5379, %v4951
        %v5389 = vsel %vm1902, %v5380, %v4953
        %v5390 = vsel %vm1902, %v5381, %v4955
        %v5391 = vsel %vm1902, %v5382, %v4957
        %v5392 = vsel %vm1902, %v5383, %v4959
        %v5393 = vsel %vm1902, %v5384, %v4961
        %v5394 = vsel %vm1908, %v5385, %v4981
        %v5395 = vsel %vm1908, %v5386, %v4983
        %v5396 = vsel %vm1908, %v5387, %v4985
        %v5397 = vsel %vm1908, %v5388, %v4987
        %v5398 = vsel %vm1908, %v5389, %v4989
        %v5399 = vsel %vm1908, %v5390, %v4991
        %v5400 = vsel %vm1908, %v5391, %v4993
        %v5401 = vsel %vm1908, %v5392, %v4995
        %v5402 = vsel %vm1908, %v5393, %v4997
        %v5403 = vsel %vm1914, %v5394, %v5017
        %v5404 = vsel %vm1914, %v5395, %v5019
        %v5405 = vsel %vm1914, %v5396, %v5021
        %v5406 = vsel %vm1914, %v5397, %v5023
        %v5407 = vsel %vm1914, %v5398, %v5025
        %v5408 = vsel %vm1914, %v5399, %v5027
        %v5409 = vsel %vm1914, %v5400, %v5029
        %v5410 = vsel %vm1914, %v5401, %v5031
        %v5411 = vsel %vm1914, %v5402, %v5033
        %v5412 = vsel %vm1920, %v5403, %v5053
        %v5413 = vsel %vm1920, %v5404, %v5055
        %v5414 = vsel %vm1920, %v5405, %v5057
        %v5415 = vsel %vm1920, %v5406, %v5059
        %v5416 = vsel %vm1920, %v5407, %v5061
        %v5417 = vsel %vm1920, %v5408, %v5063
        %v5418 = vsel %vm1920, %v5409, %v5065
        %v5419 = vsel %vm1920, %v5410, %v5067
        %v5420 = vsel %vm1920, %v5411, %v5069
        %v5421 = vsel %vm1926, %v5412, %v5089
        %v5422 = vsel %vm1926, %v5413, %v5091
        %v5423 = vsel %vm1926, %v5414, %v5093
        %v5424 = vsel %vm1926, %v5415, %v5095
        %v5425 = vsel %vm1926, %v5416, %v5097
        %v5426 = vsel %vm1926, %v5417, %v5099
        %v5427 = vsel %vm1926, %v5418, %v5101
        %v5428 = vsel %vm1926, %v5419, %v5103
        %v5429 = vsel %vm1926, %v5420, %v5105
        %v5430 = vsel %vm1890, %v3952, %v5125
        %v5431 = vsel %vm1890, %v4064, %v5127
        %v5432 = vsel %vm1890, %v4176, %v5129
        %v5433 = vsel %vm1890, %v4288, %v5131
        %v5434 = vsel %vm1890, %v4400, %v5133
        %v5435 = vsel %vm1890, %v4512, %v5135
        %v5436 = vsel %vm1890, %v4624, %v5137
        %v5437 = vsel %vm1890, %v4736, %v5139
        %v5438 = vsel %vm1890, %v4848, %v5141
        %v5439 = vsel %vm1896, %v5430, %v5161
        %v5440 = vsel %vm1896, %v5431, %v5163
        %v5441 = vsel %vm1896, %v5432, %v5165
        %v5442 = vsel %vm1896, %v5433, %v5167
        %v5443 = vsel %vm1896, %v5434, %v5169
        %v5444 = vsel %vm1896, %v5435, %v5171
        %v5445 = vsel %vm1896, %v5436, %v5173
        %v5446 = vsel %vm1896, %v5437, %v5175
        %v5447 = vsel %vm1896, %v5438, %v5177
        %v5448 = vsel %vm1902, %v5439, %v5197
        %v5449 = vsel %vm1902, %v5440, %v5199
        %v5450 = vsel %vm1902, %v5441, %v5201
        %v5451 = vsel %vm1902, %v5442, %v5203
        %v5452 = vsel %vm1902, %v5443, %v5205
        %v5453 = vsel %vm1902, %v5444, %v5207
        %v5454 = vsel %vm1902, %v5445, %v5209
        %v5455 = vsel %vm1902, %v5446, %v5211
        %v5456 = vsel %vm1902, %v5447, %v5213
        %v5457 = vsel %vm1908, %v5448, %v5233
        %v5458 = vsel %vm1908, %v5449, %v5235
        %v5459 = vsel %vm1908, %v5450, %v5237
        %v5460 = vsel %vm1908, %v5451, %v5239
        %v5461 = vsel %vm1908, %v5452, %v5241
        %v5462 = vsel %vm1908, %v5453, %v5243
        %v5463 = vsel %vm1908, %v5454, %v5245
        %v5464 = vsel %vm1908, %v5455, %v5247
        %v5465 = vsel %vm1908, %v5456, %v5249
        %v5466 = vsel %vm1914, %v5457, %v5269
        %v5467 = vsel %vm1914, %v5458, %v5271
        %v5468 = vsel %vm1914, %v5459, %v5273
        %v5469 = vsel %vm1914, %v5460, %v5275
        %v5470 = vsel %vm1914, %v5461, %v5277
        %v5471 = vsel %vm1914, %v5462, %v5279
        %v5472 = vsel %vm1914, %v5463, %v5281
        %v5473 = vsel %vm1914, %v5464, %v5283
        %v5474 = vsel %vm1914, %v5465, %v5285
        %v5475 = vsel %vm1920, %v5466, %v5305
        %v5476 = vsel %vm1920, %v5467, %v5307
        %v5477 = vsel %vm1920, %v5468, %v5309
        %v5478 = vsel %vm1920, %v5469, %v5311
        %v5479 = vsel %vm1920, %v5470, %v5313
        %v5480 = vsel %vm1920, %v5471, %v5315
        %v5481 = vsel %vm1920, %v5472, %v5317
        %v5482 = vsel %vm1920, %v5473, %v5319
        %v5483 = vsel %vm1920, %v5474, %v5321
        %v5484 = vsel %vm1926, %v5475, %v5341
        %v5485 = vsel %vm1926, %v5476, %v5343
        %v5486 = vsel %vm1926, %v5477, %v5345
        %v5487 = vsel %vm1926, %v5478, %v5347
        %v5488 = vsel %vm1926, %v5479, %v5349
        %v5489 = vsel %vm1926, %v5480, %v5351
        %v5490 = vsel %vm1926, %v5481, %v5353
        %v5491 = vsel %vm1926, %v5482, %v5355
        %v5492 = vsel %vm1926, %v5483, %v5357
        %v5493 = vld [vmem:[%s3] sm:$0xff]
        %v5494 = vld [vmem:[%s4] sm:$0xff]
        %5496 = vset.pattern.permute.xlu0 0
        %5497 = vperm.xlu0 %5496, %v5494
        %v5498 = vpop.permute.xlu0 %5497
        %vm5500 = vcmask 588800
        %v5502 = vsel %vm5500, %v5493, 0
        %5504 = vmatpush.msra.mxu0 0.0
        %5505 = vmatpush.msra.mxu0 0.0
        %5506 = vmatpush.msra.mxu0 0.0
        %5507 = vmatpush.msra.mxu0 0.0
        %5508 = vmatpush.msra.mxu0 0.0
        %5509 = vmatpush.msra.mxu0 0.0
        %5510 = vmatpush.msra.mxu0 0.0
        %5511 = vmatpush.msra.mxu0 %v5429
        %5512 = vmatpush.msra.mxu0 %v5428
        %5513 = vmatpush.msra.mxu0 %v5427
        %5514 = vmatpush.msra.mxu0 %v5426
        %5515 = vmatpush.msra.mxu0 %v5425
        %5516 = vmatpush.msra.mxu0 %v5424
        %5517 = vmatpush.msra.mxu0 %v5423
        %5518 = vmatpush.msra.mxu0 %v5422
        %5519 = vmatpush.msra.mxu0 %v5421
        %5520 = vmatmul.f32.gmra.mxu0 %v5502
        %v5521 = vpop.f32.mrf.mxu0
        %v5522 = vadd.f32 %v5498, %v5521
        %5523 = vdwg.mxu0
        %5524 = vmatpush.msra.mxu0 0.0
        %5525 = vmatpush.msra.mxu0 0.0
        %5526 = vmatpush.msra.mxu0 0.0
        %5527 = vmatpush.msra.mxu0 0.0
        %5528 = vmatpush.msra.mxu0 0.0
        %5529 = vmatpush.msra.mxu0 0.0
        %5530 = vmatpush.msra.mxu0 0.0
        %5531 = vmatpush.msra.mxu0 %v5492
        %5532 = vmatpush.msra.mxu0 %v5491
        %5533 = vmatpush.msra.mxu0 %v5490
        %5534 = vmatpush.msra.mxu0 %v5489
        %5535 = vmatpush.msra.mxu0 %v5488
        %5536 = vmatpush.msra.mxu0 %v5487
        %5537 = vmatpush.msra.mxu0 %v5486
        %5538 = vmatpush.msra.mxu0 %v5485
        %5539 = vmatpush.msra.mxu0 %v5484
        %5540 = vmatmul.f32.gmra.mxu0 %v5502
        %v5541 = vpop.f32.mrf.mxu0
        %v5542 = vadd.f32 %v5498, %v5541
        %5543 = vdwg.mxu0
        %v5544 = vld [vmem:[%s5] sm:$0xff]
        %v5545 = vrot.slane %v308, 4
        %v5546 = vsel %vm602, %v5545, %v304
        %v5547 = vrot.slane %v304, 4
        %v5548 = vsel %vm602, %v308, %v5547
        %v5550 = vunpack.c.l.s4 1983009808
        %v5551 = vunpack.c.0.s8 %v5550
        %v5552 = vperm.slane %v5546, %v5551
        %v5554 = vunpack.c.l.s4 1983009808
        %v5555 = vunpack.c.0.s8 %v5554
        %v5556 = vperm.slane %v5548, %v5555
        %v5557 = vrot.slane %v310, 4
        %v5558 = vsel %vm602, %v5557, %v306
        %v5559 = vrot.slane %v306, 4
        %v5560 = vsel %vm602, %v310, %v5559
        %v5562 = vunpack.c.l.s4 1983009808
        %v5563 = vunpack.c.0.s8 %v5562
        %v5564 = vperm.slane %v5558, %v5563
        %v5566 = vunpack.c.l.s4 1983009808
        %v5567 = vunpack.c.0.s8 %v5566
        %v5568 = vperm.slane %v5560, %v5567
        %v5569 = vrot.slane %v5564, 4
        %v5570 = vsel %vm602, %v5569, %v5552
        %v5571 = vrot.slane %v5552, 4
        %v5572 = vsel %vm602, %v5564, %v5571
        %v5574 = vunpack.c.l.s4 1934713408
        %v5575 = vunpack.c.0.s8 %v5574
        %v5576 = vperm.slane %v5570, %v5575
        %v5578 = vunpack.c.l.s4 1934713408
        %v5579 = vunpack.c.0.s8 %v5578
        %v5580 = vperm.slane %v5572, %v5579
        %v5581 = vrot.slane %v5568, 4
        %v5582 = vsel %vm602, %v5581, %v5556
        %v5583 = vrot.slane %v5556, 4
        %v5584 = vsel %vm602, %v5568, %v5583
        %v5586 = vunpack.c.l.s4 1934713408
        %v5587 = vunpack.c.0.s8 %v5586
        %v5588 = vperm.slane %v5582, %v5587
        %v5590 = vunpack.c.l.s4 1934713408
        %v5591 = vunpack.c.0.s8 %v5590
        %v5592 = vperm.slane %v5584, %v5591
        %v5593 = vrot.slane %v5576, 4
        %v5594 = vsel %vm602, 0.0, %v5593
        %v5595 = vrot.slane %v5580, 4
        %v5596 = vsel %vm602, 0.0, %v5595
        %v5597 = vrot.slane %v5588, 4
        %v5598 = vsel %vm602, 0.0, %v5597
        %v5599 = vrot.slane %v5592, 4
        %v5600 = vsel %vm602, 0.0, %v5599
        %v5601 = vrot.slane %v309, 4
        %v5602 = vsel %vm602, %v5601, %v305
        %v5603 = vrot.slane %v305, 4
        %v5604 = vsel %vm602, %v309, %v5603
        %v5606 = vunpack.c.l.s4 1983009808
        %v5607 = vunpack.c.0.s8 %v5606
        %v5608 = vperm.slane %v5602, %v5607
        %v5610 = vunpack.c.l.s4 1983009808
        %v5611 = vunpack.c.0.s8 %v5610
        %v5612 = vperm.slane %v5604, %v5611
        %v5613 = vrot.slane %v311, 4
        %v5614 = vsel %vm602, %v5613, %v307
        %v5615 = vrot.slane %v307, 4
        %v5616 = vsel %vm602, %v311, %v5615
        %v5618 = vunpack.c.l.s4 1983009808
        %v5619 = vunpack.c.0.s8 %v5618
        %v5620 = vperm.slane %v5614, %v5619
        %v5622 = vunpack.c.l.s4 1983009808
        %v5623 = vunpack.c.0.s8 %v5622
        %v5624 = vperm.slane %v5616, %v5623
        %v5625 = vrot.slane %v5620, 4
        %v5626 = vsel %vm602, %v5625, %v5608
        %v5627 = vrot.slane %v5608, 4
        %v5628 = vsel %vm602, %v5620, %v5627
        %v5630 = vunpack.c.l.s4 1934713408
        %v5631 = vunpack.c.0.s8 %v5630
        %v5632 = vperm.slane %v5626, %v5631
        %v5634 = vunpack.c.l.s4 1934713408
        %v5635 = vunpack.c.0.s8 %v5634
        %v5636 = vperm.slane %v5628, %v5635
        %v5637 = vrot.slane %v5624, 4
        %v5638 = vsel %vm602, %v5637, %v5612
        %v5639 = vrot.slane %v5612, 4
        %v5640 = vsel %vm602, %v5624, %v5639
        %v5642 = vunpack.c.l.s4 1934713408
        %v5643 = vunpack.c.0.s8 %v5642
        %v5644 = vperm.slane %v5638, %v5643
        %v5646 = vunpack.c.l.s4 1934713408
        %v5647 = vunpack.c.0.s8 %v5646
        %v5648 = vperm.slane %v5640, %v5647
        %v5649 = vrot.slane %v5632, 4
        %v5650 = vsel %vm602, 0.0, %v5649
        %v5651 = vrot.slane %v5636, 4
        %v5652 = vsel %vm602, 0.0, %v5651
        %v5653 = vrot.slane %v5644, 4
        %v5654 = vsel %vm602, 0.0, %v5653
        %v5655 = vrot.slane %v5648, 4
        %v5656 = vsel %vm602, 0.0, %v5655
        %5658 = vrot.lane.b32.xlu0 %v5594, 16
        %v5659 = vpop.permute.xlu0 %5658
        %5662 = vrot.lane.b32.xlu0 %v5580, 32
        %v5663 = vpop.permute.xlu0 %5662
        %5666 = vrot.lane.b32.xlu0 %v5596, 48
        %v5667 = vpop.permute.xlu0 %5666
        %5670 = vrot.lane.b32.xlu0 %v5588, 64
        %v5671 = vpop.permute.xlu0 %5670
        %5674 = vrot.lane.b32.xlu0 %v5598, 80
        %v5675 = vpop.permute.xlu0 %5674
        %5678 = vrot.lane.b32.xlu0 %v5592, 96
        %v5679 = vpop.permute.xlu0 %5678
        %5682 = vrot.lane.b32.xlu0 %v5600, 112
        %v5683 = vpop.permute.xlu0 %5682
        %5686 = vrot.lane.b32.xlu0 %v5650, 16
        %v5687 = vpop.permute.xlu0 %5686
        %5690 = vrot.lane.b32.xlu0 %v5636, 32
        %v5691 = vpop.permute.xlu0 %5690
        %5694 = vrot.lane.b32.xlu0 %v5652, 48
        %v5695 = vpop.permute.xlu0 %5694
        %5698 = vrot.lane.b32.xlu0 %v5644, 64
        %v5699 = vpop.permute.xlu0 %5698
        %5702 = vrot.lane.b32.xlu0 %v5654, 80
        %v5703 = vpop.permute.xlu0 %5702
        %5706 = vrot.lane.b32.xlu0 %v5648, 96
        %v5707 = vpop.permute.xlu0 %5706
        %5710 = vrot.lane.b32.xlu0 %v5656, 112
        %v5711 = vpop.permute.xlu0 %5710
        %v5713 = vsel %vm1890, %v5576, %v5659
        %v5714 = vsel %vm1896, %v5713, %v5663
        %v5715 = vsel %vm1902, %v5714, %v5667
        %v5716 = vsel %vm1908, %v5715, %v5671
        %v5717 = vsel %vm1914, %v5716, %v5675
        %v5718 = vsel %vm1920, %v5717, %v5679
        %v5719 = vsel %vm1926, %v5718, %v5683
        %v5720 = vsel %vm1890, %v5632, %v5687
        %v5721 = vsel %vm1896, %v5720, %v5691
        %v5722 = vsel %vm1902, %v5721, %v5695
        %v5723 = vsel %vm1908, %v5722, %v5699
        %v5724 = vsel %vm1914, %v5723, %v5703
        %v5725 = vsel %vm1920, %v5724, %v5707
        %v5726 = vsel %vm1926, %v5725, %v5711
        %v5727 = vld [vmem:[%s6] sm:$0xff]
        %5729 = vset.pattern.permute.xlu0 0
        %5730 = vperm.xlu0 %5729, %v5727
        %v5731 = vpop.permute.xlu0 %5730
        %vm5733 = vcmask 31744
        %v5735 = vsel %vm5733, %v5544, 0
        %v5738 = vsel %vm1978, %v5719, 0
        %v5741 = vsel %vm1978, %v5726, 0
        %5743 = vmatpush.msra.mxu0 0.0
        %5744 = vmatpush.msra.mxu0 0.0
        %5745 = vmatpush.msra.mxu0 0.0
        %5746 = vmatpush.msra.mxu0 0.0
        %5747 = vmatpush.msra.mxu0 0.0
        %5748 = vmatpush.msra.mxu0 0.0
        %5749 = vmatpush.msra.mxu0 0.0
        %5750 = vmatpush.msra.mxu0 0.0
        %5751 = vmatpush.msra.mxu0 0.0
        %5752 = vmatpush.msra.mxu0 0.0
        %5753 = vmatpush.msra.mxu0 0.0
        %5754 = vmatpush.msra.mxu0 0.0
        %5755 = vmatpush.msra.mxu0 0.0
        %5756 = vmatpush.msra.mxu0 0.0
        %5757 = vmatpush.msra.mxu0 0.0
        %5758 = vmatpush.msra.mxu0 %v5738
        %5759 = vmatmul.f32.gmra.mxu0 %v5735
        %v5760 = vpop.f32.mrf.mxu0
        %v5761 = vadd.f32 %v5731, %v5760
        %5762 = vdwg.mxu0
        %5763 = vmatpush.msra.mxu0 0.0
        %5764 = vmatpush.msra.mxu0 0.0
        %5765 = vmatpush.msra.mxu0 0.0
        %5766 = vmatpush.msra.mxu0 0.0
        %5767 = vmatpush.msra.mxu0 0.0
        %5768 = vmatpush.msra.mxu0 0.0
        %5769 = vmatpush.msra.mxu0 0.0
        %5770 = vmatpush.msra.mxu0 0.0
        %5771 = vmatpush.msra.mxu0 0.0
        %5772 = vmatpush.msra.mxu0 0.0
        %5773 = vmatpush.msra.mxu0 0.0
        %5774 = vmatpush.msra.mxu0 0.0
        %5775 = vmatpush.msra.mxu0 0.0
        %5776 = vmatpush.msra.mxu0 0.0
        %5777 = vmatpush.msra.mxu0 0.0
        %5778 = vmatpush.msra.mxu0 %v5741
        %5779 = vmatmul.f32.gmra.mxu0 %v5735
        %v5780 = vpop.f32.mrf.mxu0
        %v5781 = vadd.f32 %v5731, %v5780
        %5782 = vdwg.mxu0
        %v5783 = vadd.f32 %v5522, %v5761
        %v5784 = vadd.f32 %v5542, %v5781
        %v5785 = vld [vmem:[%s7] sm:$0xff]
        %v5786 = vld [vmem:[%s7 + $0x8] sm:$0xff]
        %v5787 = vld [vmem:[%s7 + $0x10] sm:$0xff]
        %v5788 = vld [vmem:[%s7 + $0x18] sm:$0xff]
        %v5789 = vld [vmem:[%s7 + $0x20] sm:$0xff]
        %v5790 = vld [vmem:[%s7 + $0x28] sm:$0xff]
        %v5791 = vld [vmem:[%s7 + $0x30] sm:$0xff]
        %v5792 = vld [vmem:[%s7 + $0x38] sm:$0xff]
        %v5793 = vld [vmem:[%s7 + $0x40] sm:$0xff]
        %v5794 = vld [vmem:[%s7 + $0x48] sm:$0xff]
        %v5795 = vld [vmem:[%s7 + $0x50] sm:$0xff]
        %v5796 = vld [vmem:[%s7 + $0x58] sm:$0xff]
        %v5797 = vld [vmem:[%s7 + $0x60] sm:$0xff]
        %v5798 = vld [vmem:[%s7 + $0x68] sm:$0xff]
        %v5799 = vld [vmem:[%s7 + $0x70] sm:$0xff]
        %v5800 = vld [vmem:[%s7 + $0x78] sm:$0xff]
        %v5801 = vld [vmem:[%s7 + $0x80] sm:$0xff]
        %v5802 = vld [vmem:[%s7 + $0x88] sm:$0xff]
        %v5803 = vld [vmem:[%s7 + $0x90] sm:$0xff]
        %v5804 = vld [vmem:[%s7 + $0x98] sm:$0xff]
        %v5805 = vld [vmem:[%s7 + $0xa0] sm:$0xff]
        %v5806 = vld [vmem:[%s7 + $0xa8] sm:$0xff]
        %v5807 = vld [vmem:[%s7 + $0xb0] sm:$0xff]
        %v5808 = vld [vmem:[%s7 + $0xb8] sm:$0xff]
        %v5809 = vld [vmem:[%s7 + $0xc0] sm:$0xff]
        %v5810 = vld [vmem:[%s7 + $0xc8] sm:$0xff]
        %v5811 = vld [vmem:[%s7 + $0xd0] sm:$0xff]
        %v5812 = vld [vmem:[%s7 + $0xd8] sm:$0xff]
        %v5813 = vld [vmem:[%s7 + $0xe0] sm:$0xff]
        %v5814 = vld [vmem:[%s7 + $0xe8] sm:$0xff]
        %v5815 = vld [vmem:[%s7 + $0xf0] sm:$0xff]
        %v5816 = vld [vmem:[%s7 + $0xf8] sm:$0xff]
        %5817 = vmatpush.msra.mxu0 %v5800
        %5818 = vmatpush.msra.mxu0 %v5799
        %5819 = vmatpush.msra.mxu0 %v5798
        %5820 = vmatpush.msra.mxu0 %v5797
        %5821 = vmatpush.msra.mxu0 %v5796
        %5822 = vmatpush.msra.mxu0 %v5795
        %5823 = vmatpush.msra.mxu0 %v5794
        %5824 = vmatpush.msra.mxu0 %v5793
        %5825 = vmatpush.msra.mxu0 %v5792
        %5826 = vmatpush.msra.mxu0 %v5791
        %5827 = vmatpush.msra.mxu0 %v5790
        %5828 = vmatpush.msra.mxu0 %v5789
        %5829 = vmatpush.msra.mxu0 %v5788
        %5830 = vmatpush.msra.mxu0 %v5787
        %5831 = vmatpush.msra.mxu0 %v5786
        %5832 = vmatpush.msra.mxu0 %v5785
        %5833 = vmatmul.f32.gmra.mxu0 %v5783
        %v5834 = vpop.f32.mrf.mxu0
        %v5835 = vadd.f32 0.0, %v5834
        %5836 = vdwg.mxu0
        %5837 = vmatpush.msra.mxu0 %v5816
        %5838 = vmatpush.msra.mxu0 %v5815
        %5839 = vmatpush.msra.mxu0 %v5814
        %5840 = vmatpush.msra.mxu0 %v5813
        %5841 = vmatpush.msra.mxu0 %v5812
        %5842 = vmatpush.msra.mxu0 %v5811
        %5843 = vmatpush.msra.mxu0 %v5810
        %5844 = vmatpush.msra.mxu0 %v5809
        %5845 = vmatpush.msra.mxu0 %v5808
        %5846 = vmatpush.msra.mxu0 %v5807
        %5847 = vmatpush.msra.mxu0 %v5806
        %5848 = vmatpush.msra.mxu0 %v5805
        %5849 = vmatpush.msra.mxu0 %v5804
        %5850 = vmatpush.msra.mxu0 %v5803
        %5851 = vmatpush.msra.mxu0 %v5802
        %5852 = vmatpush.msra.mxu0 %v5801
        %5853 = vmatmul.f32.gmra.mxu0 %v5784
        %v5854 = vpop.f32.mrf.mxu0
        %v5855 = vadd.f32 %v5835, %v5854
        %5856 = vdwg.mxu0
        %5857 = vst.msk [vmem:[%s298] sm:$0xff] %vm1908, %v5855
        %s5858 = sand.u32 %s203, 1
        %s5859 = scalar_lea.sflag [#allocation5], %s5858
        %s5860 = sand.u32 %s203, 1
        %s5861 = smul.addr %s5860, 8
        %s5862 = scalar_lea.vmem [#allocation4], %s5861
        // Predicated region
        $region53: #{tpu_custom_call.1} parent=51 // pred_check
          %p5863 = pneg %p213
        $region54: #{tpu_custom_call.1} parent=51 // pred_check_branch
          %5865 = sbr.rel (%p5863) target = $region56
        $region55: #{tpu_custom_call.1} parent=51 // pred_region
          %5867 = vsyncadd %s5859, 0
          %s5868 = smul.addr %s22, 8
          %s5869 = scalar_lea.hbm %s8, %s5868
          %s5871 = sshll.u32 %s5862, 4
          %s5872 = int_to_ptr.vmem [resolvable:$true] %s5871
          %s5873 = sshll.u32 %s5869, 4
          %s5874 = int_to_ptr.hbm [resolvable:$true] %s5873
          %5876 = dma.vmem_to_hbm [thread:$0]  %s5872, 128, %s5874, %s5859
        $region56: #{tpu_custom_call.1} parent=51 // pred_fallthru
          _
      $region52: #{tpu_custom_call.1} parent=5 // pred_fallthru
        _
      %p5877 = scmp.le.s32.totalorder 2, %s17
      // Predicated region
      $region57: #{tpu_custom_call.1} parent=5 // pred_check
        %p5878 = pneg %p5877
      $region58: #{tpu_custom_call.1} parent=5 // pred_check_branch
        %5880 = sbr.rel (%p5878) target = $region60
      $region59: #{tpu_custom_call.1} parent=5 // pred_region
        %s5881 = ssub.s32 %s17, 2
        // Predicated region
        $region61: #{tpu_custom_call.1} parent=59 // pred_check
          %p5882 = pneg %p219
        $region62: #{tpu_custom_call.1} parent=59 // pred_check_branch
          %5884 = sbr.rel (%p5882) target = $region64
        $region63: #{tpu_custom_call.1} parent=59 // pred_region
          %s5885 = sand.u32 %s204, 1
          %s5886 = scalar_lea.sflag [#allocation5], %s5885
          %s5887 = sand.u32 %s204, 1
          %s5888 = smul.addr %s5887, 8
          %s5889 = scalar_lea.vmem [#allocation4], %s5888
          %5891 = dma.done %s5886, 128
        $region64: #{tpu_custom_call.1} parent=59 // pred_fallthru
          _
      $region60: #{tpu_custom_call.1} parent=5 // pred_fallthru
        _
    $region6: #{tpu_custom_call.1} parent=1 // loop_footer
      %s21 = sadd.s32 1, %s17
    $region7: #{tpu_custom_call.1} parent=1 // loop_footer_branch
      %16 = sbr.rel target = $region3
    $region8: #{tpu_custom_call.1} parent=1 // loop_exit
      _
    %5892 = vsyncpa [#allocation5], 1
    %s5893 = scalar_lea.sflag [#allocation5], 1
    %5894 = vsyncpa %s5893, 1

</llo_original>
